<compile_context>
chip_gen: v7x
topology: tpu7x:2x2x1
jax: 0.10.0
libtpu: 0.0.40
codegen_flags: <defaults>
</compile_context>

<pallas_src>
import functools

import jax
import jax.numpy as jnp
from jax.experimental import pallas as pl
from jax.experimental.pallas import tpu as pltpu


# ------------------------------ fused stage kernel ----------------------------

def _make_stage_kernel(n_cls_heads, num_head, dim_head, act):
    """Builds the per-stage kernel.

    Ref order: 15 fixed inputs, then (w, b) per classification head, then one
    output ref per head, then the VMEM scratch holding the resident activation.
    Grid is (batch, num_layers); layer axis is innermost.
    """

    def kernel(*refs):
        (x_ref, m_ref, embw_ref, embb_ref,
         ln1g_ref, ln1b_ref, wqkv_ref, wo_ref, bo_ref,
         ln2g_ref, ln2b_ref, w1_ref, b1_ref, w2_ref, b2_ref) = refs[:15]
        head_refs = refs[15:15 + 2 * n_cls_heads]
        out_refs = refs[15 + 2 * n_cls_heads:15 + 3 * n_cls_heads]
        h_ref = refs[-1]

        l = pl.program_id(1)
        num_layers = pl.num_programs(1)
        t, d = h_ref.shape
        hd = num_head * dim_head

        # ---- layer 0: stage input activation + mask + embedding (local value,
        #      no store->load round trip through VMEM scratch) ----
        def embed_input():
            x = x_ref[...].astype(jnp.float32)
            m = m_ref[...]
            if act == "softmax":          # torch Softmax(dim=1) == channel axis here
                x = x - jnp.max(x, axis=-1, keepdims=True)
                e = jnp.exp(x)
                x = (e / jnp.sum(e, axis=-1, keepdims=True)) * m   # exact (feeds next stage)
            elif act == "sigmoid":
                x = jax.nn.sigmoid(x) * m
            w = embw_ref[...]
            if x.shape[-1] == 1:          # Cin == 1: K=1 matmul as broadcast outer product
                h0 = x * w
            else:
                h0 = jnp.dot(x.astype(jnp.bfloat16), w,
                             preferred_element_type=jnp.float32)
            return h0 + embb_ref[...]

        h = jax.lax.cond(l == 0, embed_input, lambda: h_ref[...])

        # ---- pre-LN multi-head self-attention ----
        mu = jnp.mean(h, axis=-1, keepdims=True)
        var = jnp.mean(jnp.square(h - mu), axis=-1, keepdims=True)
        hn = (h - mu) * jax.lax.rsqrt(var + 1e-5) * ln1g_ref[0] + ln1b_ref[0]

        # packed QKV projection (scale already folded into the Q columns)
        qkv = jnp.dot(hn.astype(jnp.bfloat16), wqkv_ref[0],
                      preferred_element_type=jnp.float32)          # (T, 3*HD) f32

        heads = []
        for hh in range(num_head):
            q = qkv[:, hh * dim_head:(hh + 1) * dim_head]
            k = qkv[:, hd + hh * dim_head:hd + (hh + 1) * dim_head]
            v = qkv[:, 2 * hd + hh * dim_head:2 * hd + (hh + 1) * dim_head]
            s = jnp.dot(q.astype(jnp.bfloat16), k.T.astype(jnp.bfloat16),
                        preferred_element_type=jnp.float32)        # (T, T)
            s = s - jnp.max(s, axis=-1, keepdims=True)
            p = jnp.exp(s)
            p = p * pl.reciprocal(jnp.sum(p, axis=-1, keepdims=True), approx=True)
            heads.append(jnp.dot(p.astype(jnp.bfloat16), v.astype(jnp.bfloat16),
                                 preferred_element_type=jnp.float32))
        att = jnp.concatenate(heads, axis=-1)                       # (T, HD)
        h = h + jnp.dot(att.astype(jnp.bfloat16), wo_ref[0],
                        preferred_element_type=jnp.float32) + bo_ref[0]

        # ---- pre-LN feed-forward ----
        mu = jnp.mean(h, axis=-1, keepdims=True)
        var = jnp.mean(jnp.square(h - mu), axis=-1, keepdims=True)
        hn = (h - mu) * jax.lax.rsqrt(var + 1e-5) * ln2g_ref[0] + ln2b_ref[0]
        y = jnp.maximum(jnp.dot(hn.astype(jnp.bfloat16), w1_ref[0],
                                preferred_element_type=jnp.float32) + b1_ref[0], 0.0)
        y = jnp.dot(y.astype(jnp.bfloat16), w2_ref[0],
                    preferred_element_type=jnp.float32) + b2_ref[0]
        h_new = h + y
        h_ref[...] = h_new                                          # resident for next layer

        # ---- last layer: mask + classification head(s), one output per head ----
        @pl.when(l == num_layers - 1)
        def _():
            hm = (h_new * m_ref[...]).astype(jnp.bfloat16)
            for i in range(n_cls_heads):
                w_ref = head_refs[2 * i]
                b_ref = head_refs[2 * i + 1]
                o = jnp.dot(hm, w_ref[...],
                            preferred_element_type=jnp.float32) + b_ref[...]
                out_refs[i][...] = o.astype(out_refs[i].dtype)

    return kernel


def fused_stage_pallas(x2d, mask2d, stage, *, batch, num_head, dim_head, act):
    """x2d: (B*T', Cin), mask2d: (B*T', 1) -> list of (B*T', Cout_i) outputs."""
    BT, Cin = x2d.shape
    T = BT // batch
    blk = stage["blocks"]
    L, D, _ = blk["wqkv"].shape
    heads = stage["heads"]
    n_heads = len(heads)

    kernel = _make_stage_kernel(n_heads, num_head, dim_head, act)

    def per_batch(shape):                 # activation / mask / output tiles (one batch elem)
        return pl.BlockSpec(shape, lambda b, l: (b, 0))

    def const(shape):                     # grid-invariant weights (DMA'd once)
        return pl.BlockSpec(shape, lambda b, l: (0,) * len(shape))

    def per_layer(shape3):                # per-layer stacked weights, streamed over l
        return pl.BlockSpec((1,) + shape3[1:], lambda b, l: (l, 0, 0))

    in_specs = [
        per_batch((T, Cin)), per_batch((T, 1)),
        const(stage["emb_w"].shape), const(stage["emb_b"].shape),
        per_layer(blk["ln1_g"].shape), per_layer(blk["ln1_b"].shape),
        per_layer(blk["wqkv"].shape),
        per_layer(blk["wo"].shape), per_layer(blk["bo"].shape),
        per_layer(blk["ln2_g"].shape), per_layer(blk["ln2_b"].shape),
        per_layer(blk["w1"].shape), per_layer(blk["b1"].shape),
        per_layer(blk["w2"].shape), per_layer(blk["b2"].shape),
    ]
    args = [x2d, mask2d, stage["emb_w"], stage["emb_b"],
            blk["ln1_g"], blk["ln1_b"], blk["wqkv"], blk["wo"], blk["bo"],
            blk["ln2_g"], blk["ln2_b"], blk["w1"], blk["b1"], blk["w2"], blk["b2"]]

    out_shapes, out_specs = [], []
    for (w, b) in heads:
        in_specs += [const(w.shape), const(b.shape)]
        args += [w, b]
        cout = w.shape[1]
        out_shapes.append(jax.ShapeDtypeStruct((BT, cout), jnp.float32))
        out_specs.append(per_batch((T, cout)))

    outs = pl.pallas_call(
        kernel,
        out_shape=tuple(out_shapes),
        grid=(batch, L),
        in_specs=in_specs,
        out_specs=tuple(out_specs),
        scratch_shapes=[pltpu.VMEM((T, D), jnp.float32)],
        compiler_params=pltpu.CompilerParams(
            dimension_semantics=("parallel", "arbitrary"),
            # fits v7x's 64 MiB physical with headroom; raise further on v5e/v6e
            # (128 MiB physical) at production shapes.
            vmem_limit_bytes=48 * 1024 * 1024),
    )(*args)
    return list(outs) if isinstance(outs, (tuple, list)) else [outs]


# --------------------------- parameter construction ---------------------------

def _normal(key, shape, scale=0.02):
    return scale * jax.random.normal(key, shape, jnp.float32)


def init_stacked_blocks(key, num_layers, dim, num_head, dim_head, hidden):
    HD = num_head * dim_head
    L = num_layers
    ks = jax.random.split(key, 4)
    wqkv = _normal(ks[0], (L, dim, 3 * HD))
    # fold the attention 1/sqrt(dim_head) scale into the Q columns
    wqkv = wqkv.at[:, :, :HD].multiply(dim_head ** -0.5)
    return dict(
        ln1_g=jnp.ones((L, 1, dim), jnp.float32),
        ln1_b=jnp.zeros((L, 1, dim), jnp.float32),
        wqkv=wqkv.astype(jnp.bfloat16),
        wo=_normal(ks[1], (L, HD, dim)).astype(jnp.bfloat16),
        bo=jnp.zeros((L, 1, dim), jnp.float32),
        ln2_g=jnp.ones((L, 1, dim), jnp.float32),
        ln2_b=jnp.zeros((L, 1, dim), jnp.float32),
        w1=_normal(ks[2], (L, dim, hidden)).astype(jnp.bfloat16),
        b1=jnp.zeros((L, 1, hidden), jnp.float32),
        w2=_normal(ks[3], (L, hidden, dim)).astype(jnp.bfloat16),
        b2=jnp.zeros((L, 1, dim), jnp.float32),
    )


def init_stage(key, cin, dim, couts, num_layers, num_head, dim_head, hidden):
    keys = jax.random.split(key, 2 + len(couts))
    heads = []
    for i, co in enumerate(couts):
        heads.append((_normal(keys[2 + i], (dim, co)).astype(jnp.bfloat16),
                      jnp.zeros((1, co), jnp.float32)))
    return dict(
        emb_w=_normal(keys[0], (cin, dim)).astype(jnp.bfloat16),
        emb_b=jnp.zeros((1, dim), jnp.float32),
        blocks=init_stacked_blocks(keys[1], num_layers, dim, num_head, dim_head, hidden),
        heads=heads,
    )


def init_asrf_with_brt(key, in_channel, num_features, num_classes,
                       num_stages, num_layers, num_head, dim_head, hidden):
    k_sh, k_asb, k_brb = jax.random.split(key, 3)
    # shared: conv_in -> blocks -> mask -> [conv_cls, conv_bound]  (two heads)
    shared = init_stage(k_sh, in_channel, num_features, [num_classes, 1],
                        num_layers, num_head, dim_head, hidden)
    n = max(num_stages - 1, 1)
    asb_keys = jax.random.split(k_asb, n)
    brb_keys = jax.random.split(k_brb, n)
    asb = [init_stage(asb_keys[i], num_classes, num_features, [num_classes],
                      num_layers, num_head, dim_head, hidden)
           for i in range(num_stages - 1)]
    brb = [init_stage(brb_keys[i], 1, num_features, [1],
                      num_layers, num_head, dim_head, hidden)
           for i in range(num_stages - 1)]
    return dict(shared=shared, asb=asb, brb=brb)


# --------------------------------- forward ------------------------------------

def asrf_with_brt_forward(x, mask, params, *, sample_rate, num_head, dim_head):
    B, Cin, Tp = x.shape
    # mirror: mask = mask[:, :, ::sample_rate]
    mask_ds = mask[:, :, ::sample_rate]                            # (B, 1, T')
    m2d = jnp.transpose(mask_ds, (0, 2, 1)).reshape(B * Tp, 1)
    x2d = jnp.transpose(x, (0, 2, 1)).reshape(B * Tp, Cin)

    # shared stage: conv_in + encoder + mask + (conv_cls, conv_bound) as two outputs
    out_cls, out_bound = fused_stage_pallas(
        x2d, m2d, params["shared"], batch=B, num_head=num_head,
        dim_head=dim_head, act="none")

    outputs_cls = [out_cls]
    for st in params["asb"]:
        out_cls = fused_stage_pallas(out_cls, m2d, st, batch=B,
                                     num_head=num_head, dim_head=dim_head,
                                     act="softmax")[0]
        outputs_cls.append(out_cls)

    outputs_bound = [out_bound]
    for st in params["brb"]:
        out_bound = fused_stage_pallas(out_bound, m2d, st, batch=B,
                                       num_head=num_head, dim_head=dim_head,
                                       act="sigmoid")[0]
        outputs_bound.append(out_bound)

    def stack_up(outs):
        s = jnp.stack([o.reshape(B, Tp, -1) for o in outs], axis=0)   # (S,B,T',C)
        s = jnp.transpose(s, (0, 1, 3, 2))                            # (S,B,C,T')
        return jnp.repeat(s, sample_rate, axis=-1)                    # nearest upsample

    return {"cls": stack_up(outputs_cls),
            "boundary": stack_up(outputs_bound),
            "features": x}


# ----------------------------------- main --------------------------------------

if __name__ == "__main__":
    B = 2
    in_channel = 32
    num_features = 16
    num_classes = 8
    num_stages = 2          # -> 1 ASB stage, 1 BRB stage
    num_layers = 2
    num_head = 2
    dim_head = 4
    sample_rate = 2
    T_video = 16
    T = T_video // sample_rate
    hidden = 4 * num_features

    key = jax.random.PRNGKey(0)
    k_param, k_x = jax.random.split(key)
    params = init_asrf_with_brt(k_param, in_channel, num_features, num_classes,
                                num_stages, num_layers, num_head, dim_head, hidden)

    x = jax.random.normal(k_x, (B, in_channel, T), jnp.float32)
    mask = jnp.ones((B, 1, T_video), jnp.float32)
    mask = mask.at[1, 0, 12:].set(0.0)   # second sample padded at the tail

    fwd = jax.jit(functools.partial(asrf_with_brt_forward,
                                    sample_rate=sample_rate,
                                    num_head=num_head, dim_head=dim_head))
    out = fwd(x, mask, params)
    jax.block_until_ready(out)

    assert out["cls"].shape == (num_stages, B, num_classes, T_video)
    assert out["boundary"].shape == (num_stages, B, 1, T_video)
    assert out["features"].shape == x.shape
    assert bool(jnp.all(jnp.isfinite(out["cls"])))
    assert bool(jnp.all(jnp.isfinite(out["boundary"])))
    print("KERNEL_OK")
</pallas_src>

<mosaic_0001>
module attributes {stable_mosaic.version = 11 : i64} {
  func.func @kernel(%arg0: i32, %arg1: i32, %arg2: memref<8x32xf32, #tpu.memory_space<vmem>>, %arg3: memref<8x1xf32, #tpu.memory_space<vmem>>, %arg4: memref<32x16xbf16, #tpu.memory_space<vmem>>, %arg5: memref<1x16xf32, #tpu.memory_space<vmem>>, %arg6: memref<1x1x16xf32, #tpu.memory_space<vmem>>, %arg7: memref<1x1x16xf32, #tpu.memory_space<vmem>>, %arg8: memref<1x16x24xbf16, #tpu.memory_space<vmem>>, %arg9: memref<1x8x16xbf16, #tpu.memory_space<vmem>>, %arg10: memref<1x1x16xf32, #tpu.memory_space<vmem>>, %arg11: memref<1x1x16xf32, #tpu.memory_space<vmem>>, %arg12: memref<1x1x16xf32, #tpu.memory_space<vmem>>, %arg13: memref<1x16x64xbf16, #tpu.memory_space<vmem>>, %arg14: memref<1x1x64xf32, #tpu.memory_space<vmem>>, %arg15: memref<1x64x16xbf16, #tpu.memory_space<vmem>>, %arg16: memref<1x1x16xf32, #tpu.memory_space<vmem>>, %arg17: memref<16x8xbf16, #tpu.memory_space<vmem>>, %arg18: memref<1x8xf32, #tpu.memory_space<vmem>>, %arg19: memref<16x1xbf16, #tpu.memory_space<vmem>>, %arg20: memref<1x1xf32, #tpu.memory_space<vmem>>, %arg21: memref<8x8xf32, #tpu.memory_space<vmem>>, %arg22: memref<8x1xf32, #tpu.memory_space<vmem>>, %arg23: memref<8x16xf32, #tpu.memory_space<vmem>>) attributes {dimension_semantics = [#tpu.dimension_semantics<parallel>, #tpu.dimension_semantics<arbitrary>], iteration_bounds = array<i64: 2, 2>, scalar_prefetch = 0 : i64, scratch_operands = 1 : i64, tpu.core_type = #tpu.core_type<tc>, window_params = [{transform_indices = @transform_0, window_bounds = array<i64: 8, 32>}, {transform_indices = @transform_1, window_bounds = array<i64: 8, 1>}, {pipeline_mode = #tpu.pipeline_mode<synchronous>, transform_indices = @transform_2, window_bounds = array<i64: 32, 16>}, {pipeline_mode = #tpu.pipeline_mode<synchronous>, transform_indices = @transform_3, window_bounds = array<i64: 1, 16>}, {transform_indices = @transform_4, window_bounds = array<i64: 1, 1, 16>}, {transform_indices = @transform_5, window_bounds = array<i64: 1, 1, 16>}, {transform_indices = @transform_6, window_bounds = array<i64: 1, 16, 24>}, {transform_indices = @transform_7, window_bounds = array<i64: 1, 8, 16>}, {transform_indices = @transform_8, window_bounds = array<i64: 1, 1, 16>}, {transform_indices = @transform_9, window_bounds = array<i64: 1, 1, 16>}, {transform_indices = @transform_10, window_bounds = array<i64: 1, 1, 16>}, {transform_indices = @transform_11, window_bounds = array<i64: 1, 16, 64>}, {transform_indices = @transform_12, window_bounds = array<i64: 1, 1, 64>}, {transform_indices = @transform_13, window_bounds = array<i64: 1, 64, 16>}, {transform_indices = @transform_14, window_bounds = array<i64: 1, 1, 16>}, {pipeline_mode = #tpu.pipeline_mode<synchronous>, transform_indices = @transform_15, window_bounds = array<i64: 16, 8>}, {pipeline_mode = #tpu.pipeline_mode<synchronous>, transform_indices = @transform_16, window_bounds = array<i64: 1, 8>}, {pipeline_mode = #tpu.pipeline_mode<synchronous>, transform_indices = @transform_17, window_bounds = array<i64: 16, 1>}, {pipeline_mode = #tpu.pipeline_mode<synchronous>, transform_indices = @transform_18, window_bounds = array<i64: 1, 1>}, {transform_indices = @transform_19, window_bounds = array<i64: 8, 8>}, {transform_indices = @transform_20, window_bounds = array<i64: 8, 1>}]} {
    %c0_i32 = arith.constant 0 : i32
    %0 = arith.cmpi eq, %arg1, %c0_i32 : i32
    %1 = arith.extui %0 : i1 to i32
    %c0_i32_0 = arith.constant 0 : i32
    %2 = arith.cmpi ne, %1, %c0_i32_0 : i32
    %3 = scf.if %2 -> (vector<8x16xf32>) {
      %c0_58 = arith.constant 0 : index
      %c0_59 = arith.constant 0 : index
      %133 = vector.load %arg2[%c0_58, %c0_59] : memref<8x32xf32, #tpu.memory_space<vmem>>, vector<8x32xf32>
      %c0_60 = arith.constant 0 : index
      %c0_61 = arith.constant 0 : index
      %134 = vector.load %arg4[%c0_60, %c0_61] : memref<32x16xbf16, #tpu.memory_space<vmem>>, vector<32x16xbf16>
      %135 = arith.truncf %133 : vector<8x32xf32> to vector<8x32xbf16>
      %cst_62 = arith.constant dense<0.000000e+00> : vector<8x16xf32>
      %136 = tpu.matmul %135, %134, %cst_62 {dimension_numbers = #tpu.dot_dimension_numbers<[1], [0], [0], [1], [0, 0, 1, 1], [], []>} : vector<8x32xbf16>, vector<32x16xbf16>, vector<8x16xf32> -> vector<8x16xf32>
      %c0_63 = arith.constant 0 : index
      %c0_64 = arith.constant 0 : index
      %137 = vector.load %arg5[%c0_63, %c0_64] : memref<1x16xf32, #tpu.memory_space<vmem>>, vector<1x16xf32>
      %138 = vector.broadcast %137 : vector<1x16xf32> to vector<8x16xf32>
      %139 = arith.addf %136, %138 : vector<8x16xf32>
      scf.yield %139 : vector<8x16xf32>
    } else {
      %c0_58 = arith.constant 0 : index
      %c0_59 = arith.constant 0 : index
      %133 = vector.load %arg23[%c0_58, %c0_59] : memref<8x16xf32, #tpu.memory_space<vmem>>, vector<8x16xf32>
      scf.yield %133 : vector<8x16xf32>
    }
    %cst = arith.constant dense<0.000000e+00> : vector<8xf32>
    %4 = vector.multi_reduction <add>, %3, %cst [1] : vector<8x16xf32> to vector<8xf32>
    %5 = vector.shape_cast %4 : vector<8xf32> to vector<8x1xf32>
    %cst_1 = arith.constant 1.600000e+01 : f32
    %6 = vector.broadcast %cst_1 : f32 to vector<8x1xf32>
    %7 = arith.divf %5, %6 : vector<8x1xf32>
    %8 = vector.broadcast %7 : vector<8x1xf32> to vector<8x16xf32>
    %9 = arith.subf %3, %8 : vector<8x16xf32>
    %10 = arith.mulf %9, %9 : vector<8x16xf32>
    %cst_2 = arith.constant dense<0.000000e+00> : vector<8xf32>
    %11 = vector.multi_reduction <add>, %10, %cst_2 [1] : vector<8x16xf32> to vector<8xf32>
    %12 = vector.shape_cast %11 : vector<8xf32> to vector<8x1xf32>
    %cst_3 = arith.constant 1.600000e+01 : f32
    %13 = vector.broadcast %cst_3 : f32 to vector<8x1xf32>
    %14 = arith.divf %12, %13 : vector<8x1xf32>
    %15 = vector.broadcast %7 : vector<8x1xf32> to vector<8x16xf32>
    %16 = arith.subf %3, %15 : vector<8x16xf32>
    %cst_4 = arith.constant 9.99999974E-6 : f32
    %17 = vector.broadcast %cst_4 : f32 to vector<8x1xf32>
    %18 = arith.addf %14, %17 : vector<8x1xf32>
    %19 = math.rsqrt %18 : vector<8x1xf32>
    %20 = vector.broadcast %19 : vector<8x1xf32> to vector<8x16xf32>
    %21 = arith.mulf %16, %20 : vector<8x16xf32>
    %c0 = arith.constant 0 : index
    %c0_5 = arith.constant 0 : index
    %c0_6 = arith.constant 0 : index
    %22 = vector.load %arg6[%c0, %c0_5, %c0_6] : memref<1x1x16xf32, #tpu.memory_space<vmem>>, vector<1x1x16xf32>
    %23 = vector.shape_cast %22 : vector<1x1x16xf32> to vector<1x16xf32>
    %24 = vector.broadcast %23 : vector<1x16xf32> to vector<8x16xf32>
    %25 = arith.mulf %21, %24 : vector<8x16xf32>
    %c0_7 = arith.constant 0 : index
    %c0_8 = arith.constant 0 : index
    %c0_9 = arith.constant 0 : index
    %26 = vector.load %arg7[%c0_7, %c0_8, %c0_9] : memref<1x1x16xf32, #tpu.memory_space<vmem>>, vector<1x1x16xf32>
    %27 = vector.shape_cast %26 : vector<1x1x16xf32> to vector<1x16xf32>
    %28 = vector.broadcast %27 : vector<1x16xf32> to vector<8x16xf32>
    %29 = arith.addf %25, %28 : vector<8x16xf32>
    %30 = arith.truncf %29 : vector<8x16xf32> to vector<8x16xbf16>
    %c0_10 = arith.constant 0 : index
    %c0_11 = arith.constant 0 : index
    %c0_12 = arith.constant 0 : index
    %31 = vector.load %arg8[%c0_10, %c0_11, %c0_12] : memref<1x16x24xbf16, #tpu.memory_space<vmem>>, vector<1x16x24xbf16>
    %32 = vector.shape_cast %31 : vector<1x16x24xbf16> to vector<16x24xbf16>
    %cst_13 = arith.constant dense<0.000000e+00> : vector<8x24xf32>
    %33 = tpu.matmul %30, %32, %cst_13 {dimension_numbers = #tpu.dot_dimension_numbers<[1], [0], [0], [1], [0, 0, 1, 1], [], []>} : vector<8x16xbf16>, vector<16x24xbf16>, vector<8x24xf32> -> vector<8x24xf32>
    %34 = vector.extract_strided_slice %33 {offsets = [0, 0], sizes = [8, 4], strides = [1, 1]} : vector<8x24xf32> to vector<8x4xf32>
    %35 = vector.extract_strided_slice %33 {offsets = [0, 8], sizes = [8, 4], strides = [1, 1]} : vector<8x24xf32> to vector<8x4xf32>
    %36 = vector.extract_strided_slice %33 {offsets = [0, 16], sizes = [8, 4], strides = [1, 1]} : vector<8x24xf32> to vector<8x4xf32>
    %37 = arith.truncf %34 : vector<8x4xf32> to vector<8x4xbf16>
    %38 = tpu.transpose %35, [1, 0] : vector<8x4xf32> -> vector<4x8xf32>
    %39 = arith.truncf %38 : vector<4x8xf32> to vector<4x8xbf16>
    %cst_14 = arith.constant dense<0.000000e+00> : vector<8x8xf32>
    %40 = tpu.matmul %37, %39, %cst_14 {dimension_numbers = #tpu.dot_dimension_numbers<[1], [0], [0], [1], [0, 0, 1, 1], [], []>} : vector<8x4xbf16>, vector<4x8xbf16>, vector<8x8xf32> -> vector<8x8xf32>
    %cst_15 = arith.constant dense<0xFF800000> : vector<8xf32>
    %41 = vector.multi_reduction <maximumf>, %40, %cst_15 [1] : vector<8x8xf32> to vector<8xf32>
    %42 = vector.shape_cast %41 : vector<8xf32> to vector<8x1xf32>
    %43 = vector.broadcast %42 : vector<8x1xf32> to vector<8x8xf32>
    %44 = arith.subf %40, %43 : vector<8x8xf32>
    %45 = math.exp %44 : vector<8x8xf32>
    %cst_16 = arith.constant dense<0.000000e+00> : vector<8xf32>
    %46 = vector.multi_reduction <add>, %45, %cst_16 [1] : vector<8x8xf32> to vector<8xf32>
    %47 = vector.shape_cast %46 : vector<8xf32> to vector<8x1xf32>
    %48 = tpu.reciprocal %47 {approx = true} : vector<8x1xf32> -> vector<8x1xf32>
    %49 = vector.broadcast %48 : vector<8x1xf32> to vector<8x8xf32>
    %50 = arith.mulf %45, %49 : vector<8x8xf32>
    %51 = arith.truncf %50 : vector<8x8xf32> to vector<8x8xbf16>
    %52 = arith.truncf %36 : vector<8x4xf32> to vector<8x4xbf16>
    %cst_17 = arith.constant dense<0.000000e+00> : vector<8x4xf32>
    %53 = tpu.matmul %51, %52, %cst_17 {dimension_numbers = #tpu.dot_dimension_numbers<[1], [0], [0], [1], [0, 0, 1, 1], [], []>} : vector<8x8xbf16>, vector<8x4xbf16>, vector<8x4xf32> -> vector<8x4xf32>
    %54 = vector.extract_strided_slice %33 {offsets = [0, 4], sizes = [8, 4], strides = [1, 1]} : vector<8x24xf32> to vector<8x4xf32>
    %55 = vector.extract_strided_slice %33 {offsets = [0, 12], sizes = [8, 4], strides = [1, 1]} : vector<8x24xf32> to vector<8x4xf32>
    %56 = vector.extract_strided_slice %33 {offsets = [0, 20], sizes = [8, 4], strides = [1, 1]} : vector<8x24xf32> to vector<8x4xf32>
    %57 = arith.truncf %54 : vector<8x4xf32> to vector<8x4xbf16>
    %58 = tpu.transpose %55, [1, 0] : vector<8x4xf32> -> vector<4x8xf32>
    %59 = arith.truncf %58 : vector<4x8xf32> to vector<4x8xbf16>
    %cst_18 = arith.constant dense<0.000000e+00> : vector<8x8xf32>
    %60 = tpu.matmul %57, %59, %cst_18 {dimension_numbers = #tpu.dot_dimension_numbers<[1], [0], [0], [1], [0, 0, 1, 1], [], []>} : vector<8x4xbf16>, vector<4x8xbf16>, vector<8x8xf32> -> vector<8x8xf32>
    %cst_19 = arith.constant dense<0xFF800000> : vector<8xf32>
    %61 = vector.multi_reduction <maximumf>, %60, %cst_19 [1] : vector<8x8xf32> to vector<8xf32>
    %62 = vector.shape_cast %61 : vector<8xf32> to vector<8x1xf32>
    %63 = vector.broadcast %62 : vector<8x1xf32> to vector<8x8xf32>
    %64 = arith.subf %60, %63 : vector<8x8xf32>
    %65 = math.exp %64 : vector<8x8xf32>
    %cst_20 = arith.constant dense<0.000000e+00> : vector<8xf32>
    %66 = vector.multi_reduction <add>, %65, %cst_20 [1] : vector<8x8xf32> to vector<8xf32>
    %67 = vector.shape_cast %66 : vector<8xf32> to vector<8x1xf32>
    %68 = tpu.reciprocal %67 {approx = true} : vector<8x1xf32> -> vector<8x1xf32>
    %69 = vector.broadcast %68 : vector<8x1xf32> to vector<8x8xf32>
    %70 = arith.mulf %65, %69 : vector<8x8xf32>
    %71 = arith.truncf %70 : vector<8x8xf32> to vector<8x8xbf16>
    %72 = arith.truncf %56 : vector<8x4xf32> to vector<8x4xbf16>
    %cst_21 = arith.constant dense<0.000000e+00> : vector<8x4xf32>
    %73 = tpu.matmul %71, %72, %cst_21 {dimension_numbers = #tpu.dot_dimension_numbers<[1], [0], [0], [1], [0, 0, 1, 1], [], []>} : vector<8x8xbf16>, vector<8x4xbf16>, vector<8x4xf32> -> vector<8x4xf32>
    %74 = tpu.concatenate %53, %73 in 1 : vector<8x4xf32>, vector<8x4xf32> -> vector<8x8xf32>
    %75 = arith.truncf %74 : vector<8x8xf32> to vector<8x8xbf16>
    %c0_22 = arith.constant 0 : index
    %c0_23 = arith.constant 0 : index
    %c0_24 = arith.constant 0 : index
    %76 = vector.load %arg9[%c0_22, %c0_23, %c0_24] : memref<1x8x16xbf16, #tpu.memory_space<vmem>>, vector<1x8x16xbf16>
    %77 = vector.shape_cast %76 : vector<1x8x16xbf16> to vector<8x16xbf16>
    %cst_25 = arith.constant dense<0.000000e+00> : vector<8x16xf32>
    %78 = tpu.matmul %75, %77, %cst_25 {dimension_numbers = #tpu.dot_dimension_numbers<[1], [0], [0], [1], [0, 0, 1, 1], [], []>} : vector<8x8xbf16>, vector<8x16xbf16>, vector<8x16xf32> -> vector<8x16xf32>
    %79 = arith.addf %3, %78 : vector<8x16xf32>
    %c0_26 = arith.constant 0 : index
    %c0_27 = arith.constant 0 : index
    %c0_28 = arith.constant 0 : index
    %80 = vector.load %arg10[%c0_26, %c0_27, %c0_28] : memref<1x1x16xf32, #tpu.memory_space<vmem>>, vector<1x1x16xf32>
    %81 = vector.shape_cast %80 : vector<1x1x16xf32> to vector<1x16xf32>
    %82 = vector.broadcast %81 : vector<1x16xf32> to vector<8x16xf32>
    %83 = arith.addf %79, %82 : vector<8x16xf32>
    %cst_29 = arith.constant dense<0.000000e+00> : vector<8xf32>
    %84 = vector.multi_reduction <add>, %83, %cst_29 [1] : vector<8x16xf32> to vector<8xf32>
    %85 = vector.shape_cast %84 : vector<8xf32> to vector<8x1xf32>
    %cst_30 = arith.constant 1.600000e+01 : f32
    %86 = vector.broadcast %cst_30 : f32 to vector<8x1xf32>
    %87 = arith.divf %85, %86 : vector<8x1xf32>
    %88 = vector.broadcast %87 : vector<8x1xf32> to vector<8x16xf32>
    %89 = arith.subf %83, %88 : vector<8x16xf32>
    %90 = arith.mulf %89, %89 : vector<8x16xf32>
    %cst_31 = arith.constant dense<0.000000e+00> : vector<8xf32>
    %91 = vector.multi_reduction <add>, %90, %cst_31 [1] : vector<8x16xf32> to vector<8xf32>
    %92 = vector.shape_cast %91 : vector<8xf32> to vector<8x1xf32>
    %cst_32 = arith.constant 1.600000e+01 : f32
    %93 = vector.broadcast %cst_32 : f32 to vector<8x1xf32>
    %94 = arith.divf %92, %93 : vector<8x1xf32>
    %95 = vector.broadcast %87 : vector<8x1xf32> to vector<8x16xf32>
    %96 = arith.subf %83, %95 : vector<8x16xf32>
    %cst_33 = arith.constant 9.99999974E-6 : f32
    %97 = vector.broadcast %cst_33 : f32 to vector<8x1xf32>
    %98 = arith.addf %94, %97 : vector<8x1xf32>
    %99 = math.rsqrt %98 : vector<8x1xf32>
    %100 = vector.broadcast %99 : vector<8x1xf32> to vector<8x16xf32>
    %101 = arith.mulf %96, %100 : vector<8x16xf32>
    %c0_34 = arith.constant 0 : index
    %c0_35 = arith.constant 0 : index
    %c0_36 = arith.constant 0 : index
    %102 = vector.load %arg11[%c0_34, %c0_35, %c0_36] : memref<1x1x16xf32, #tpu.memory_space<vmem>>, vector<1x1x16xf32>
    %103 = vector.shape_cast %102 : vector<1x1x16xf32> to vector<1x16xf32>
    %104 = vector.broadcast %103 : vector<1x16xf32> to vector<8x16xf32>
    %105 = arith.mulf %101, %104 : vector<8x16xf32>
    %c0_37 = arith.constant 0 : index
    %c0_38 = arith.constant 0 : index
    %c0_39 = arith.constant 0 : index
    %106 = vector.load %arg12[%c0_37, %c0_38, %c0_39] : memref<1x1x16xf32, #tpu.memory_space<vmem>>, vector<1x1x16xf32>
    %107 = vector.shape_cast %106 : vector<1x1x16xf32> to vector<1x16xf32>
    %108 = vector.broadcast %107 : vector<1x16xf32> to vector<8x16xf32>
    %109 = arith.addf %105, %108 : vector<8x16xf32>
    %110 = arith.truncf %109 : vector<8x16xf32> to vector<8x16xbf16>
    %c0_40 = arith.constant 0 : index
    %c0_41 = arith.constant 0 : index
    %c0_42 = arith.constant 0 : index
    %111 = vector.load %arg13[%c0_40, %c0_41, %c0_42] : memref<1x16x64xbf16, #tpu.memory_space<vmem>>, vector<1x16x64xbf16>
    %112 = vector.shape_cast %111 : vector<1x16x64xbf16> to vector<16x64xbf16>
    %cst_43 = arith.constant dense<0.000000e+00> : vector<8x64xf32>
    %113 = tpu.matmul %110, %112, %cst_43 {dimension_numbers = #tpu.dot_dimension_numbers<[1], [0], [0], [1], [0, 0, 1, 1], [], []>} : vector<8x16xbf16>, vector<16x64xbf16>, vector<8x64xf32> -> vector<8x64xf32>
    %c0_44 = arith.constant 0 : index
    %c0_45 = arith.constant 0 : index
    %c0_46 = arith.constant 0 : index
    %114 = vector.load %arg14[%c0_44, %c0_45, %c0_46] : memref<1x1x64xf32, #tpu.memory_space<vmem>>, vector<1x1x64xf32>
    %115 = vector.shape_cast %114 : vector<1x1x64xf32> to vector<1x64xf32>
    %116 = vector.broadcast %115 : vector<1x64xf32> to vector<8x64xf32>
    %117 = arith.addf %113, %116 : vector<8x64xf32>
    %cst_47 = arith.constant 0.000000e+00 : f32
    %118 = vector.broadcast %cst_47 : f32 to vector<8x64xf32>
    %119 = arith.maximumf %117, %118 : vector<8x64xf32>
    %120 = arith.truncf %119 : vector<8x64xf32> to vector<8x64xbf16>
    %c0_48 = arith.constant 0 : index
    %c0_49 = arith.constant 0 : index
    %c0_50 = arith.constant 0 : index
    %121 = vector.load %arg15[%c0_48, %c0_49, %c0_50] : memref<1x64x16xbf16, #tpu.memory_space<vmem>>, vector<1x64x16xbf16>
    %122 = vector.shape_cast %121 : vector<1x64x16xbf16> to vector<64x16xbf16>
    %cst_51 = arith.constant dense<0.000000e+00> : vector<8x16xf32>
    %123 = tpu.matmul %120, %122, %cst_51 {dimension_numbers = #tpu.dot_dimension_numbers<[1], [0], [0], [1], [0, 0, 1, 1], [], []>} : vector<8x64xbf16>, vector<64x16xbf16>, vector<8x16xf32> -> vector<8x16xf32>
    %c0_52 = arith.constant 0 : index
    %c0_53 = arith.constant 0 : index
    %c0_54 = arith.constant 0 : index
    %124 = vector.load %arg16[%c0_52, %c0_53, %c0_54] : memref<1x1x16xf32, #tpu.memory_space<vmem>>, vector<1x1x16xf32>
    %125 = vector.shape_cast %124 : vector<1x1x16xf32> to vector<1x16xf32>
    %126 = vector.broadcast %125 : vector<1x16xf32> to vector<8x16xf32>
    %127 = arith.addf %123, %126 : vector<8x16xf32>
    %128 = arith.addf %83, %127 : vector<8x16xf32>
    %c0_55 = arith.constant 0 : index
    %c0_56 = arith.constant 0 : index
    %129 = vector.load %arg23[%c0_55, %c0_56] : memref<8x16xf32, #tpu.memory_space<vmem>>, vector<8x16xf32>
    tpu.vector_store %arg23[%c0_55, %c0_56], %128 {strides = array<i32>} : memref<8x16xf32, #tpu.memory_space<vmem>>, vector<8x16xf32>,
    %c1_i32 = arith.constant 1 : i32
    %130 = arith.cmpi eq, %arg1, %c1_i32 : i32
    %131 = arith.extui %130 : i1 to i32
    %c0_i32_57 = arith.constant 0 : i32
    %132 = arith.cmpi ne, %131, %c0_i32_57 : i32
    scf.if %132 {
      %c0_58 = arith.constant 0 : index
      %c0_59 = arith.constant 0 : index
      %133 = vector.load %arg3[%c0_58, %c0_59] : memref<8x1xf32, #tpu.memory_space<vmem>>, vector<8x1xf32>
      %134 = vector.broadcast %133 : vector<8x1xf32> to vector<8x16xf32>
      %135 = arith.mulf %128, %134 : vector<8x16xf32>
      %136 = arith.truncf %135 : vector<8x16xf32> to vector<8x16xbf16>
      %c0_60 = arith.constant 0 : index
      %c0_61 = arith.constant 0 : index
      %137 = vector.load %arg17[%c0_60, %c0_61] : memref<16x8xbf16, #tpu.memory_space<vmem>>, vector<16x8xbf16>
      %cst_62 = arith.constant dense<0.000000e+00> : vector<8x8xf32>
      %138 = tpu.matmul %136, %137, %cst_62 {dimension_numbers = #tpu.dot_dimension_numbers<[1], [0], [0], [1], [0, 0, 1, 1], [], []>} : vector<8x16xbf16>, vector<16x8xbf16>, vector<8x8xf32> -> vector<8x8xf32>
      %c0_63 = arith.constant 0 : index
      %c0_64 = arith.constant 0 : index
      %139 = vector.load %arg18[%c0_63, %c0_64] : memref<1x8xf32, #tpu.memory_space<vmem>>, vector<1x8xf32>
      %140 = vector.broadcast %139 : vector<1x8xf32> to vector<8x8xf32>
      %141 = arith.addf %138, %140 : vector<8x8xf32>
      %c0_65 = arith.constant 0 : index
      %c0_66 = arith.constant 0 : index
      %142 = vector.load %arg21[%c0_65, %c0_66] : memref<8x8xf32, #tpu.memory_space<vmem>>, vector<8x8xf32>
      tpu.vector_store %arg21[%c0_65, %c0_66], %141 {strides = array<i32>} : memref<8x8xf32, #tpu.memory_space<vmem>>, vector<8x8xf32>,
      %c0_67 = arith.constant 0 : index
      %c0_68 = arith.constant 0 : index
      %143 = vector.load %arg19[%c0_67, %c0_68] : memref<16x1xbf16, #tpu.memory_space<vmem>>, vector<16x1xbf16>
      %cst_69 = arith.constant dense<0.000000e+00> : vector<8x1xf32>
      %144 = tpu.matmul %136, %143, %cst_69 {dimension_numbers = #tpu.dot_dimension_numbers<[1], [0], [0], [1], [0, 0, 1, 1], [], []>} : vector<8x16xbf16>, vector<16x1xbf16>, vector<8x1xf32> -> vector<8x1xf32>
      %c0_70 = arith.constant 0 : index
      %c0_71 = arith.constant 0 : index
      %145 = vector.load %arg20[%c0_70, %c0_71] : memref<1x1xf32, #tpu.memory_space<vmem>>, vector<1x1xf32>
      %146 = vector.broadcast %145 : vector<1x1xf32> to vector<8x1xf32>
      %147 = arith.addf %144, %146 : vector<8x1xf32>
      %c0_72 = arith.constant 0 : index
      %c0_73 = arith.constant 0 : index
      %148 = vector.load %arg22[%c0_72, %c0_73] : memref<8x1xf32, #tpu.memory_space<vmem>>, vector<8x1xf32>
      tpu.vector_store %arg22[%c0_72, %c0_73], %147 {strides = array<i32>} : memref<8x1xf32, #tpu.memory_space<vmem>>, vector<8x1xf32>,
    } else {
    }
    return
  }
  func.func @transform_0(%arg0: i32, %arg1: i32) -> (i32, i32) {
    %c0_i32 = arith.constant 0 : i32
    %c0_i32_0 = arith.constant 0 : i32
    return %arg0, %c0_i32 : i32, i32
  }
  func.func @transform_1(%arg0: i32, %arg1: i32) -> (i32, i32) {
    %c0_i32 = arith.constant 0 : i32
    %c0_i32_0 = arith.constant 0 : i32
    return %arg0, %c0_i32 : i32, i32
  }
  func.func @transform_2(%arg0: i32, %arg1: i32) -> (i32, i32) {
    %c0_i32 = arith.constant 0 : i32
    %c0_i32_0 = arith.constant 0 : i32
    %c0_i32_1 = arith.constant 0 : i32
    return %c0_i32, %c0_i32_0 : i32, i32
  }
  func.func @transform_3(%arg0: i32, %arg1: i32) -> (i32, i32) {
    %c0_i32 = arith.constant 0 : i32
    %c0_i32_0 = arith.constant 0 : i32
    %c0_i32_1 = arith.constant 0 : i32
    return %c0_i32, %c0_i32_0 : i32, i32
  }
  func.func @transform_4(%arg0: i32, %arg1: i32) -> (i32, i32, i32) {
    %c0_i32 = arith.constant 0 : i32
    %c0_i32_0 = arith.constant 0 : i32
    %c0_i32_1 = arith.constant 0 : i32
    return %arg1, %c0_i32, %c0_i32_0 : i32, i32, i32
  }
  func.func @transform_5(%arg0: i32, %arg1: i32) -> (i32, i32, i32) {
    %c0_i32 = arith.constant 0 : i32
    %c0_i32_0 = arith.constant 0 : i32
    %c0_i32_1 = arith.constant 0 : i32
    return %arg1, %c0_i32, %c0_i32_0 : i32, i32, i32
  }
  func.func @transform_6(%arg0: i32, %arg1: i32) -> (i32, i32, i32) {
    %c0_i32 = arith.constant 0 : i32
    %c0_i32_0 = arith.constant 0 : i32
    %c0_i32_1 = arith.constant 0 : i32
    return %arg1, %c0_i32, %c0_i32_0 : i32, i32, i32
  }
  func.func @transform_7(%arg0: i32, %arg1: i32) -> (i32, i32, i32) {
    %c0_i32 = arith.constant 0 : i32
    %c0_i32_0 = arith.constant 0 : i32
    %c0_i32_1 = arith.constant 0 : i32
    return %arg1, %c0_i32, %c0_i32_0 : i32, i32, i32
  }
  func.func @transform_8(%arg0: i32, %arg1: i32) -> (i32, i32, i32) {
    %c0_i32 = arith.constant 0 : i32
    %c0_i32_0 = arith.constant 0 : i32
    %c0_i32_1 = arith.constant 0 : i32
    return %arg1, %c0_i32, %c0_i32_0 : i32, i32, i32
  }
  func.func @transform_9(%arg0: i32, %arg1: i32) -> (i32, i32, i32) {
    %c0_i32 = arith.constant 0 : i32
    %c0_i32_0 = arith.constant 0 : i32
    %c0_i32_1 = arith.constant 0 : i32
    return %arg1, %c0_i32, %c0_i32_0 : i32, i32, i32
  }
  func.func @transform_10(%arg0: i32, %arg1: i32) -> (i32, i32, i32) {
    %c0_i32 = arith.constant 0 : i32
    %c0_i32_0 = arith.constant 0 : i32
    %c0_i32_1 = arith.constant 0 : i32
    return %arg1, %c0_i32, %c0_i32_0 : i32, i32, i32
  }
  func.func @transform_11(%arg0: i32, %arg1: i32) -> (i32, i32, i32) {
    %c0_i32 = arith.constant 0 : i32
    %c0_i32_0 = arith.constant 0 : i32
    %c0_i32_1 = arith.constant 0 : i32
    return %arg1, %c0_i32, %c0_i32_0 : i32, i32, i32
  }
  func.func @transform_12(%arg0: i32, %arg1: i32) -> (i32, i32, i32) {
    %c0_i32 = arith.constant 0 : i32
    %c0_i32_0 = arith.constant 0 : i32
    %c0_i32_1 = arith.constant 0 : i32
    return %arg1, %c0_i32, %c0_i32_0 : i32, i32, i32
  }
  func.func @transform_13(%arg0: i32, %arg1: i32) -> (i32, i32, i32) {
    %c0_i32 = arith.constant 0 : i32
    %c0_i32_0 = arith.constant 0 : i32
    %c0_i32_1 = arith.constant 0 : i32
    return %arg1, %c0_i32, %c0_i32_0 : i32, i32, i32
  }
  func.func @transform_14(%arg0: i32, %arg1: i32) -> (i32, i32, i32) {
    %c0_i32 = arith.constant 0 : i32
    %c0_i32_0 = arith.constant 0 : i32
    %c0_i32_1 = arith.constant 0 : i32
    return %arg1, %c0_i32, %c0_i32_0 : i32, i32, i32
  }
  func.func @transform_15(%arg0: i32, %arg1: i32) -> (i32, i32) {
    %c0_i32 = arith.constant 0 : i32
    %c0_i32_0 = arith.constant 0 : i32
    %c0_i32_1 = arith.constant 0 : i32
    return %c0_i32, %c0_i32_0 : i32, i32
  }
  func.func @transform_16(%arg0: i32, %arg1: i32) -> (i32, i32) {
    %c0_i32 = arith.constant 0 : i32
    %c0_i32_0 = arith.constant 0 : i32
    %c0_i32_1 = arith.constant 0 : i32
    return %c0_i32, %c0_i32_0 : i32, i32
  }
  func.func @transform_17(%arg0: i32, %arg1: i32) -> (i32, i32) {
    %c0_i32 = arith.constant 0 : i32
    %c0_i32_0 = arith.constant 0 : i32
    %c0_i32_1 = arith.constant 0 : i32
    return %c0_i32, %c0_i32_0 : i32, i32
  }
  func.func @transform_18(%arg0: i32, %arg1: i32) -> (i32, i32) {
    %c0_i32 = arith.constant 0 : i32
    %c0_i32_0 = arith.constant 0 : i32
    %c0_i32_1 = arith.constant 0 : i32
    return %c0_i32, %c0_i32_0 : i32, i32
  }
  func.func @transform_19(%arg0: i32, %arg1: i32) -> (i32, i32) {
    %c0_i32 = arith.constant 0 : i32
    %c0_i32_0 = arith.constant 0 : i32
    return %arg0, %c0_i32 : i32, i32
  }
  func.func @transform_20(%arg0: i32, %arg1: i32) -> (i32, i32) {
    %c0_i32 = arith.constant 0 : i32
    %c0_i32_0 = arith.constant 0 : i32
    return %arg0, %c0_i32 : i32, i32
  }
}

module attributes {stable_mosaic.version = 11 : i64} {
  func.func @kernel(%arg0: i32, %arg1: i32, %arg2: memref<8x1xf32, #tpu.memory_space<vmem>>, %arg3: memref<8x1xf32, #tpu.memory_space<vmem>>, %arg4: memref<1x16xbf16, #tpu.memory_space<vmem>>, %arg5: memref<1x16xf32, #tpu.memory_space<vmem>>, %arg6: memref<1x1x16xf32, #tpu.memory_space<vmem>>, %arg7: memref<1x1x16xf32, #tpu.memory_space<vmem>>, %arg8: memref<1x16x24xbf16, #tpu.memory_space<vmem>>, %arg9: memref<1x8x16xbf16, #tpu.memory_space<vmem>>, %arg10: memref<1x1x16xf32, #tpu.memory_space<vmem>>, %arg11: memref<1x1x16xf32, #tpu.memory_space<vmem>>, %arg12: memref<1x1x16xf32, #tpu.memory_space<vmem>>, %arg13: memref<1x16x64xbf16, #tpu.memory_space<vmem>>, %arg14: memref<1x1x64xf32, #tpu.memory_space<vmem>>, %arg15: memref<1x64x16xbf16, #tpu.memory_space<vmem>>, %arg16: memref<1x1x16xf32, #tpu.memory_space<vmem>>, %arg17: memref<16x1xbf16, #tpu.memory_space<vmem>>, %arg18: memref<1x1xf32, #tpu.memory_space<vmem>>, %arg19: memref<8x1xf32, #tpu.memory_space<vmem>>, %arg20: memref<8x16xf32, #tpu.memory_space<vmem>>) attributes {dimension_semantics = [#tpu.dimension_semantics<parallel>, #tpu.dimension_semantics<arbitrary>], iteration_bounds = array<i64: 2, 2>, scalar_prefetch = 0 : i64, scratch_operands = 1 : i64, tpu.core_type = #tpu.core_type<tc>, window_params = [{transform_indices = @transform_0, window_bounds = array<i64: 8, 1>}, {transform_indices = @transform_1, window_bounds = array<i64: 8, 1>}, {pipeline_mode = #tpu.pipeline_mode<synchronous>, transform_indices = @transform_2, window_bounds = array<i64: 1, 16>}, {pipeline_mode = #tpu.pipeline_mode<synchronous>, transform_indices = @transform_3, window_bounds = array<i64: 1, 16>}, {transform_indices = @transform_4, window_bounds = array<i64: 1, 1, 16>}, {transform_indices = @transform_5, window_bounds = array<i64: 1, 1, 16>}, {transform_indices = @transform_6, window_bounds = array<i64: 1, 16, 24>}, {transform_indices = @transform_7, window_bounds = array<i64: 1, 8, 16>}, {transform_indices = @transform_8, window_bounds = array<i64: 1, 1, 16>}, {transform_indices = @transform_9, window_bounds = array<i64: 1, 1, 16>}, {transform_indices = @transform_10, window_bounds = array<i64: 1, 1, 16>}, {transform_indices = @transform_11, window_bounds = array<i64: 1, 16, 64>}, {transform_indices = @transform_12, window_bounds = array<i64: 1, 1, 64>}, {transform_indices = @transform_13, window_bounds = array<i64: 1, 64, 16>}, {transform_indices = @transform_14, window_bounds = array<i64: 1, 1, 16>}, {pipeline_mode = #tpu.pipeline_mode<synchronous>, transform_indices = @transform_15, window_bounds = array<i64: 16, 1>}, {pipeline_mode = #tpu.pipeline_mode<synchronous>, transform_indices = @transform_16, window_bounds = array<i64: 1, 1>}, {transform_indices = @transform_17, window_bounds = array<i64: 8, 1>}]} {
    %c0_i32 = arith.constant 0 : i32
    %0 = arith.cmpi eq, %arg1, %c0_i32 : i32
    %1 = arith.extui %0 : i1 to i32
    %c0_i32_0 = arith.constant 0 : i32
    %2 = arith.cmpi ne, %1, %c0_i32_0 : i32
    %3 = scf.if %2 -> (vector<8x16xf32>) {
      %c0_58 = arith.constant 0 : index
      %c0_59 = arith.constant 0 : index
      %133 = vector.load %arg2[%c0_58, %c0_59] : memref<8x1xf32, #tpu.memory_space<vmem>>, vector<8x1xf32>
      %c0_60 = arith.constant 0 : index
      %c0_61 = arith.constant 0 : index
      %134 = vector.load %arg3[%c0_60, %c0_61] : memref<8x1xf32, #tpu.memory_space<vmem>>, vector<8x1xf32>
      %135 = arith.negf %133 : vector<8x1xf32>
      %136 = math.exp %135 : vector<8x1xf32>
      %cst_62 = arith.constant 1.000000e+00 : f32
      %137 = vector.broadcast %cst_62 : f32 to vector<8x1xf32>
      %138 = arith.addf %137, %136 : vector<8x1xf32>
      %139 = arith.divf %137, %138 : vector<8x1xf32>
      %140 = arith.mulf %139, %134 : vector<8x1xf32>
      %c0_63 = arith.constant 0 : index
      %c0_64 = arith.constant 0 : index
      %141 = vector.load %arg4[%c0_63, %c0_64] : memref<1x16xbf16, #tpu.memory_space<vmem>>, vector<1x16xbf16>
      %142 = arith.extf %141 : vector<1x16xbf16> to vector<1x16xf32>
      %143 = vector.broadcast %140 : vector<8x1xf32> to vector<8x16xf32>
      %144 = vector.broadcast %142 : vector<1x16xf32> to vector<8x16xf32>
      %145 = arith.mulf %143, %144 : vector<8x16xf32>
      %c0_65 = arith.constant 0 : index
      %c0_66 = arith.constant 0 : index
      %146 = vector.load %arg5[%c0_65, %c0_66] : memref<1x16xf32, #tpu.memory_space<vmem>>, vector<1x16xf32>
      %147 = vector.broadcast %146 : vector<1x16xf32> to vector<8x16xf32>
      %148 = arith.addf %145, %147 : vector<8x16xf32>
      scf.yield %148 : vector<8x16xf32>
    } else {
      %c0_58 = arith.constant 0 : index
      %c0_59 = arith.constant 0 : index
      %133 = vector.load %arg20[%c0_58, %c0_59] : memref<8x16xf32, #tpu.memory_space<vmem>>, vector<8x16xf32>
      scf.yield %133 : vector<8x16xf32>
    }
    %cst = arith.constant dense<0.000000e+00> : vector<8xf32>
    %4 = vector.multi_reduction <add>, %3, %cst [1] : vector<8x16xf32> to vector<8xf32>
    %5 = vector.shape_cast %4 : vector<8xf32> to vector<8x1xf32>
    %cst_1 = arith.constant 1.600000e+01 : f32
    %6 = vector.broadcast %cst_1 : f32 to vector<8x1xf32>
    %7 = arith.divf %5, %6 : vector<8x1xf32>
    %8 = vector.broadcast %7 : vector<8x1xf32> to vector<8x16xf32>
    %9 = arith.subf %3, %8 : vector<8x16xf32>
    %10 = arith.mulf %9, %9 : vector<8x16xf32>
    %cst_2 = arith.constant dense<0.000000e+00> : vector<8xf32>
    %11 = vector.multi_reduction <add>, %10, %cst_2 [1] : vector<8x16xf32> to vector<8xf32>
    %12 = vector.shape_cast %11 : vector<8xf32> to vector<8x1xf32>
    %cst_3 = arith.constant 1.600000e+01 : f32
    %13 = vector.broadcast %cst_3 : f32 to vector<8x1xf32>
    %14 = arith.divf %12, %13 : vector<8x1xf32>
    %15 = vector.broadcast %7 : vector<8x1xf32> to vector<8x16xf32>
    %16 = arith.subf %3, %15 : vector<8x16xf32>
    %cst_4 = arith.constant 9.99999974E-6 : f32
    %17 = vector.broadcast %cst_4 : f32 to vector<8x1xf32>
    %18 = arith.addf %14, %17 : vector<8x1xf32>
    %19 = math.rsqrt %18 : vector<8x1xf32>
    %20 = vector.broadcast %19 : vector<8x1xf32> to vector<8x16xf32>
    %21 = arith.mulf %16, %20 : vector<8x16xf32>
    %c0 = arith.constant 0 : index
    %c0_5 = arith.constant 0 : index
    %c0_6 = arith.constant 0 : index
    %22 = vector.load %arg6[%c0, %c0_5, %c0_6] : memref<1x1x16xf32, #tpu.memory_space<vmem>>, vector<1x1x16xf32>
    %23 = vector.shape_cast %22 : vector<1x1x16xf32> to vector<1x16xf32>
    %24 = vector.broadcast %23 : vector<1x16xf32> to vector<8x16xf32>
    %25 = arith.mulf %21, %24 : vector<8x16xf32>
    %c0_7 = arith.constant 0 : index
    %c0_8 = arith.constant 0 : index
    %c0_9 = arith.constant 0 : index
    %26 = vector.load %arg7[%c0_7, %c0_8, %c0_9] : memref<1x1x16xf32, #tpu.memory_space<vmem>>, vector<1x1x16xf32>
    %27 = vector.shape_cast %26 : vector<1x1x16xf32> to vector<1x16xf32>
    %28 = vector.broadcast %27 : vector<1x16xf32> to vector<8x16xf32>
    %29 = arith.addf %25, %28 : vector<8x16xf32>
    %30 = arith.truncf %29 : vector<8x16xf32> to vector<8x16xbf16>
    %c0_10 = arith.constant 0 : index
    %c0_11 = arith.constant 0 : index
    %c0_12 = arith.constant 0 : index
    %31 = vector.load %arg8[%c0_10, %c0_11, %c0_12] : memref<1x16x24xbf16, #tpu.memory_space<vmem>>, vector<1x16x24xbf16>
    %32 = vector.shape_cast %31 : vector<1x16x24xbf16> to vector<16x24xbf16>
    %cst_13 = arith.constant dense<0.000000e+00> : vector<8x24xf32>
    %33 = tpu.matmul %30, %32, %cst_13 {dimension_numbers = #tpu.dot_dimension_numbers<[1], [0], [0], [1], [0, 0, 1, 1], [], []>} : vector<8x16xbf16>, vector<16x24xbf16>, vector<8x24xf32> -> vector<8x24xf32>
    %34 = vector.extract_strided_slice %33 {offsets = [0, 0], sizes = [8, 4], strides = [1, 1]} : vector<8x24xf32> to vector<8x4xf32>
    %35 = vector.extract_strided_slice %33 {offsets = [0, 8], sizes = [8, 4], strides = [1, 1]} : vector<8x24xf32> to vector<8x4xf32>
    %36 = vector.extract_strided_slice %33 {offsets = [0, 16], sizes = [8, 4], strides = [1, 1]} : vector<8x24xf32> to vector<8x4xf32>
    %37 = arith.truncf %34 : vector<8x4xf32> to vector<8x4xbf16>
    %38 = tpu.transpose %35, [1, 0] : vector<8x4xf32> -> vector<4x8xf32>
    %39 = arith.truncf %38 : vector<4x8xf32> to vector<4x8xbf16>
    %cst_14 = arith.constant dense<0.000000e+00> : vector<8x8xf32>
    %40 = tpu.matmul %37, %39, %cst_14 {dimension_numbers = #tpu.dot_dimension_numbers<[1], [0], [0], [1], [0, 0, 1, 1], [], []>} : vector<8x4xbf16>, vector<4x8xbf16>, vector<8x8xf32> -> vector<8x8xf32>
    %cst_15 = arith.constant dense<0xFF800000> : vector<8xf32>
    %41 = vector.multi_reduction <maximumf>, %40, %cst_15 [1] : vector<8x8xf32> to vector<8xf32>
    %42 = vector.shape_cast %41 : vector<8xf32> to vector<8x1xf32>
    %43 = vector.broadcast %42 : vector<8x1xf32> to vector<8x8xf32>
    %44 = arith.subf %40, %43 : vector<8x8xf32>
    %45 = math.exp %44 : vector<8x8xf32>
    %cst_16 = arith.constant dense<0.000000e+00> : vector<8xf32>
    %46 = vector.multi_reduction <add>, %45, %cst_16 [1] : vector<8x8xf32> to vector<8xf32>
    %47 = vector.shape_cast %46 : vector<8xf32> to vector<8x1xf32>
    %48 = tpu.reciprocal %47 {approx = true} : vector<8x1xf32> -> vector<8x1xf32>
    %49 = vector.broadcast %48 : vector<8x1xf32> to vector<8x8xf32>
    %50 = arith.mulf %45, %49 : vector<8x8xf32>
    %51 = arith.truncf %50 : vector<8x8xf32> to vector<8x8xbf16>
    %52 = arith.truncf %36 : vector<8x4xf32> to vector<8x4xbf16>
    %cst_17 = arith.constant dense<0.000000e+00> : vector<8x4xf32>
    %53 = tpu.matmul %51, %52, %cst_17 {dimension_numbers = #tpu.dot_dimension_numbers<[1], [0], [0], [1], [0, 0, 1, 1], [], []>} : vector<8x8xbf16>, vector<8x4xbf16>, vector<8x4xf32> -> vector<8x4xf32>
    %54 = vector.extract_strided_slice %33 {offsets = [0, 4], sizes = [8, 4], strides = [1, 1]} : vector<8x24xf32> to vector<8x4xf32>
    %55 = vector.extract_strided_slice %33 {offsets = [0, 12], sizes = [8, 4], strides = [1, 1]} : vector<8x24xf32> to vector<8x4xf32>
    %56 = vector.extract_strided_slice %33 {offsets = [0, 20], sizes = [8, 4], strides = [1, 1]} : vector<8x24xf32> to vector<8x4xf32>
    %57 = arith.truncf %54 : vector<8x4xf32> to vector<8x4xbf16>
    %58 = tpu.transpose %55, [1, 0] : vector<8x4xf32> -> vector<4x8xf32>
    %59 = arith.truncf %58 : vector<4x8xf32> to vector<4x8xbf16>
    %cst_18 = arith.constant dense<0.000000e+00> : vector<8x8xf32>
    %60 = tpu.matmul %57, %59, %cst_18 {dimension_numbers = #tpu.dot_dimension_numbers<[1], [0], [0], [1], [0, 0, 1, 1], [], []>} : vector<8x4xbf16>, vector<4x8xbf16>, vector<8x8xf32> -> vector<8x8xf32>
    %cst_19 = arith.constant dense<0xFF800000> : vector<8xf32>
    %61 = vector.multi_reduction <maximumf>, %60, %cst_19 [1] : vector<8x8xf32> to vector<8xf32>
    %62 = vector.shape_cast %61 : vector<8xf32> to vector<8x1xf32>
    %63 = vector.broadcast %62 : vector<8x1xf32> to vector<8x8xf32>
    %64 = arith.subf %60, %63 : vector<8x8xf32>
    %65 = math.exp %64 : vector<8x8xf32>
    %cst_20 = arith.constant dense<0.000000e+00> : vector<8xf32>
    %66 = vector.multi_reduction <add>, %65, %cst_20 [1] : vector<8x8xf32> to vector<8xf32>
    %67 = vector.shape_cast %66 : vector<8xf32> to vector<8x1xf32>
    %68 = tpu.reciprocal %67 {approx = true} : vector<8x1xf32> -> vector<8x1xf32>
    %69 = vector.broadcast %68 : vector<8x1xf32> to vector<8x8xf32>
    %70 = arith.mulf %65, %69 : vector<8x8xf32>
    %71 = arith.truncf %70 : vector<8x8xf32> to vector<8x8xbf16>
    %72 = arith.truncf %56 : vector<8x4xf32> to vector<8x4xbf16>
    %cst_21 = arith.constant dense<0.000000e+00> : vector<8x4xf32>
    %73 = tpu.matmul %71, %72, %cst_21 {dimension_numbers = #tpu.dot_dimension_numbers<[1], [0], [0], [1], [0, 0, 1, 1], [], []>} : vector<8x8xbf16>, vector<8x4xbf16>, vector<8x4xf32> -> vector<8x4xf32>
    %74 = tpu.concatenate %53, %73 in 1 : vector<8x4xf32>, vector<8x4xf32> -> vector<8x8xf32>
    %75 = arith.truncf %74 : vector<8x8xf32> to vector<8x8xbf16>
    %c0_22 = arith.constant 0 : index
    %c0_23 = arith.constant 0 : index
    %c0_24 = arith.constant 0 : index
    %76 = vector.load %arg9[%c0_22, %c0_23, %c0_24] : memref<1x8x16xbf16, #tpu.memory_space<vmem>>, vector<1x8x16xbf16>
    %77 = vector.shape_cast %76 : vector<1x8x16xbf16> to vector<8x16xbf16>
    %cst_25 = arith.constant dense<0.000000e+00> : vector<8x16xf32>
    %78 = tpu.matmul %75, %77, %cst_25 {dimension_numbers = #tpu.dot_dimension_numbers<[1], [0], [0], [1], [0, 0, 1, 1], [], []>} : vector<8x8xbf16>, vector<8x16xbf16>, vector<8x16xf32> -> vector<8x16xf32>
    %79 = arith.addf %3, %78 : vector<8x16xf32>
    %c0_26 = arith.constant 0 : index
    %c0_27 = arith.constant 0 : index
    %c0_28 = arith.constant 0 : index
    %80 = vector.load %arg10[%c0_26, %c0_27, %c0_28] : memref<1x1x16xf32, #tpu.memory_space<vmem>>, vector<1x1x16xf32>
    %81 = vector.shape_cast %80 : vector<1x1x16xf32> to vector<1x16xf32>
    %82 = vector.broadcast %81 : vector<1x16xf32> to vector<8x16xf32>
    %83 = arith.addf %79, %82 : vector<8x16xf32>
    %cst_29 = arith.constant dense<0.000000e+00> : vector<8xf32>
    %84 = vector.multi_reduction <add>, %83, %cst_29 [1] : vector<8x16xf32> to vector<8xf32>
    %85 = vector.shape_cast %84 : vector<8xf32> to vector<8x1xf32>
    %cst_30 = arith.constant 1.600000e+01 : f32
    %86 = vector.broadcast %cst_30 : f32 to vector<8x1xf32>
    %87 = arith.divf %85, %86 : vector<8x1xf32>
    %88 = vector.broadcast %87 : vector<8x1xf32> to vector<8x16xf32>
    %89 = arith.subf %83, %88 : vector<8x16xf32>
    %90 = arith.mulf %89, %89 : vector<8x16xf32>
    %cst_31 = arith.constant dense<0.000000e+00> : vector<8xf32>
    %91 = vector.multi_reduction <add>, %90, %cst_31 [1] : vector<8x16xf32> to vector<8xf32>
    %92 = vector.shape_cast %91 : vector<8xf32> to vector<8x1xf32>
    %cst_32 = arith.constant 1.600000e+01 : f32
    %93 = vector.broadcast %cst_32 : f32 to vector<8x1xf32>
    %94 = arith.divf %92, %93 : vector<8x1xf32>
    %95 = vector.broadcast %87 : vector<8x1xf32> to vector<8x16xf32>
    %96 = arith.subf %83, %95 : vector<8x16xf32>
    %cst_33 = arith.constant 9.99999974E-6 : f32
    %97 = vector.broadcast %cst_33 : f32 to vector<8x1xf32>
    %98 = arith.addf %94, %97 : vector<8x1xf32>
    %99 = math.rsqrt %98 : vector<8x1xf32>
    %100 = vector.broadcast %99 : vector<8x1xf32> to vector<8x16xf32>
    %101 = arith.mulf %96, %100 : vector<8x16xf32>
    %c0_34 = arith.constant 0 : index
    %c0_35 = arith.constant 0 : index
    %c0_36 = arith.constant 0 : index
    %102 = vector.load %arg11[%c0_34, %c0_35, %c0_36] : memref<1x1x16xf32, #tpu.memory_space<vmem>>, vector<1x1x16xf32>
    %103 = vector.shape_cast %102 : vector<1x1x16xf32> to vector<1x16xf32>
    %104 = vector.broadcast %103 : vector<1x16xf32> to vector<8x16xf32>
    %105 = arith.mulf %101, %104 : vector<8x16xf32>
    %c0_37 = arith.constant 0 : index
    %c0_38 = arith.constant 0 : index
    %c0_39 = arith.constant 0 : index
    %106 = vector.load %arg12[%c0_37, %c0_38, %c0_39] : memref<1x1x16xf32, #tpu.memory_space<vmem>>, vector<1x1x16xf32>
    %107 = vector.shape_cast %106 : vector<1x1x16xf32> to vector<1x16xf32>
    %108 = vector.broadcast %107 : vector<1x16xf32> to vector<8x16xf32>
    %109 = arith.addf %105, %108 : vector<8x16xf32>
    %110 = arith.truncf %109 : vector<8x16xf32> to vector<8x16xbf16>
    %c0_40 = arith.constant 0 : index
    %c0_41 = arith.constant 0 : index
    %c0_42 = arith.constant 0 : index
    %111 = vector.load %arg13[%c0_40, %c0_41, %c0_42] : memref<1x16x64xbf16, #tpu.memory_space<vmem>>, vector<1x16x64xbf16>
    %112 = vector.shape_cast %111 : vector<1x16x64xbf16> to vector<16x64xbf16>
    %cst_43 = arith.constant dense<0.000000e+00> : vector<8x64xf32>
    %113 = tpu.matmul %110, %112, %cst_43 {dimension_numbers = #tpu.dot_dimension_numbers<[1], [0], [0], [1], [0, 0, 1, 1], [], []>} : vector<8x16xbf16>, vector<16x64xbf16>, vector<8x64xf32> -> vector<8x64xf32>
    %c0_44 = arith.constant 0 : index
    %c0_45 = arith.constant 0 : index
    %c0_46 = arith.constant 0 : index
    %114 = vector.load %arg14[%c0_44, %c0_45, %c0_46] : memref<1x1x64xf32, #tpu.memory_space<vmem>>, vector<1x1x64xf32>
    %115 = vector.shape_cast %114 : vector<1x1x64xf32> to vector<1x64xf32>
    %116 = vector.broadcast %115 : vector<1x64xf32> to vector<8x64xf32>
    %117 = arith.addf %113, %116 : vector<8x64xf32>
    %cst_47 = arith.constant 0.000000e+00 : f32
    %118 = vector.broadcast %cst_47 : f32 to vector<8x64xf32>
    %119 = arith.maximumf %117, %118 : vector<8x64xf32>
    %120 = arith.truncf %119 : vector<8x64xf32> to vector<8x64xbf16>
    %c0_48 = arith.constant 0 : index
    %c0_49 = arith.constant 0 : index
    %c0_50 = arith.constant 0 : index
    %121 = vector.load %arg15[%c0_48, %c0_49, %c0_50] : memref<1x64x16xbf16, #tpu.memory_space<vmem>>, vector<1x64x16xbf16>
    %122 = vector.shape_cast %121 : vector<1x64x16xbf16> to vector<64x16xbf16>
    %cst_51 = arith.constant dense<0.000000e+00> : vector<8x16xf32>
    %123 = tpu.matmul %120, %122, %cst_51 {dimension_numbers = #tpu.dot_dimension_numbers<[1], [0], [0], [1], [0, 0, 1, 1], [], []>} : vector<8x64xbf16>, vector<64x16xbf16>, vector<8x16xf32> -> vector<8x16xf32>
    %c0_52 = arith.constant 0 : index
    %c0_53 = arith.constant 0 : index
    %c0_54 = arith.constant 0 : index
    %124 = vector.load %arg16[%c0_52, %c0_53, %c0_54] : memref<1x1x16xf32, #tpu.memory_space<vmem>>, vector<1x1x16xf32>
    %125 = vector.shape_cast %124 : vector<1x1x16xf32> to vector<1x16xf32>
    %126 = vector.broadcast %125 : vector<1x16xf32> to vector<8x16xf32>
    %127 = arith.addf %123, %126 : vector<8x16xf32>
    %128 = arith.addf %83, %127 : vector<8x16xf32>
    %c0_55 = arith.constant 0 : index
    %c0_56 = arith.constant 0 : index
    %129 = vector.load %arg20[%c0_55, %c0_56] : memref<8x16xf32, #tpu.memory_space<vmem>>, vector<8x16xf32>
    tpu.vector_store %arg20[%c0_55, %c0_56], %128 {strides = array<i32>} : memref<8x16xf32, #tpu.memory_space<vmem>>, vector<8x16xf32>,
    %c1_i32 = arith.constant 1 : i32
    %130 = arith.cmpi eq, %arg1, %c1_i32 : i32
    %131 = arith.extui %130 : i1 to i32
    %c0_i32_57 = arith.constant 0 : i32
    %132 = arith.cmpi ne, %131, %c0_i32_57 : i32
    scf.if %132 {
      %c0_58 = arith.constant 0 : index
      %c0_59 = arith.constant 0 : index
      %133 = vector.load %arg3[%c0_58, %c0_59] : memref<8x1xf32, #tpu.memory_space<vmem>>, vector<8x1xf32>
      %134 = vector.broadcast %133 : vector<8x1xf32> to vector<8x16xf32>
      %135 = arith.mulf %128, %134 : vector<8x16xf32>
      %136 = arith.truncf %135 : vector<8x16xf32> to vector<8x16xbf16>
      %c0_60 = arith.constant 0 : index
      %c0_61 = arith.constant 0 : index
      %137 = vector.load %arg17[%c0_60, %c0_61] : memref<16x1xbf16, #tpu.memory_space<vmem>>, vector<16x1xbf16>
      %cst_62 = arith.constant dense<0.000000e+00> : vector<8x1xf32>
      %138 = tpu.matmul %136, %137, %cst_62 {dimension_numbers = #tpu.dot_dimension_numbers<[1], [0], [0], [1], [0, 0, 1, 1], [], []>} : vector<8x16xbf16>, vector<16x1xbf16>, vector<8x1xf32> -> vector<8x1xf32>
      %c0_63 = arith.constant 0 : index
      %c0_64 = arith.constant 0 : index
      %139 = vector.load %arg18[%c0_63, %c0_64] : memref<1x1xf32, #tpu.memory_space<vmem>>, vector<1x1xf32>
      %140 = vector.broadcast %139 : vector<1x1xf32> to vector<8x1xf32>
      %141 = arith.addf %138, %140 : vector<8x1xf32>
      %c0_65 = arith.constant 0 : index
      %c0_66 = arith.constant 0 : index
      %142 = vector.load %arg19[%c0_65, %c0_66] : memref<8x1xf32, #tpu.memory_space<vmem>>, vector<8x1xf32>
      tpu.vector_store %arg19[%c0_65, %c0_66], %141 {strides = array<i32>} : memref<8x1xf32, #tpu.memory_space<vmem>>, vector<8x1xf32>,
    } else {
    }
    return
  }
  func.func @transform_0(%arg0: i32, %arg1: i32) -> (i32, i32) {
    %c0_i32 = arith.constant 0 : i32
    %c0_i32_0 = arith.constant 0 : i32
    return %arg0, %c0_i32 : i32, i32
  }
  func.func @transform_1(%arg0: i32, %arg1: i32) -> (i32, i32) {
    %c0_i32 = arith.constant 0 : i32
    %c0_i32_0 = arith.constant 0 : i32
    return %arg0, %c0_i32 : i32, i32
  }
  func.func @transform_2(%arg0: i32, %arg1: i32) -> (i32, i32) {
    %c0_i32 = arith.constant 0 : i32
    %c0_i32_0 = arith.constant 0 : i32
    %c0_i32_1 = arith.constant 0 : i32
    return %c0_i32, %c0_i32_0 : i32, i32
  }
  func.func @transform_3(%arg0: i32, %arg1: i32) -> (i32, i32) {
    %c0_i32 = arith.constant 0 : i32
    %c0_i32_0 = arith.constant 0 : i32
    %c0_i32_1 = arith.constant 0 : i32
    return %c0_i32, %c0_i32_0 : i32, i32
  }
  func.func @transform_4(%arg0: i32, %arg1: i32) -> (i32, i32, i32) {
    %c0_i32 = arith.constant 0 : i32
    %c0_i32_0 = arith.constant 0 : i32
    %c0_i32_1 = arith.constant 0 : i32
    return %arg1, %c0_i32, %c0_i32_0 : i32, i32, i32
  }
  func.func @transform_5(%arg0: i32, %arg1: i32) -> (i32, i32, i32) {
    %c0_i32 = arith.constant 0 : i32
    %c0_i32_0 = arith.constant 0 : i32
    %c0_i32_1 = arith.constant 0 : i32
    return %arg1, %c0_i32, %c0_i32_0 : i32, i32, i32
  }
  func.func @transform_6(%arg0: i32, %arg1: i32) -> (i32, i32, i32) {
    %c0_i32 = arith.constant 0 : i32
    %c0_i32_0 = arith.constant 0 : i32
    %c0_i32_1 = arith.constant 0 : i32
    return %arg1, %c0_i32, %c0_i32_0 : i32, i32, i32
  }
  func.func @transform_7(%arg0: i32, %arg1: i32) -> (i32, i32, i32) {
    %c0_i32 = arith.constant 0 : i32
    %c0_i32_0 = arith.constant 0 : i32
    %c0_i32_1 = arith.constant 0 : i32
    return %arg1, %c0_i32, %c0_i32_0 : i32, i32, i32
  }
  func.func @transform_8(%arg0: i32, %arg1: i32) -> (i32, i32, i32) {
    %c0_i32 = arith.constant 0 : i32
    %c0_i32_0 = arith.constant 0 : i32
    %c0_i32_1 = arith.constant 0 : i32
    return %arg1, %c0_i32, %c0_i32_0 : i32, i32, i32
  }
  func.func @transform_9(%arg0: i32, %arg1: i32) -> (i32, i32, i32) {
    %c0_i32 = arith.constant 0 : i32
    %c0_i32_0 = arith.constant 0 : i32
    %c0_i32_1 = arith.constant 0 : i32
    return %arg1, %c0_i32, %c0_i32_0 : i32, i32, i32
  }
  func.func @transform_10(%arg0: i32, %arg1: i32) -> (i32, i32, i32) {
    %c0_i32 = arith.constant 0 : i32
    %c0_i32_0 = arith.constant 0 : i32
    %c0_i32_1 = arith.constant 0 : i32
    return %arg1, %c0_i32, %c0_i32_0 : i32, i32, i32
  }
  func.func @transform_11(%arg0: i32, %arg1: i32) -> (i32, i32, i32) {
    %c0_i32 = arith.constant 0 : i32
    %c0_i32_0 = arith.constant 0 : i32
    %c0_i32_1 = arith.constant 0 : i32
    return %arg1, %c0_i32, %c0_i32_0 : i32, i32, i32
  }
  func.func @transform_12(%arg0: i32, %arg1: i32) -> (i32, i32, i32) {
    %c0_i32 = arith.constant 0 : i32
    %c0_i32_0 = arith.constant 0 : i32
    %c0_i32_1 = arith.constant 0 : i32
    return %arg1, %c0_i32, %c0_i32_0 : i32, i32, i32
  }
  func.func @transform_13(%arg0: i32, %arg1: i32) -> (i32, i32, i32) {
    %c0_i32 = arith.constant 0 : i32
    %c0_i32_0 = arith.constant 0 : i32
    %c0_i32_1 = arith.constant 0 : i32
    return %arg1, %c0_i32, %c0_i32_0 : i32, i32, i32
  }
  func.func @transform_14(%arg0: i32, %arg1: i32) -> (i32, i32, i32) {
    %c0_i32 = arith.constant 0 : i32
    %c0_i32_0 = arith.constant 0 : i32
    %c0_i32_1 = arith.constant 0 : i32
    return %arg1, %c0_i32, %c0_i32_0 : i32, i32, i32
  }
  func.func @transform_15(%arg0: i32, %arg1: i32) -> (i32, i32) {
    %c0_i32 = arith.constant 0 : i32
    %c0_i32_0 = arith.constant 0 : i32
    %c0_i32_1 = arith.constant 0 : i32
    return %c0_i32, %c0_i32_0 : i32, i32
  }
  func.func @transform_16(%arg0: i32, %arg1: i32) -> (i32, i32) {
    %c0_i32 = arith.constant 0 : i32
    %c0_i32_0 = arith.constant 0 : i32
    %c0_i32_1 = arith.constant 0 : i32
    return %c0_i32, %c0_i32_0 : i32, i32
  }
  func.func @transform_17(%arg0: i32, %arg1: i32) -> (i32, i32) {
    %c0_i32 = arith.constant 0 : i32
    %c0_i32_0 = arith.constant 0 : i32
    return %arg0, %c0_i32 : i32, i32
  }
}

module attributes {stable_mosaic.version = 11 : i64} {
  func.func @kernel(%arg0: i32, %arg1: i32, %arg2: memref<8x8xf32, #tpu.memory_space<vmem>>, %arg3: memref<8x1xf32, #tpu.memory_space<vmem>>, %arg4: memref<8x16xbf16, #tpu.memory_space<vmem>>, %arg5: memref<1x16xf32, #tpu.memory_space<vmem>>, %arg6: memref<1x1x16xf32, #tpu.memory_space<vmem>>, %arg7: memref<1x1x16xf32, #tpu.memory_space<vmem>>, %arg8: memref<1x16x24xbf16, #tpu.memory_space<vmem>>, %arg9: memref<1x8x16xbf16, #tpu.memory_space<vmem>>, %arg10: memref<1x1x16xf32, #tpu.memory_space<vmem>>, %arg11: memref<1x1x16xf32, #tpu.memory_space<vmem>>, %arg12: memref<1x1x16xf32, #tpu.memory_space<vmem>>, %arg13: memref<1x16x64xbf16, #tpu.memory_space<vmem>>, %arg14: memref<1x1x64xf32, #tpu.memory_space<vmem>>, %arg15: memref<1x64x16xbf16, #tpu.memory_space<vmem>>, %arg16: memref<1x1x16xf32, #tpu.memory_space<vmem>>, %arg17: memref<16x8xbf16, #tpu.memory_space<vmem>>, %arg18: memref<1x8xf32, #tpu.memory_space<vmem>>, %arg19: memref<8x8xf32, #tpu.memory_space<vmem>>, %arg20: memref<8x16xf32, #tpu.memory_space<vmem>>) attributes {dimension_semantics = [#tpu.dimension_semantics<parallel>, #tpu.dimension_semantics<arbitrary>], iteration_bounds = array<i64: 2, 2>, scalar_prefetch = 0 : i64, scratch_operands = 1 : i64, tpu.core_type = #tpu.core_type<tc>, window_params = [{transform_indices = @transform_0, window_bounds = array<i64: 8, 8>}, {transform_indices = @transform_1, window_bounds = array<i64: 8, 1>}, {pipeline_mode = #tpu.pipeline_mode<synchronous>, transform_indices = @transform_2, window_bounds = array<i64: 8, 16>}, {pipeline_mode = #tpu.pipeline_mode<synchronous>, transform_indices = @transform_3, window_bounds = array<i64: 1, 16>}, {transform_indices = @transform_4, window_bounds = array<i64: 1, 1, 16>}, {transform_indices = @transform_5, window_bounds = array<i64: 1, 1, 16>}, {transform_indices = @transform_6, window_bounds = array<i64: 1, 16, 24>}, {transform_indices = @transform_7, window_bounds = array<i64: 1, 8, 16>}, {transform_indices = @transform_8, window_bounds = array<i64: 1, 1, 16>}, {transform_indices = @transform_9, window_bounds = array<i64: 1, 1, 16>}, {transform_indices = @transform_10, window_bounds = array<i64: 1, 1, 16>}, {transform_indices = @transform_11, window_bounds = array<i64: 1, 16, 64>}, {transform_indices = @transform_12, window_bounds = array<i64: 1, 1, 64>}, {transform_indices = @transform_13, window_bounds = array<i64: 1, 64, 16>}, {transform_indices = @transform_14, window_bounds = array<i64: 1, 1, 16>}, {pipeline_mode = #tpu.pipeline_mode<synchronous>, transform_indices = @transform_15, window_bounds = array<i64: 16, 8>}, {pipeline_mode = #tpu.pipeline_mode<synchronous>, transform_indices = @transform_16, window_bounds = array<i64: 1, 8>}, {transform_indices = @transform_17, window_bounds = array<i64: 8, 8>}]} {
    %c0_i32 = arith.constant 0 : i32
    %0 = arith.cmpi eq, %arg1, %c0_i32 : i32
    %1 = arith.extui %0 : i1 to i32
    %c0_i32_0 = arith.constant 0 : i32
    %2 = arith.cmpi ne, %1, %c0_i32_0 : i32
    %3 = scf.if %2 -> (vector<8x16xf32>) {
      %c0_58 = arith.constant 0 : index
      %c0_59 = arith.constant 0 : index
      %133 = vector.load %arg2[%c0_58, %c0_59] : memref<8x8xf32, #tpu.memory_space<vmem>>, vector<8x8xf32>
      %c0_60 = arith.constant 0 : index
      %c0_61 = arith.constant 0 : index
      %134 = vector.load %arg3[%c0_60, %c0_61] : memref<8x1xf32, #tpu.memory_space<vmem>>, vector<8x1xf32>
      %cst_62 = arith.constant dense<0xFF800000> : vector<8xf32>
      %135 = vector.multi_reduction <maximumf>, %133, %cst_62 [1] : vector<8x8xf32> to vector<8xf32>
      %136 = vector.shape_cast %135 : vector<8xf32> to vector<8x1xf32>
      %137 = vector.broadcast %136 : vector<8x1xf32> to vector<8x8xf32>
      %138 = arith.subf %133, %137 : vector<8x8xf32>
      %139 = math.exp %138 : vector<8x8xf32>
      %cst_63 = arith.constant dense<0.000000e+00> : vector<8xf32>
      %140 = vector.multi_reduction <add>, %139, %cst_63 [1] : vector<8x8xf32> to vector<8xf32>
      %141 = vector.shape_cast %140 : vector<8xf32> to vector<8x1xf32>
      %142 = vector.broadcast %141 : vector<8x1xf32> to vector<8x8xf32>
      %143 = arith.divf %139, %142 : vector<8x8xf32>
      %144 = vector.broadcast %134 : vector<8x1xf32> to vector<8x8xf32>
      %145 = arith.mulf %143, %144 : vector<8x8xf32>
      %c0_64 = arith.constant 0 : index
      %c0_65 = arith.constant 0 : index
      %146 = vector.load %arg4[%c0_64, %c0_65] : memref<8x16xbf16, #tpu.memory_space<vmem>>, vector<8x16xbf16>
      %147 = arith.truncf %145 : vector<8x8xf32> to vector<8x8xbf16>
      %cst_66 = arith.constant dense<0.000000e+00> : vector<8x16xf32>
      %148 = tpu.matmul %147, %146, %cst_66 {dimension_numbers = #tpu.dot_dimension_numbers<[1], [0], [0], [1], [0, 0, 1, 1], [], []>} : vector<8x8xbf16>, vector<8x16xbf16>, vector<8x16xf32> -> vector<8x16xf32>
      %c0_67 = arith.constant 0 : index
      %c0_68 = arith.constant 0 : index
      %149 = vector.load %arg5[%c0_67, %c0_68] : memref<1x16xf32, #tpu.memory_space<vmem>>, vector<1x16xf32>
      %150 = vector.broadcast %149 : vector<1x16xf32> to vector<8x16xf32>
      %151 = arith.addf %148, %150 : vector<8x16xf32>
      scf.yield %151 : vector<8x16xf32>
    } else {
      %c0_58 = arith.constant 0 : index
      %c0_59 = arith.constant 0 : index
      %133 = vector.load %arg20[%c0_58, %c0_59] : memref<8x16xf32, #tpu.memory_space<vmem>>, vector<8x16xf32>
      scf.yield %133 : vector<8x16xf32>
    }
    %cst = arith.constant dense<0.000000e+00> : vector<8xf32>
    %4 = vector.multi_reduction <add>, %3, %cst [1] : vector<8x16xf32> to vector<8xf32>
    %5 = vector.shape_cast %4 : vector<8xf32> to vector<8x1xf32>
    %cst_1 = arith.constant 1.600000e+01 : f32
    %6 = vector.broadcast %cst_1 : f32 to vector<8x1xf32>
    %7 = arith.divf %5, %6 : vector<8x1xf32>
    %8 = vector.broadcast %7 : vector<8x1xf32> to vector<8x16xf32>
    %9 = arith.subf %3, %8 : vector<8x16xf32>
    %10 = arith.mulf %9, %9 : vector<8x16xf32>
    %cst_2 = arith.constant dense<0.000000e+00> : vector<8xf32>
    %11 = vector.multi_reduction <add>, %10, %cst_2 [1] : vector<8x16xf32> to vector<8xf32>
    %12 = vector.shape_cast %11 : vector<8xf32> to vector<8x1xf32>
    %cst_3 = arith.constant 1.600000e+01 : f32
    %13 = vector.broadcast %cst_3 : f32 to vector<8x1xf32>
    %14 = arith.divf %12, %13 : vector<8x1xf32>
    %15 = vector.broadcast %7 : vector<8x1xf32> to vector<8x16xf32>
    %16 = arith.subf %3, %15 : vector<8x16xf32>
    %cst_4 = arith.constant 9.99999974E-6 : f32
    %17 = vector.broadcast %cst_4 : f32 to vector<8x1xf32>
    %18 = arith.addf %14, %17 : vector<8x1xf32>
    %19 = math.rsqrt %18 : vector<8x1xf32>
    %20 = vector.broadcast %19 : vector<8x1xf32> to vector<8x16xf32>
    %21 = arith.mulf %16, %20 : vector<8x16xf32>
    %c0 = arith.constant 0 : index
    %c0_5 = arith.constant 0 : index
    %c0_6 = arith.constant 0 : index
    %22 = vector.load %arg6[%c0, %c0_5, %c0_6] : memref<1x1x16xf32, #tpu.memory_space<vmem>>, vector<1x1x16xf32>
    %23 = vector.shape_cast %22 : vector<1x1x16xf32> to vector<1x16xf32>
    %24 = vector.broadcast %23 : vector<1x16xf32> to vector<8x16xf32>
    %25 = arith.mulf %21, %24 : vector<8x16xf32>
    %c0_7 = arith.constant 0 : index
    %c0_8 = arith.constant 0 : index
    %c0_9 = arith.constant 0 : index
    %26 = vector.load %arg7[%c0_7, %c0_8, %c0_9] : memref<1x1x16xf32, #tpu.memory_space<vmem>>, vector<1x1x16xf32>
    %27 = vector.shape_cast %26 : vector<1x1x16xf32> to vector<1x16xf32>
    %28 = vector.broadcast %27 : vector<1x16xf32> to vector<8x16xf32>
    %29 = arith.addf %25, %28 : vector<8x16xf32>
    %30 = arith.truncf %29 : vector<8x16xf32> to vector<8x16xbf16>
    %c0_10 = arith.constant 0 : index
    %c0_11 = arith.constant 0 : index
    %c0_12 = arith.constant 0 : index
    %31 = vector.load %arg8[%c0_10, %c0_11, %c0_12] : memref<1x16x24xbf16, #tpu.memory_space<vmem>>, vector<1x16x24xbf16>
    %32 = vector.shape_cast %31 : vector<1x16x24xbf16> to vector<16x24xbf16>
    %cst_13 = arith.constant dense<0.000000e+00> : vector<8x24xf32>
    %33 = tpu.matmul %30, %32, %cst_13 {dimension_numbers = #tpu.dot_dimension_numbers<[1], [0], [0], [1], [0, 0, 1, 1], [], []>} : vector<8x16xbf16>, vector<16x24xbf16>, vector<8x24xf32> -> vector<8x24xf32>
    %34 = vector.extract_strided_slice %33 {offsets = [0, 0], sizes = [8, 4], strides = [1, 1]} : vector<8x24xf32> to vector<8x4xf32>
    %35 = vector.extract_strided_slice %33 {offsets = [0, 8], sizes = [8, 4], strides = [1, 1]} : vector<8x24xf32> to vector<8x4xf32>
    %36 = vector.extract_strided_slice %33 {offsets = [0, 16], sizes = [8, 4], strides = [1, 1]} : vector<8x24xf32> to vector<8x4xf32>
    %37 = arith.truncf %34 : vector<8x4xf32> to vector<8x4xbf16>
    %38 = tpu.transpose %35, [1, 0] : vector<8x4xf32> -> vector<4x8xf32>
    %39 = arith.truncf %38 : vector<4x8xf32> to vector<4x8xbf16>
    %cst_14 = arith.constant dense<0.000000e+00> : vector<8x8xf32>
    %40 = tpu.matmul %37, %39, %cst_14 {dimension_numbers = #tpu.dot_dimension_numbers<[1], [0], [0], [1], [0, 0, 1, 1], [], []>} : vector<8x4xbf16>, vector<4x8xbf16>, vector<8x8xf32> -> vector<8x8xf32>
    %cst_15 = arith.constant dense<0xFF800000> : vector<8xf32>
    %41 = vector.multi_reduction <maximumf>, %40, %cst_15 [1] : vector<8x8xf32> to vector<8xf32>
    %42 = vector.shape_cast %41 : vector<8xf32> to vector<8x1xf32>
    %43 = vector.broadcast %42 : vector<8x1xf32> to vector<8x8xf32>
    %44 = arith.subf %40, %43 : vector<8x8xf32>
    %45 = math.exp %44 : vector<8x8xf32>
    %cst_16 = arith.constant dense<0.000000e+00> : vector<8xf32>
    %46 = vector.multi_reduction <add>, %45, %cst_16 [1] : vector<8x8xf32> to vector<8xf32>
    %47 = vector.shape_cast %46 : vector<8xf32> to vector<8x1xf32>
    %48 = tpu.reciprocal %47 {approx = true} : vector<8x1xf32> -> vector<8x1xf32>
    %49 = vector.broadcast %48 : vector<8x1xf32> to vector<8x8xf32>
    %50 = arith.mulf %45, %49 : vector<8x8xf32>
    %51 = arith.truncf %50 : vector<8x8xf32> to vector<8x8xbf16>
    %52 = arith.truncf %36 : vector<8x4xf32> to vector<8x4xbf16>
    %cst_17 = arith.constant dense<0.000000e+00> : vector<8x4xf32>
    %53 = tpu.matmul %51, %52, %cst_17 {dimension_numbers = #tpu.dot_dimension_numbers<[1], [0], [0], [1], [0, 0, 1, 1], [], []>} : vector<8x8xbf16>, vector<8x4xbf16>, vector<8x4xf32> -> vector<8x4xf32>
    %54 = vector.extract_strided_slice %33 {offsets = [0, 4], sizes = [8, 4], strides = [1, 1]} : vector<8x24xf32> to vector<8x4xf32>
    %55 = vector.extract_strided_slice %33 {offsets = [0, 12], sizes = [8, 4], strides = [1, 1]} : vector<8x24xf32> to vector<8x4xf32>
    %56 = vector.extract_strided_slice %33 {offsets = [0, 20], sizes = [8, 4], strides = [1, 1]} : vector<8x24xf32> to vector<8x4xf32>
    %57 = arith.truncf %54 : vector<8x4xf32> to vector<8x4xbf16>
    %58 = tpu.transpose %55, [1, 0] : vector<8x4xf32> -> vector<4x8xf32>
    %59 = arith.truncf %58 : vector<4x8xf32> to vector<4x8xbf16>
    %cst_18 = arith.constant dense<0.000000e+00> : vector<8x8xf32>
    %60 = tpu.matmul %57, %59, %cst_18 {dimension_numbers = #tpu.dot_dimension_numbers<[1], [0], [0], [1], [0, 0, 1, 1], [], []>} : vector<8x4xbf16>, vector<4x8xbf16>, vector<8x8xf32> -> vector<8x8xf32>
    %cst_19 = arith.constant dense<0xFF800000> : vector<8xf32>
    %61 = vector.multi_reduction <maximumf>, %60, %cst_19 [1] : vector<8x8xf32> to vector<8xf32>
    %62 = vector.shape_cast %61 : vector<8xf32> to vector<8x1xf32>
    %63 = vector.broadcast %62 : vector<8x1xf32> to vector<8x8xf32>
    %64 = arith.subf %60, %63 : vector<8x8xf32>
    %65 = math.exp %64 : vector<8x8xf32>
    %cst_20 = arith.constant dense<0.000000e+00> : vector<8xf32>
    %66 = vector.multi_reduction <add>, %65, %cst_20 [1] : vector<8x8xf32> to vector<8xf32>
    %67 = vector.shape_cast %66 : vector<8xf32> to vector<8x1xf32>
    %68 = tpu.reciprocal %67 {approx = true} : vector<8x1xf32> -> vector<8x1xf32>
    %69 = vector.broadcast %68 : vector<8x1xf32> to vector<8x8xf32>
    %70 = arith.mulf %65, %69 : vector<8x8xf32>
    %71 = arith.truncf %70 : vector<8x8xf32> to vector<8x8xbf16>
    %72 = arith.truncf %56 : vector<8x4xf32> to vector<8x4xbf16>
    %cst_21 = arith.constant dense<0.000000e+00> : vector<8x4xf32>
    %73 = tpu.matmul %71, %72, %cst_21 {dimension_numbers = #tpu.dot_dimension_numbers<[1], [0], [0], [1], [0, 0, 1, 1], [], []>} : vector<8x8xbf16>, vector<8x4xbf16>, vector<8x4xf32> -> vector<8x4xf32>
    %74 = tpu.concatenate %53, %73 in 1 : vector<8x4xf32>, vector<8x4xf32> -> vector<8x8xf32>
    %75 = arith.truncf %74 : vector<8x8xf32> to vector<8x8xbf16>
    %c0_22 = arith.constant 0 : index
    %c0_23 = arith.constant 0 : index
    %c0_24 = arith.constant 0 : index
    %76 = vector.load %arg9[%c0_22, %c0_23, %c0_24] : memref<1x8x16xbf16, #tpu.memory_space<vmem>>, vector<1x8x16xbf16>
    %77 = vector.shape_cast %76 : vector<1x8x16xbf16> to vector<8x16xbf16>
    %cst_25 = arith.constant dense<0.000000e+00> : vector<8x16xf32>
    %78 = tpu.matmul %75, %77, %cst_25 {dimension_numbers = #tpu.dot_dimension_numbers<[1], [0], [0], [1], [0, 0, 1, 1], [], []>} : vector<8x8xbf16>, vector<8x16xbf16>, vector<8x16xf32> -> vector<8x16xf32>
    %79 = arith.addf %3, %78 : vector<8x16xf32>
    %c0_26 = arith.constant 0 : index
    %c0_27 = arith.constant 0 : index
    %c0_28 = arith.constant 0 : index
    %80 = vector.load %arg10[%c0_26, %c0_27, %c0_28] : memref<1x1x16xf32, #tpu.memory_space<vmem>>, vector<1x1x16xf32>
    %81 = vector.shape_cast %80 : vector<1x1x16xf32> to vector<1x16xf32>
    %82 = vector.broadcast %81 : vector<1x16xf32> to vector<8x16xf32>
    %83 = arith.addf %79, %82 : vector<8x16xf32>
    %cst_29 = arith.constant dense<0.000000e+00> : vector<8xf32>
    %84 = vector.multi_reduction <add>, %83, %cst_29 [1] : vector<8x16xf32> to vector<8xf32>
    %85 = vector.shape_cast %84 : vector<8xf32> to vector<8x1xf32>
    %cst_30 = arith.constant 1.600000e+01 : f32
    %86 = vector.broadcast %cst_30 : f32 to vector<8x1xf32>
    %87 = arith.divf %85, %86 : vector<8x1xf32>
    %88 = vector.broadcast %87 : vector<8x1xf32> to vector<8x16xf32>
    %89 = arith.subf %83, %88 : vector<8x16xf32>
    %90 = arith.mulf %89, %89 : vector<8x16xf32>
    %cst_31 = arith.constant dense<0.000000e+00> : vector<8xf32>
    %91 = vector.multi_reduction <add>, %90, %cst_31 [1] : vector<8x16xf32> to vector<8xf32>
    %92 = vector.shape_cast %91 : vector<8xf32> to vector<8x1xf32>
    %cst_32 = arith.constant 1.600000e+01 : f32
    %93 = vector.broadcast %cst_32 : f32 to vector<8x1xf32>
    %94 = arith.divf %92, %93 : vector<8x1xf32>
    %95 = vector.broadcast %87 : vector<8x1xf32> to vector<8x16xf32>
    %96 = arith.subf %83, %95 : vector<8x16xf32>
    %cst_33 = arith.constant 9.99999974E-6 : f32
    %97 = vector.broadcast %cst_33 : f32 to vector<8x1xf32>
    %98 = arith.addf %94, %97 : vector<8x1xf32>
    %99 = math.rsqrt %98 : vector<8x1xf32>
    %100 = vector.broadcast %99 : vector<8x1xf32> to vector<8x16xf32>
    %101 = arith.mulf %96, %100 : vector<8x16xf32>
    %c0_34 = arith.constant 0 : index
    %c0_35 = arith.constant 0 : index
    %c0_36 = arith.constant 0 : index
    %102 = vector.load %arg11[%c0_34, %c0_35, %c0_36] : memref<1x1x16xf32, #tpu.memory_space<vmem>>, vector<1x1x16xf32>
    %103 = vector.shape_cast %102 : vector<1x1x16xf32> to vector<1x16xf32>
    %104 = vector.broadcast %103 : vector<1x16xf32> to vector<8x16xf32>
    %105 = arith.mulf %101, %104 : vector<8x16xf32>
    %c0_37 = arith.constant 0 : index
    %c0_38 = arith.constant 0 : index
    %c0_39 = arith.constant 0 : index
    %106 = vector.load %arg12[%c0_37, %c0_38, %c0_39] : memref<1x1x16xf32, #tpu.memory_space<vmem>>, vector<1x1x16xf32>
    %107 = vector.shape_cast %106 : vector<1x1x16xf32> to vector<1x16xf32>
    %108 = vector.broadcast %107 : vector<1x16xf32> to vector<8x16xf32>
    %109 = arith.addf %105, %108 : vector<8x16xf32>
    %110 = arith.truncf %109 : vector<8x16xf32> to vector<8x16xbf16>
    %c0_40 = arith.constant 0 : index
    %c0_41 = arith.constant 0 : index
    %c0_42 = arith.constant 0 : index
    %111 = vector.load %arg13[%c0_40, %c0_41, %c0_42] : memref<1x16x64xbf16, #tpu.memory_space<vmem>>, vector<1x16x64xbf16>
    %112 = vector.shape_cast %111 : vector<1x16x64xbf16> to vector<16x64xbf16>
    %cst_43 = arith.constant dense<0.000000e+00> : vector<8x64xf32>
    %113 = tpu.matmul %110, %112, %cst_43 {dimension_numbers = #tpu.dot_dimension_numbers<[1], [0], [0], [1], [0, 0, 1, 1], [], []>} : vector<8x16xbf16>, vector<16x64xbf16>, vector<8x64xf32> -> vector<8x64xf32>
    %c0_44 = arith.constant 0 : index
    %c0_45 = arith.constant 0 : index
    %c0_46 = arith.constant 0 : index
    %114 = vector.load %arg14[%c0_44, %c0_45, %c0_46] : memref<1x1x64xf32, #tpu.memory_space<vmem>>, vector<1x1x64xf32>
    %115 = vector.shape_cast %114 : vector<1x1x64xf32> to vector<1x64xf32>
    %116 = vector.broadcast %115 : vector<1x64xf32> to vector<8x64xf32>
    %117 = arith.addf %113, %116 : vector<8x64xf32>
    %cst_47 = arith.constant 0.000000e+00 : f32
    %118 = vector.broadcast %cst_47 : f32 to vector<8x64xf32>
    %119 = arith.maximumf %117, %118 : vector<8x64xf32>
    %120 = arith.truncf %119 : vector<8x64xf32> to vector<8x64xbf16>
    %c0_48 = arith.constant 0 : index
    %c0_49 = arith.constant 0 : index
    %c0_50 = arith.constant 0 : index
    %121 = vector.load %arg15[%c0_48, %c0_49, %c0_50] : memref<1x64x16xbf16, #tpu.memory_space<vmem>>, vector<1x64x16xbf16>
    %122 = vector.shape_cast %121 : vector<1x64x16xbf16> to vector<64x16xbf16>
    %cst_51 = arith.constant dense<0.000000e+00> : vector<8x16xf32>
    %123 = tpu.matmul %120, %122, %cst_51 {dimension_numbers = #tpu.dot_dimension_numbers<[1], [0], [0], [1], [0, 0, 1, 1], [], []>} : vector<8x64xbf16>, vector<64x16xbf16>, vector<8x16xf32> -> vector<8x16xf32>
    %c0_52 = arith.constant 0 : index
    %c0_53 = arith.constant 0 : index
    %c0_54 = arith.constant 0 : index
    %124 = vector.load %arg16[%c0_52, %c0_53, %c0_54] : memref<1x1x16xf32, #tpu.memory_space<vmem>>, vector<1x1x16xf32>
    %125 = vector.shape_cast %124 : vector<1x1x16xf32> to vector<1x16xf32>
    %126 = vector.broadcast %125 : vector<1x16xf32> to vector<8x16xf32>
    %127 = arith.addf %123, %126 : vector<8x16xf32>
    %128 = arith.addf %83, %127 : vector<8x16xf32>
    %c0_55 = arith.constant 0 : index
    %c0_56 = arith.constant 0 : index
    %129 = vector.load %arg20[%c0_55, %c0_56] : memref<8x16xf32, #tpu.memory_space<vmem>>, vector<8x16xf32>
    tpu.vector_store %arg20[%c0_55, %c0_56], %128 {strides = array<i32>} : memref<8x16xf32, #tpu.memory_space<vmem>>, vector<8x16xf32>,
    %c1_i32 = arith.constant 1 : i32
    %130 = arith.cmpi eq, %arg1, %c1_i32 : i32
    %131 = arith.extui %130 : i1 to i32
    %c0_i32_57 = arith.constant 0 : i32
    %132 = arith.cmpi ne, %131, %c0_i32_57 : i32
    scf.if %132 {
      %c0_58 = arith.constant 0 : index
      %c0_59 = arith.constant 0 : index
      %133 = vector.load %arg3[%c0_58, %c0_59] : memref<8x1xf32, #tpu.memory_space<vmem>>, vector<8x1xf32>
      %134 = vector.broadcast %133 : vector<8x1xf32> to vector<8x16xf32>
      %135 = arith.mulf %128, %134 : vector<8x16xf32>
      %136 = arith.truncf %135 : vector<8x16xf32> to vector<8x16xbf16>
      %c0_60 = arith.constant 0 : index
      %c0_61 = arith.constant 0 : index
      %137 = vector.load %arg17[%c0_60, %c0_61] : memref<16x8xbf16, #tpu.memory_space<vmem>>, vector<16x8xbf16>
      %cst_62 = arith.constant dense<0.000000e+00> : vector<8x8xf32>
      %138 = tpu.matmul %136, %137, %cst_62 {dimension_numbers = #tpu.dot_dimension_numbers<[1], [0], [0], [1], [0, 0, 1, 1], [], []>} : vector<8x16xbf16>, vector<16x8xbf16>, vector<8x8xf32> -> vector<8x8xf32>
      %c0_63 = arith.constant 0 : index
      %c0_64 = arith.constant 0 : index
      %139 = vector.load %arg18[%c0_63, %c0_64] : memref<1x8xf32, #tpu.memory_space<vmem>>, vector<1x8xf32>
      %140 = vector.broadcast %139 : vector<1x8xf32> to vector<8x8xf32>
      %141 = arith.addf %138, %140 : vector<8x8xf32>
      %c0_65 = arith.constant 0 : index
      %c0_66 = arith.constant 0 : index
      %142 = vector.load %arg19[%c0_65, %c0_66] : memref<8x8xf32, #tpu.memory_space<vmem>>, vector<8x8xf32>
      tpu.vector_store %arg19[%c0_65, %c0_66], %141 {strides = array<i32>} : memref<8x8xf32, #tpu.memory_space<vmem>>, vector<8x8xf32>,
    } else {
    }
    return
  }
  func.func @transform_0(%arg0: i32, %arg1: i32) -> (i32, i32) {
    %c0_i32 = arith.constant 0 : i32
    %c0_i32_0 = arith.constant 0 : i32
    return %arg0, %c0_i32 : i32, i32
  }
  func.func @transform_1(%arg0: i32, %arg1: i32) -> (i32, i32) {
    %c0_i32 = arith.constant 0 : i32
    %c0_i32_0 = arith.constant 0 : i32
    return %arg0, %c0_i32 : i32, i32
  }
  func.func @transform_2(%arg0: i32, %arg1: i32) -> (i32, i32) {
    %c0_i32 = arith.constant 0 : i32
    %c0_i32_0 = arith.constant 0 : i32
    %c0_i32_1 = arith.constant 0 : i32
    return %c0_i32, %c0_i32_0 : i32, i32
  }
  func.func @transform_3(%arg0: i32, %arg1: i32) -> (i32, i32) {
    %c0_i32 = arith.constant 0 : i32
    %c0_i32_0 = arith.constant 0 : i32
    %c0_i32_1 = arith.constant 0 : i32
    return %c0_i32, %c0_i32_0 : i32, i32
  }
  func.func @transform_4(%arg0: i32, %arg1: i32) -> (i32, i32, i32) {
    %c0_i32 = arith.constant 0 : i32
    %c0_i32_0 = arith.constant 0 : i32
    %c0_i32_1 = arith.constant 0 : i32
    return %arg1, %c0_i32, %c0_i32_0 : i32, i32, i32
  }
  func.func @transform_5(%arg0: i32, %arg1: i32) -> (i32, i32, i32) {
    %c0_i32 = arith.constant 0 : i32
    %c0_i32_0 = arith.constant 0 : i32
    %c0_i32_1 = arith.constant 0 : i32
    return %arg1, %c0_i32, %c0_i32_0 : i32, i32, i32
  }
  func.func @transform_6(%arg0: i32, %arg1: i32) -> (i32, i32, i32) {
    %c0_i32 = arith.constant 0 : i32
    %c0_i32_0 = arith.constant 0 : i32
    %c0_i32_1 = arith.constant 0 : i32
    return %arg1, %c0_i32, %c0_i32_0 : i32, i32, i32
  }
  func.func @transform_7(%arg0: i32, %arg1: i32) -> (i32, i32, i32) {
    %c0_i32 = arith.constant 0 : i32
    %c0_i32_0 = arith.constant 0 : i32
    %c0_i32_1 = arith.constant 0 : i32
    return %arg1, %c0_i32, %c0_i32_0 : i32, i32, i32
  }
  func.func @transform_8(%arg0: i32, %arg1: i32) -> (i32, i32, i32) {
    %c0_i32 = arith.constant 0 : i32
    %c0_i32_0 = arith.constant 0 : i32
    %c0_i32_1 = arith.constant 0 : i32
    return %arg1, %c0_i32, %c0_i32_0 : i32, i32, i32
  }
  func.func @transform_9(%arg0: i32, %arg1: i32) -> (i32, i32, i32) {
    %c0_i32 = arith.constant 0 : i32
    %c0_i32_0 = arith.constant 0 : i32
    %c0_i32_1 = arith.constant 0 : i32
    return %arg1, %c0_i32, %c0_i32_0 : i32, i32, i32
  }
  func.func @transform_10(%arg0: i32, %arg1: i32) -> (i32, i32, i32) {
    %c0_i32 = arith.constant 0 : i32
    %c0_i32_0 = arith.constant 0 : i32
    %c0_i32_1 = arith.constant 0 : i32
    return %arg1, %c0_i32, %c0_i32_0 : i32, i32, i32
  }
  func.func @transform_11(%arg0: i32, %arg1: i32) -> (i32, i32, i32) {
    %c0_i32 = arith.constant 0 : i32
    %c0_i32_0 = arith.constant 0 : i32
    %c0_i32_1 = arith.constant 0 : i32
    return %arg1, %c0_i32, %c0_i32_0 : i32, i32, i32
  }
  func.func @transform_12(%arg0: i32, %arg1: i32) -> (i32, i32, i32) {
    %c0_i32 = arith.constant 0 : i32
    %c0_i32_0 = arith.constant 0 : i32
    %c0_i32_1 = arith.constant 0 : i32
    return %arg1, %c0_i32, %c0_i32_0 : i32, i32, i32
  }
  func.func @transform_13(%arg0: i32, %arg1: i32) -> (i32, i32, i32) {
    %c0_i32 = arith.constant 0 : i32
    %c0_i32_0 = arith.constant 0 : i32
    %c0_i32_1 = arith.constant 0 : i32
    return %arg1, %c0_i32, %c0_i32_0 : i32, i32, i32
  }
  func.func @transform_14(%arg0: i32, %arg1: i32) -> (i32, i32, i32) {
    %c0_i32 = arith.constant 0 : i32
    %c0_i32_0 = arith.constant 0 : i32
    %c0_i32_1 = arith.constant 0 : i32
    return %arg1, %c0_i32, %c0_i32_0 : i32, i32, i32
  }
  func.func @transform_15(%arg0: i32, %arg1: i32) -> (i32, i32) {
    %c0_i32 = arith.constant 0 : i32
    %c0_i32_0 = arith.constant 0 : i32
    %c0_i32_1 = arith.constant 0 : i32
    return %c0_i32, %c0_i32_0 : i32, i32
  }
  func.func @transform_16(%arg0: i32, %arg1: i32) -> (i32, i32) {
    %c0_i32 = arith.constant 0 : i32
    %c0_i32_0 = arith.constant 0 : i32
    %c0_i32_1 = arith.constant 0 : i32
    return %c0_i32, %c0_i32_0 : i32, i32
  }
  func.func @transform_17(%arg0: i32, %arg1: i32) -> (i32, i32) {
    %c0_i32 = arith.constant 0 : i32
    %c0_i32_0 = arith.constant 0 : i32
    return %arg0, %c0_i32 : i32, i32
  }
}

</mosaic_0001>

<llo_original>
// kernel: asrf_with_brt_forward.5
$region0: #{asrf_with_brt_forward.5}
  #allocation0 [shape = 'u32[]', space=smem, size = 0x4, offset = 0x4, fixed_abs, tag = 'smem constant byte address 0x4 - core index']
  #allocation1 [shape = 'u32[144,128]{1,0:T(1,128)}', space=vmem, size = 0x12000, scoped, tag = 'internal scratch']
  #allocation2 [shape = 'f32[8,16]{1,0:T(8,128)}', space=vmem, size = 0x1000, scoped, tag = 'scratch operand']
  #allocation3 [shape = 'f32[1,1]{1,0:T(1,128)S(1)}', space=vmem, size = 0x200, scoped, tag = 'scoped memory for asrf_with_brt_forward.5']
  %s0 = inlined_call_operand.vmem [shape: f32[16,1], index: 0, kind: input, shape index: {}]
  %s1 = inlined_call_operand.vmem [shape: f32[16,1], index: 1, kind: input, shape index: {}]
  %s2 = inlined_call_operand.vmem [shape: bf16[1,16], index: 2, kind: input, shape index: {}]
  %s3 = inlined_call_operand.vmem [shape: f32[1,16], index: 3, kind: input, shape index: {}]
  %s4 = inlined_call_operand.vmem [shape: f32[2,1,16], index: 4, kind: input, shape index: {}]
  %s5 = inlined_call_operand.vmem [shape: f32[2,1,16], index: 5, kind: input, shape index: {}]
  %s6 = inlined_call_operand.vmem [shape: bf16[2,16,24], index: 6, kind: input, shape index: {}]
  %s7 = inlined_call_operand.vmem [shape: bf16[2,8,16], index: 7, kind: input, shape index: {}]
  %s8 = inlined_call_operand.vmem [shape: f32[2,1,16], index: 8, kind: input, shape index: {}]
  %s9 = inlined_call_operand.vmem [shape: f32[2,1,16], index: 9, kind: input, shape index: {}]
  %s10 = inlined_call_operand.vmem [shape: f32[2,1,16], index: 10, kind: input, shape index: {}]
  %s11 = inlined_call_operand.vmem [shape: bf16[2,16,64], index: 11, kind: input, shape index: {}]
  %s12 = inlined_call_operand.vmem [shape: f32[2,1,64], index: 12, kind: input, shape index: {}]
  %s13 = inlined_call_operand.vmem [shape: bf16[2,64,16], index: 13, kind: input, shape index: {}]
  %s14 = inlined_call_operand.vmem [shape: f32[2,1,16], index: 14, kind: input, shape index: {}]
  %s15 = inlined_call_operand.vmem [shape: bf16[16,1], index: 15, kind: input, shape index: {}]
  %s16 = inlined_call_operand.<no memory space> [shape: f32[1,1], index: 16, kind: input, shape index: {}]
  %s17 = inlined_call_operand.vmem [shape: f32[16,1], index: 17, kind: output, shape index: {}]
  %s18 = sld [smem:[#allocation0]]
  $region113: #{asrf_with_brt_forward.5} parent=0
    _
  %s20 = ssub.s32 1, %s18
  %s21 = scalar_select 0, %s20, %s18
  %v22 = vstv %s16
  %23 = vst [vmem:[#allocation3] sm:$0x1] %v22
  loop: start=0, step=1, limit=6
  $region2: #{asrf_with_brt_forward.5} parent=0 // loop_pre_header
    _
  $region3: #{asrf_with_brt_forward.5} parent=0 // loop_header
    %s25 = sphi 0, %s29
    %p26 = scmp.ge.s32.totalorder %s25, 6
    %s32 = sphi 0, %s44
    %s33 = sphi 0, %s40
    %s34 = sphi 0, %s32
    %s35 = sphi 0, %s33
    %s36 = sphi 0, %s34
    %s37 = sphi 0, %s35
    %s47 = sphi 0, %s49
    %s50 = sphi 0, %s47
    %s51 = sphi 0, %s50
    %s67 = sphi 0, %s51
    %s73 = sphi 0, %s75
    %s76 = sphi 0, %s73
    %s77 = sphi 0, %s76
    %s93 = sphi 0, %s77
    %s97 = sphi 0, %s97
    %s99 = sphi 0, %s97
    %s100 = sphi 0, %s99
    %s114 = sphi 0, %s100
    %s118 = sphi 0, %s118
    %s120 = sphi 0, %s118
    %s121 = sphi 0, %s120
    %s135 = sphi 0, %s121
    %s141 = sphi 0, %s143
    %s144 = sphi 0, %s141
    %s145 = sphi 0, %s144
    %s161 = sphi 0, %s145
    %s167 = sphi 0, %s169
    %s170 = sphi 0, %s167
    %s171 = sphi 0, %s170
    %s187 = sphi 0, %s171
    %s193 = sphi 0, %s195
    %s196 = sphi 0, %s193
    %s197 = sphi 0, %s196
    %s213 = sphi 0, %s197
    %s219 = sphi 0, %s221
    %s222 = sphi 0, %s219
    %s223 = sphi 0, %s222
    %s239 = sphi 0, %s223
    %s245 = sphi 0, %s247
    %s248 = sphi 0, %s245
    %s249 = sphi 0, %s248
    %s265 = sphi 0, %s249
    %s271 = sphi 0, %s273
    %s274 = sphi 0, %s271
    %s275 = sphi 0, %s274
    %s291 = sphi 0, %s275
    %s297 = sphi 0, %s299
    %s300 = sphi 0, %s297
    %s301 = sphi 0, %s300
    %s317 = sphi 0, %s301
    %s323 = sphi 0, %s325
    %s326 = sphi 0, %s323
    %s327 = sphi 0, %s326
    %s343 = sphi 0, %s327
    %s349 = sphi 0, %s351
    %s352 = sphi 0, %s349
    %s353 = sphi 0, %s352
    %s369 = sphi 0, %s353
    %s375 = sphi 0, %s377
    %s378 = sphi 0, %s375
    %s379 = sphi 0, %s378
    %s395 = sphi 0, %s379
    %s401 = sphi 0, %s403
    %s404 = sphi 0, %s401
    %s405 = sphi 0, %s404
    %s421 = sphi 0, %s405
    %s425 = sphi 0, %s425
    %s427 = sphi 0, %s425
    %s428 = sphi 0, %s427
    %s442 = sphi 0, %s428
    %s446 = sphi 0, %s446
    %s448 = sphi 0, %s446
    %s449 = sphi 0, %s448
    %s463 = sphi 0, %s449
    %s469 = sphi 0, %s471
    %s472 = sphi 0, %s469
    %s473 = sphi 0, %s472
    %s489 = sphi 0, %s473
  $region4: #{asrf_with_brt_forward.5} parent=0 // loop_header_branch
    %28 = sbr.rel (%p26) target = $region8
  $region5: #{asrf_with_brt_forward.5} parent=0 // loop_body
    %s30 = ssub.s32 %s25, 1
    %s31 = ssub.s32 %s25, 2
    %s38 = sadd.s32 1, %s33
    %p39 = scmp.ge.s32.totalorder %s38, 2
    %s40 = scalar_select %p39, 0, %s38
    %s41 = sadd.s32 1, %s32
    %s42 = scalar_select %p39, %s41, %s32
    %p43 = scmp.ge.s32.totalorder %s42, 2
    %s44 = scalar_select %p43, 0, %s42
    %s45 = ssub.s32 %s32, %s44
    %p46 = scmp.eq.s32.totalorder %s45, 0
    %s48 = sadd.s32 %s47, 1
    %s49 = scalar_select %p46, %s47, %s48
    %p52 = pneg %p46
    %p53 = scmp.eq.s32.totalorder %s25, 3
    %p54 = por %p52, %p53
    %p55 = scmp.ne.s32.totalorder %s47, %s50
    %p56 = scmp.eq.s32.totalorder %s25, 0
    %p57 = por %p55, %p56
    %p58 = scmp.ne.s32.totalorder %s47, %s50
    %p59 = scmp.eq.s32.totalorder %s30, 3
    %p60 = por %p58, %p59
    %p61 = scmp.ne.s32.totalorder %s50, %s51
    %p62 = scmp.eq.s32.totalorder %s30, 0
    %p63 = por %p61, %p62
    %p64 = scmp.ne.s32.totalorder %s50, %s51
    %p65 = scmp.eq.s32.totalorder %s31, 3
    %p66 = por %p64, %p65
    %p68 = scmp.ne.s32.totalorder %s51, %s67
    %p69 = scmp.eq.s32.totalorder %s31, 0
    %p70 = por %p68, %p69
    %s71 = ssub.s32 %s32, %s44
    %p72 = scmp.eq.s32.totalorder %s71, 0
    %s74 = sadd.s32 %s73, 1
    %s75 = scalar_select %p72, %s73, %s74
    %p78 = pneg %p72
    %p79 = scmp.eq.s32.totalorder %s25, 3
    %p80 = por %p78, %p79
    %p81 = scmp.ne.s32.totalorder %s73, %s76
    %p82 = scmp.eq.s32.totalorder %s25, 0
    %p83 = por %p81, %p82
    %p84 = scmp.ne.s32.totalorder %s73, %s76
    %p85 = scmp.eq.s32.totalorder %s30, 3
    %p86 = por %p84, %p85
    %p87 = scmp.ne.s32.totalorder %s76, %s77
    %p88 = scmp.eq.s32.totalorder %s30, 0
    %p89 = por %p87, %p88
    %p90 = scmp.ne.s32.totalorder %s76, %s77
    %p91 = scmp.eq.s32.totalorder %s31, 3
    %p92 = por %p90, %p91
    %p94 = scmp.ne.s32.totalorder %s77, %s93
    %p95 = scmp.eq.s32.totalorder %s31, 0
    %p96 = por %p94, %p95
    %s98 = sadd.s32 %s97, 1
    %p101 = scmp.eq.s32.totalorder %s25, 3
    %p102 = scmp.ne.s32.totalorder %s97, %s99
    %p103 = scmp.eq.s32.totalorder %s25, 0
    %p104 = por %p102, %p103
    %p105 = scmp.ne.s32.totalorder %s97, %s99
    %p106 = scmp.eq.s32.totalorder %s30, 3
    %p107 = por %p105, %p106
    %p108 = scmp.ne.s32.totalorder %s99, %s100
    %p109 = scmp.eq.s32.totalorder %s30, 0
    %p110 = por %p108, %p109
    %p111 = scmp.ne.s32.totalorder %s99, %s100
    %p112 = scmp.eq.s32.totalorder %s31, 3
    %p113 = por %p111, %p112
    %p115 = scmp.ne.s32.totalorder %s100, %s114
    %p116 = scmp.eq.s32.totalorder %s31, 0
    %p117 = por %p115, %p116
    %s119 = sadd.s32 %s118, 1
    %p122 = scmp.eq.s32.totalorder %s25, 3
    %p123 = scmp.ne.s32.totalorder %s118, %s120
    %p124 = scmp.eq.s32.totalorder %s25, 0
    %p125 = por %p123, %p124
    %p126 = scmp.ne.s32.totalorder %s118, %s120
    %p127 = scmp.eq.s32.totalorder %s30, 3
    %p128 = por %p126, %p127
    %p129 = scmp.ne.s32.totalorder %s120, %s121
    %p130 = scmp.eq.s32.totalorder %s30, 0
    %p131 = por %p129, %p130
    %p132 = scmp.ne.s32.totalorder %s120, %s121
    %p133 = scmp.eq.s32.totalorder %s31, 3
    %p134 = por %p132, %p133
    %p136 = scmp.ne.s32.totalorder %s121, %s135
    %p137 = scmp.eq.s32.totalorder %s31, 0
    %p138 = por %p136, %p137
    %s139 = ssub.s32 %s33, %s40
    %p140 = scmp.eq.s32.totalorder %s139, 0
    %s142 = sadd.s32 %s141, 1
    %s143 = scalar_select %p140, %s141, %s142
    %p146 = pneg %p140
    %p147 = scmp.eq.s32.totalorder %s25, 3
    %p148 = por %p146, %p147
    %p149 = scmp.ne.s32.totalorder %s141, %s144
    %p150 = scmp.eq.s32.totalorder %s25, 0
    %p151 = por %p149, %p150
    %p152 = scmp.ne.s32.totalorder %s141, %s144
    %p153 = scmp.eq.s32.totalorder %s30, 3
    %p154 = por %p152, %p153
    %p155 = scmp.ne.s32.totalorder %s144, %s145
    %p156 = scmp.eq.s32.totalorder %s30, 0
    %p157 = por %p155, %p156
    %p158 = scmp.ne.s32.totalorder %s144, %s145
    %p159 = scmp.eq.s32.totalorder %s31, 3
    %p160 = por %p158, %p159
    %p162 = scmp.ne.s32.totalorder %s145, %s161
    %p163 = scmp.eq.s32.totalorder %s31, 0
    %p164 = por %p162, %p163
    %s165 = ssub.s32 %s33, %s40
    %p166 = scmp.eq.s32.totalorder %s165, 0
    %s168 = sadd.s32 %s167, 1
    %s169 = scalar_select %p166, %s167, %s168
    %p172 = pneg %p166
    %p173 = scmp.eq.s32.totalorder %s25, 3
    %p174 = por %p172, %p173
    %p175 = scmp.ne.s32.totalorder %s167, %s170
    %p176 = scmp.eq.s32.totalorder %s25, 0
    %p177 = por %p175, %p176
    %p178 = scmp.ne.s32.totalorder %s167, %s170
    %p179 = scmp.eq.s32.totalorder %s30, 3
    %p180 = por %p178, %p179
    %p181 = scmp.ne.s32.totalorder %s170, %s171
    %p182 = scmp.eq.s32.totalorder %s30, 0
    %p183 = por %p181, %p182
    %p184 = scmp.ne.s32.totalorder %s170, %s171
    %p185 = scmp.eq.s32.totalorder %s31, 3
    %p186 = por %p184, %p185
    %p188 = scmp.ne.s32.totalorder %s171, %s187
    %p189 = scmp.eq.s32.totalorder %s31, 0
    %p190 = por %p188, %p189
    %s191 = ssub.s32 %s33, %s40
    %p192 = scmp.eq.s32.totalorder %s191, 0
    %s194 = sadd.s32 %s193, 1
    %s195 = scalar_select %p192, %s193, %s194
    %p198 = pneg %p192
    %p199 = scmp.eq.s32.totalorder %s25, 3
    %p200 = por %p198, %p199
    %p201 = scmp.ne.s32.totalorder %s193, %s196
    %p202 = scmp.eq.s32.totalorder %s25, 0
    %p203 = por %p201, %p202
    %p204 = scmp.ne.s32.totalorder %s193, %s196
    %p205 = scmp.eq.s32.totalorder %s30, 3
    %p206 = por %p204, %p205
    %p207 = scmp.ne.s32.totalorder %s196, %s197
    %p208 = scmp.eq.s32.totalorder %s30, 0
    %p209 = por %p207, %p208
    %p210 = scmp.ne.s32.totalorder %s196, %s197
    %p211 = scmp.eq.s32.totalorder %s31, 3
    %p212 = por %p210, %p211
    %p214 = scmp.ne.s32.totalorder %s197, %s213
    %p215 = scmp.eq.s32.totalorder %s31, 0
    %p216 = por %p214, %p215
    %s217 = ssub.s32 %s33, %s40
    %p218 = scmp.eq.s32.totalorder %s217, 0
    %s220 = sadd.s32 %s219, 1
    %s221 = scalar_select %p218, %s219, %s220
    %p224 = pneg %p218
    %p225 = scmp.eq.s32.totalorder %s25, 3
    %p226 = por %p224, %p225
    %p227 = scmp.ne.s32.totalorder %s219, %s222
    %p228 = scmp.eq.s32.totalorder %s25, 0
    %p229 = por %p227, %p228
    %p230 = scmp.ne.s32.totalorder %s219, %s222
    %p231 = scmp.eq.s32.totalorder %s30, 3
    %p232 = por %p230, %p231
    %p233 = scmp.ne.s32.totalorder %s222, %s223
    %p234 = scmp.eq.s32.totalorder %s30, 0
    %p235 = por %p233, %p234
    %p236 = scmp.ne.s32.totalorder %s222, %s223
    %p237 = scmp.eq.s32.totalorder %s31, 3
    %p238 = por %p236, %p237
    %p240 = scmp.ne.s32.totalorder %s223, %s239
    %p241 = scmp.eq.s32.totalorder %s31, 0
    %p242 = por %p240, %p241
    %s243 = ssub.s32 %s33, %s40
    %p244 = scmp.eq.s32.totalorder %s243, 0
    %s246 = sadd.s32 %s245, 1
    %s247 = scalar_select %p244, %s245, %s246
    %p250 = pneg %p244
    %p251 = scmp.eq.s32.totalorder %s25, 3
    %p252 = por %p250, %p251
    %p253 = scmp.ne.s32.totalorder %s245, %s248
    %p254 = scmp.eq.s32.totalorder %s25, 0
    %p255 = por %p253, %p254
    %p256 = scmp.ne.s32.totalorder %s245, %s248
    %p257 = scmp.eq.s32.totalorder %s30, 3
    %p258 = por %p256, %p257
    %p259 = scmp.ne.s32.totalorder %s248, %s249
    %p260 = scmp.eq.s32.totalorder %s30, 0
    %p261 = por %p259, %p260
    %p262 = scmp.ne.s32.totalorder %s248, %s249
    %p263 = scmp.eq.s32.totalorder %s31, 3
    %p264 = por %p262, %p263
    %p266 = scmp.ne.s32.totalorder %s249, %s265
    %p267 = scmp.eq.s32.totalorder %s31, 0
    %p268 = por %p266, %p267
    %s269 = ssub.s32 %s33, %s40
    %p270 = scmp.eq.s32.totalorder %s269, 0
    %s272 = sadd.s32 %s271, 1
    %s273 = scalar_select %p270, %s271, %s272
    %p276 = pneg %p270
    %p277 = scmp.eq.s32.totalorder %s25, 3
    %p278 = por %p276, %p277
    %p279 = scmp.ne.s32.totalorder %s271, %s274
    %p280 = scmp.eq.s32.totalorder %s25, 0
    %p281 = por %p279, %p280
    %p282 = scmp.ne.s32.totalorder %s271, %s274
    %p283 = scmp.eq.s32.totalorder %s30, 3
    %p284 = por %p282, %p283
    %p285 = scmp.ne.s32.totalorder %s274, %s275
    %p286 = scmp.eq.s32.totalorder %s30, 0
    %p287 = por %p285, %p286
    %p288 = scmp.ne.s32.totalorder %s274, %s275
    %p289 = scmp.eq.s32.totalorder %s31, 3
    %p290 = por %p288, %p289
    %p292 = scmp.ne.s32.totalorder %s275, %s291
    %p293 = scmp.eq.s32.totalorder %s31, 0
    %p294 = por %p292, %p293
    %s295 = ssub.s32 %s33, %s40
    %p296 = scmp.eq.s32.totalorder %s295, 0
    %s298 = sadd.s32 %s297, 1
    %s299 = scalar_select %p296, %s297, %s298
    %p302 = pneg %p296
    %p303 = scmp.eq.s32.totalorder %s25, 3
    %p304 = por %p302, %p303
    %p305 = scmp.ne.s32.totalorder %s297, %s300
    %p306 = scmp.eq.s32.totalorder %s25, 0
    %p307 = por %p305, %p306
    %p308 = scmp.ne.s32.totalorder %s297, %s300
    %p309 = scmp.eq.s32.totalorder %s30, 3
    %p310 = por %p308, %p309
    %p311 = scmp.ne.s32.totalorder %s300, %s301
    %p312 = scmp.eq.s32.totalorder %s30, 0
    %p313 = por %p311, %p312
    %p314 = scmp.ne.s32.totalorder %s300, %s301
    %p315 = scmp.eq.s32.totalorder %s31, 3
    %p316 = por %p314, %p315
    %p318 = scmp.ne.s32.totalorder %s301, %s317
    %p319 = scmp.eq.s32.totalorder %s31, 0
    %p320 = por %p318, %p319
    %s321 = ssub.s32 %s33, %s40
    %p322 = scmp.eq.s32.totalorder %s321, 0
    %s324 = sadd.s32 %s323, 1
    %s325 = scalar_select %p322, %s323, %s324
    %p328 = pneg %p322
    %p329 = scmp.eq.s32.totalorder %s25, 3
    %p330 = por %p328, %p329
    %p331 = scmp.ne.s32.totalorder %s323, %s326
    %p332 = scmp.eq.s32.totalorder %s25, 0
    %p333 = por %p331, %p332
    %p334 = scmp.ne.s32.totalorder %s323, %s326
    %p335 = scmp.eq.s32.totalorder %s30, 3
    %p336 = por %p334, %p335
    %p337 = scmp.ne.s32.totalorder %s326, %s327
    %p338 = scmp.eq.s32.totalorder %s30, 0
    %p339 = por %p337, %p338
    %p340 = scmp.ne.s32.totalorder %s326, %s327
    %p341 = scmp.eq.s32.totalorder %s31, 3
    %p342 = por %p340, %p341
    %p344 = scmp.ne.s32.totalorder %s327, %s343
    %p345 = scmp.eq.s32.totalorder %s31, 0
    %p346 = por %p344, %p345
    %s347 = ssub.s32 %s33, %s40
    %p348 = scmp.eq.s32.totalorder %s347, 0
    %s350 = sadd.s32 %s349, 1
    %s351 = scalar_select %p348, %s349, %s350
    %p354 = pneg %p348
    %p355 = scmp.eq.s32.totalorder %s25, 3
    %p356 = por %p354, %p355
    %p357 = scmp.ne.s32.totalorder %s349, %s352
    %p358 = scmp.eq.s32.totalorder %s25, 0
    %p359 = por %p357, %p358
    %p360 = scmp.ne.s32.totalorder %s349, %s352
    %p361 = scmp.eq.s32.totalorder %s30, 3
    %p362 = por %p360, %p361
    %p363 = scmp.ne.s32.totalorder %s352, %s353
    %p364 = scmp.eq.s32.totalorder %s30, 0
    %p365 = por %p363, %p364
    %p366 = scmp.ne.s32.totalorder %s352, %s353
    %p367 = scmp.eq.s32.totalorder %s31, 3
    %p368 = por %p366, %p367
    %p370 = scmp.ne.s32.totalorder %s353, %s369
    %p371 = scmp.eq.s32.totalorder %s31, 0
    %p372 = por %p370, %p371
    %s373 = ssub.s32 %s33, %s40
    %p374 = scmp.eq.s32.totalorder %s373, 0
    %s376 = sadd.s32 %s375, 1
    %s377 = scalar_select %p374, %s375, %s376
    %p380 = pneg %p374
    %p381 = scmp.eq.s32.totalorder %s25, 3
    %p382 = por %p380, %p381
    %p383 = scmp.ne.s32.totalorder %s375, %s378
    %p384 = scmp.eq.s32.totalorder %s25, 0
    %p385 = por %p383, %p384
    %p386 = scmp.ne.s32.totalorder %s375, %s378
    %p387 = scmp.eq.s32.totalorder %s30, 3
    %p388 = por %p386, %p387
    %p389 = scmp.ne.s32.totalorder %s378, %s379
    %p390 = scmp.eq.s32.totalorder %s30, 0
    %p391 = por %p389, %p390
    %p392 = scmp.ne.s32.totalorder %s378, %s379
    %p393 = scmp.eq.s32.totalorder %s31, 3
    %p394 = por %p392, %p393
    %p396 = scmp.ne.s32.totalorder %s379, %s395
    %p397 = scmp.eq.s32.totalorder %s31, 0
    %p398 = por %p396, %p397
    %s399 = ssub.s32 %s33, %s40
    %p400 = scmp.eq.s32.totalorder %s399, 0
    %s402 = sadd.s32 %s401, 1
    %s403 = scalar_select %p400, %s401, %s402
    %p406 = pneg %p400
    %p407 = scmp.eq.s32.totalorder %s25, 3
    %p408 = por %p406, %p407
    %p409 = scmp.ne.s32.totalorder %s401, %s404
    %p410 = scmp.eq.s32.totalorder %s25, 0
    %p411 = por %p409, %p410
    %p412 = scmp.ne.s32.totalorder %s401, %s404
    %p413 = scmp.eq.s32.totalorder %s30, 3
    %p414 = por %p412, %p413
    %p415 = scmp.ne.s32.totalorder %s404, %s405
    %p416 = scmp.eq.s32.totalorder %s30, 0
    %p417 = por %p415, %p416
    %p418 = scmp.ne.s32.totalorder %s404, %s405
    %p419 = scmp.eq.s32.totalorder %s31, 3
    %p420 = por %p418, %p419
    %p422 = scmp.ne.s32.totalorder %s405, %s421
    %p423 = scmp.eq.s32.totalorder %s31, 0
    %p424 = por %p422, %p423
    %s426 = sadd.s32 %s425, 1
    %p429 = scmp.eq.s32.totalorder %s25, 3
    %p430 = scmp.ne.s32.totalorder %s425, %s427
    %p431 = scmp.eq.s32.totalorder %s25, 0
    %p432 = por %p430, %p431
    %p433 = scmp.ne.s32.totalorder %s425, %s427
    %p434 = scmp.eq.s32.totalorder %s30, 3
    %p435 = por %p433, %p434
    %p436 = scmp.ne.s32.totalorder %s427, %s428
    %p437 = scmp.eq.s32.totalorder %s30, 0
    %p438 = por %p436, %p437
    %p439 = scmp.ne.s32.totalorder %s427, %s428
    %p440 = scmp.eq.s32.totalorder %s31, 3
    %p441 = por %p439, %p440
    %p443 = scmp.ne.s32.totalorder %s428, %s442
    %p444 = scmp.eq.s32.totalorder %s31, 0
    %p445 = por %p443, %p444
    %s447 = sadd.s32 %s446, 1
    %p450 = scmp.eq.s32.totalorder %s25, 3
    %p451 = scmp.ne.s32.totalorder %s446, %s448
    %p452 = scmp.eq.s32.totalorder %s25, 0
    %p453 = por %p451, %p452
    %p454 = scmp.ne.s32.totalorder %s446, %s448
    %p455 = scmp.eq.s32.totalorder %s30, 3
    %p456 = por %p454, %p455
    %p457 = scmp.ne.s32.totalorder %s448, %s449
    %p458 = scmp.eq.s32.totalorder %s30, 0
    %p459 = por %p457, %p458
    %p460 = scmp.ne.s32.totalorder %s448, %s449
    %p461 = scmp.eq.s32.totalorder %s31, 3
    %p462 = por %p460, %p461
    %p464 = scmp.ne.s32.totalorder %s449, %s463
    %p465 = scmp.eq.s32.totalorder %s31, 0
    %p466 = por %p464, %p465
    %s467 = ssub.s32 %s32, %s44
    %p468 = scmp.eq.s32.totalorder %s467, 0
    %s470 = sadd.s32 %s469, 1
    %s471 = scalar_select %p468, %s469, %s470
    %p474 = pneg %p468
    %p475 = scmp.eq.s32.totalorder %s25, 3
    %p476 = por %p474, %p475
    %p477 = scmp.ne.s32.totalorder %s469, %s472
    %p478 = scmp.eq.s32.totalorder %s25, 0
    %p479 = por %p477, %p478
    %p480 = scmp.ne.s32.totalorder %s469, %s472
    %p481 = scmp.eq.s32.totalorder %s30, 3
    %p482 = por %p480, %p481
    %p483 = scmp.ne.s32.totalorder %s472, %s473
    %p484 = scmp.eq.s32.totalorder %s30, 0
    %p485 = por %p483, %p484
    %p486 = scmp.ne.s32.totalorder %s472, %s473
    %p487 = scmp.eq.s32.totalorder %s31, 3
    %p488 = por %p486, %p487
    %p490 = scmp.ne.s32.totalorder %s473, %s489
    %p491 = scmp.eq.s32.totalorder %s31, 0
    %p492 = por %p490, %p491
    %p493 = scmp.le.s32.totalorder 1, %s25
    %p494 = scmp.lt.s32.totalorder %s25, 5
    %p495 = pnand %p493, %p494
    %p496 = pneg %p495
    // Predicated region
    $region9: #{asrf_with_brt_forward.5} parent=5 // pred_check
      _
    $region10: #{asrf_with_brt_forward.5} parent=5 // pred_check_branch
      %498 = sbr.rel (%p495) target = $region12
    $region11: #{asrf_with_brt_forward.5} parent=5 // pred_region
      %s499 = ssub.s32 %s25, 1
      // Predicated region
      $region13: #{asrf_with_brt_forward.5} parent=11 // pred_check
        %p500 = pneg %p110
      $region14: #{asrf_with_brt_forward.5} parent=11 // pred_check_branch
        %502 = sbr.rel (%p500) target = $region16
      $region15: #{asrf_with_brt_forward.5} parent=11 // pred_region
        _
      $region16: #{asrf_with_brt_forward.5} parent=11 // pred_fallthru
        _
      // Predicated region
      $region17: #{asrf_with_brt_forward.5} parent=11 // pred_check
        %p503 = pneg %p131
      $region18: #{asrf_with_brt_forward.5} parent=11 // pred_check_branch
        %505 = sbr.rel (%p503) target = $region20
      $region19: #{asrf_with_brt_forward.5} parent=11 // pred_region
        _
      $region20: #{asrf_with_brt_forward.5} parent=11 // pred_fallthru
        _
      // Predicated region
      $region21: #{asrf_with_brt_forward.5} parent=11 // pred_check
        %p506 = pneg %p438
      $region22: #{asrf_with_brt_forward.5} parent=11 // pred_check_branch
        %508 = sbr.rel (%p506) target = $region24
      $region23: #{asrf_with_brt_forward.5} parent=11 // pred_region
        _
      $region24: #{asrf_with_brt_forward.5} parent=11 // pred_fallthru
        _
      // Predicated region
      $region25: #{asrf_with_brt_forward.5} parent=11 // pred_check
        %p509 = pneg %p459
      $region26: #{asrf_with_brt_forward.5} parent=11 // pred_check_branch
        %511 = sbr.rel (%p509) target = $region28
      $region27: #{asrf_with_brt_forward.5} parent=11 // pred_region
        _
      $region28: #{asrf_with_brt_forward.5} parent=11 // pred_fallthru
        _
    $region12: #{asrf_with_brt_forward.5} parent=5 // pred_fallthru
      _
    %p512 = scmp.lt.s32.totalorder %s25, 4
    // Predicated region
    $region29: #{asrf_with_brt_forward.5} parent=5 // pred_check
      %p513 = pneg %p512
    $region30: #{asrf_with_brt_forward.5} parent=5 // pred_check_branch
      %515 = sbr.rel (%p513) target = $region32
    $region31: #{asrf_with_brt_forward.5} parent=5 // pred_region
      // Predicated region
      $region33: #{asrf_with_brt_forward.5} parent=31 // pred_check
        %p516 = pneg %p57
      $region34: #{asrf_with_brt_forward.5} parent=31 // pred_check_branch
        %518 = sbr.rel (%p516) target = $region36
      $region35: #{asrf_with_brt_forward.5} parent=31 // pred_region
        %p519 = scmp.lt.s32.totalorder %s32, 1
        %s520 = scalar_select %p519, %s32, 1
        %s521 = smul.addr %s520, 8
        %s522 = scalar_lea.vmem %s0, %s521
      $region36: #{asrf_with_brt_forward.5} parent=31 // pred_fallthru
        _
      // Predicated region
      $region37: #{asrf_with_brt_forward.5} parent=31 // pred_check
        %p523 = pneg %p83
      $region38: #{asrf_with_brt_forward.5} parent=31 // pred_check_branch
        %525 = sbr.rel (%p523) target = $region40
      $region39: #{asrf_with_brt_forward.5} parent=31 // pred_region
        %p526 = scmp.lt.s32.totalorder %s32, 1
        %s527 = scalar_select %p526, %s32, 1
        %s528 = smul.addr %s527, 8
        %s529 = scalar_lea.vmem %s1, %s528
      $region40: #{asrf_with_brt_forward.5} parent=31 // pred_fallthru
        _
      // Predicated region
      $region41: #{asrf_with_brt_forward.5} parent=31 // pred_check
        %p530 = pneg %p151
      $region42: #{asrf_with_brt_forward.5} parent=31 // pred_check_branch
        %532 = sbr.rel (%p530) target = $region44
      $region43: #{asrf_with_brt_forward.5} parent=31 // pred_region
        %p533 = scmp.lt.s32.totalorder %s33, 1
        %s534 = scalar_select %p533, %s33, 1
        %s535 = scalar_lea.vmem %s4, %s534
      $region44: #{asrf_with_brt_forward.5} parent=31 // pred_fallthru
        _
      // Predicated region
      $region45: #{asrf_with_brt_forward.5} parent=31 // pred_check
        %p536 = pneg %p177
      $region46: #{asrf_with_brt_forward.5} parent=31 // pred_check_branch
        %538 = sbr.rel (%p536) target = $region48
      $region47: #{asrf_with_brt_forward.5} parent=31 // pred_region
        %p539 = scmp.lt.s32.totalorder %s33, 1
        %s540 = scalar_select %p539, %s33, 1
        %s541 = scalar_lea.vmem %s5, %s540
      $region48: #{asrf_with_brt_forward.5} parent=31 // pred_fallthru
        _
      // Predicated region
      $region49: #{asrf_with_brt_forward.5} parent=31 // pred_check
        %p542 = pneg %p203
      $region50: #{asrf_with_brt_forward.5} parent=31 // pred_check_branch
        %544 = sbr.rel (%p542) target = $region52
      $region51: #{asrf_with_brt_forward.5} parent=31 // pred_region
        %p545 = scmp.lt.s32.totalorder %s33, 1
        %s546 = scalar_select %p545, %s33, 1
        %s547 = smul.addr %s546, 2
        %s548 = smul.addr %s547, 4
        %s549 = scalar_lea.vmem %s6, %s548
      $region52: #{asrf_with_brt_forward.5} parent=31 // pred_fallthru
        _
      // Predicated region
      $region53: #{asrf_with_brt_forward.5} parent=31 // pred_check
        %p550 = pneg %p229
      $region54: #{asrf_with_brt_forward.5} parent=31 // pred_check_branch
        %552 = sbr.rel (%p550) target = $region56
      $region55: #{asrf_with_brt_forward.5} parent=31 // pred_region
        %p553 = scmp.lt.s32.totalorder %s33, 1
        %s554 = scalar_select %p553, %s33, 1
        %s555 = smul.addr %s554, 4
        %s556 = scalar_lea.vmem %s7, %s555
      $region56: #{asrf_with_brt_forward.5} parent=31 // pred_fallthru
        _
      // Predicated region
      $region57: #{asrf_with_brt_forward.5} parent=31 // pred_check
        %p557 = pneg %p255
      $region58: #{asrf_with_brt_forward.5} parent=31 // pred_check_branch
        %559 = sbr.rel (%p557) target = $region60
      $region59: #{asrf_with_brt_forward.5} parent=31 // pred_region
        %p560 = scmp.lt.s32.totalorder %s33, 1
        %s561 = scalar_select %p560, %s33, 1
        %s562 = scalar_lea.vmem %s8, %s561
      $region60: #{asrf_with_brt_forward.5} parent=31 // pred_fallthru
        _
      // Predicated region
      $region61: #{asrf_with_brt_forward.5} parent=31 // pred_check
        %p563 = pneg %p281
      $region62: #{asrf_with_brt_forward.5} parent=31 // pred_check_branch
        %565 = sbr.rel (%p563) target = $region64
      $region63: #{asrf_with_brt_forward.5} parent=31 // pred_region
        %p566 = scmp.lt.s32.totalorder %s33, 1
        %s567 = scalar_select %p566, %s33, 1
        %s568 = scalar_lea.vmem %s9, %s567
      $region64: #{asrf_with_brt_forward.5} parent=31 // pred_fallthru
        _
      // Predicated region
      $region65: #{asrf_with_brt_forward.5} parent=31 // pred_check
        %p569 = pneg %p307
      $region66: #{asrf_with_brt_forward.5} parent=31 // pred_check_branch
        %571 = sbr.rel (%p569) target = $region68
      $region67: #{asrf_with_brt_forward.5} parent=31 // pred_region
        %p572 = scmp.lt.s32.totalorder %s33, 1
        %s573 = scalar_select %p572, %s33, 1
        %s574 = scalar_lea.vmem %s10, %s573
      $region68: #{asrf_with_brt_forward.5} parent=31 // pred_fallthru
        _
      // Predicated region
      $region69: #{asrf_with_brt_forward.5} parent=31 // pred_check
        %p575 = pneg %p333
      $region70: #{asrf_with_brt_forward.5} parent=31 // pred_check_branch
        %577 = sbr.rel (%p575) target = $region72
      $region71: #{asrf_with_brt_forward.5} parent=31 // pred_region
        %p578 = scmp.lt.s32.totalorder %s33, 1
        %s579 = scalar_select %p578, %s33, 1
        %s580 = smul.addr %s579, 2
        %s581 = smul.addr %s580, 4
        %s582 = scalar_lea.vmem %s11, %s581
      $region72: #{asrf_with_brt_forward.5} parent=31 // pred_fallthru
        _
      // Predicated region
      $region73: #{asrf_with_brt_forward.5} parent=31 // pred_check
        %p583 = pneg %p359
      $region74: #{asrf_with_brt_forward.5} parent=31 // pred_check_branch
        %585 = sbr.rel (%p583) target = $region76
      $region75: #{asrf_with_brt_forward.5} parent=31 // pred_region
        %p586 = scmp.lt.s32.totalorder %s33, 1
        %s587 = scalar_select %p586, %s33, 1
        %s588 = scalar_lea.vmem %s12, %s587
      $region76: #{asrf_with_brt_forward.5} parent=31 // pred_fallthru
        _
      // Predicated region
      $region77: #{asrf_with_brt_forward.5} parent=31 // pred_check
        %p589 = pneg %p385
      $region78: #{asrf_with_brt_forward.5} parent=31 // pred_check_branch
        %591 = sbr.rel (%p589) target = $region80
      $region79: #{asrf_with_brt_forward.5} parent=31 // pred_region
        %p592 = scmp.lt.s32.totalorder %s33, 1
        %s593 = scalar_select %p592, %s33, 1
        %s594 = smul.addr %s593, 8
        %s595 = smul.addr %s594, 4
        %s596 = scalar_lea.vmem %s13, %s595
      $region80: #{asrf_with_brt_forward.5} parent=31 // pred_fallthru
        _
      // Predicated region
      $region81: #{asrf_with_brt_forward.5} parent=31 // pred_check
        %p597 = pneg %p411
      $region82: #{asrf_with_brt_forward.5} parent=31 // pred_check_branch
        %599 = sbr.rel (%p597) target = $region84
      $region83: #{asrf_with_brt_forward.5} parent=31 // pred_region
        %p600 = scmp.lt.s32.totalorder %s33, 1
        %s601 = scalar_select %p600, %s33, 1
        %s602 = scalar_lea.vmem %s14, %s601
      $region84: #{asrf_with_brt_forward.5} parent=31 // pred_fallthru
        _
    $region32: #{asrf_with_brt_forward.5} parent=5 // pred_fallthru
      _
    %p603 = scmp.le.s32.totalorder 1, %s25
    %p604 = scmp.lt.s32.totalorder %s25, 5
    %p605 = pnand %p603, %p604
    %p606 = pneg %p605
    // Predicated region
    $region85: #{asrf_with_brt_forward.5} parent=5 // pred_check
      _
    $region86: #{asrf_with_brt_forward.5} parent=5 // pred_check_branch
      %608 = sbr.rel (%p605) target = $region88
    $region87: #{asrf_with_brt_forward.5} parent=5 // pred_region
      %s609 = ssub.s32 %s25, 1
      %p610 = scmp.lt.s32.totalorder %s34, 1
      %s611 = scalar_select %p610, %s34, 1
      %s612 = smul.addr %s611, 8
      %s613 = scalar_lea.vmem %s0, %s612
      %p614 = pneg %p63
      %p615 = pneg %p60
      %p616 = scmp.lt.s32.totalorder %s34, 1
      %s617 = scalar_select %p616, %s34, 1
      %s618 = smul.addr %s617, 8
      %s619 = scalar_lea.vmem %s1, %s618
      %p620 = pneg %p89
      %p621 = pneg %p86
      %p622 = pneg %p110
      %p623 = pneg %p107
      %p624 = pneg %p131
      %p625 = pneg %p128
      %p626 = scmp.lt.s32.totalorder %s35, 1
      %s627 = scalar_select %p626, %s35, 1
      %s628 = scalar_lea.vmem %s4, %s627
      %p629 = pneg %p157
      %p630 = pneg %p154
      %p631 = scmp.lt.s32.totalorder %s35, 1
      %s632 = scalar_select %p631, %s35, 1
      %s633 = scalar_lea.vmem %s5, %s632
      %p634 = pneg %p183
      %p635 = pneg %p180
      %p636 = scmp.lt.s32.totalorder %s35, 1
      %s637 = scalar_select %p636, %s35, 1
      %s638 = smul.addr %s637, 2
      %s639 = smul.addr %s638, 4
      %s640 = scalar_lea.vmem %s6, %s639
      %p641 = pneg %p209
      %p642 = pneg %p206
      %p643 = scmp.lt.s32.totalorder %s35, 1
      %s644 = scalar_select %p643, %s35, 1
      %s645 = smul.addr %s644, 4
      %s646 = scalar_lea.vmem %s7, %s645
      %p647 = pneg %p235
      %p648 = pneg %p232
      %p649 = scmp.lt.s32.totalorder %s35, 1
      %s650 = scalar_select %p649, %s35, 1
      %s651 = scalar_lea.vmem %s8, %s650
      %p652 = pneg %p261
      %p653 = pneg %p258
      %p654 = scmp.lt.s32.totalorder %s35, 1
      %s655 = scalar_select %p654, %s35, 1
      %s656 = scalar_lea.vmem %s9, %s655
      %p657 = pneg %p287
      %p658 = pneg %p284
      %p659 = scmp.lt.s32.totalorder %s35, 1
      %s660 = scalar_select %p659, %s35, 1
      %s661 = scalar_lea.vmem %s10, %s660
      %p662 = pneg %p313
      %p663 = pneg %p310
      %p664 = scmp.lt.s32.totalorder %s35, 1
      %s665 = scalar_select %p664, %s35, 1
      %s666 = smul.addr %s665, 2
      %s667 = smul.addr %s666, 4
      %s668 = scalar_lea.vmem %s11, %s667
      %p669 = pneg %p339
      %p670 = pneg %p336
      %p671 = scmp.lt.s32.totalorder %s35, 1
      %s672 = scalar_select %p671, %s35, 1
      %s673 = scalar_lea.vmem %s12, %s672
      %p674 = pneg %p365
      %p675 = pneg %p362
      %p676 = scmp.lt.s32.totalorder %s35, 1
      %s677 = scalar_select %p676, %s35, 1
      %s678 = smul.addr %s677, 8
      %s679 = smul.addr %s678, 4
      %s680 = scalar_lea.vmem %s13, %s679
      %p681 = pneg %p391
      %p682 = pneg %p388
      %p683 = scmp.lt.s32.totalorder %s35, 1
      %s684 = scalar_select %p683, %s35, 1
      %s685 = scalar_lea.vmem %s14, %s684
      %p686 = pneg %p417
      %p687 = pneg %p414
      %p688 = pneg %p438
      %p689 = pneg %p435
      %p690 = pneg %p459
      %p691 = pneg %p456
      %p692 = pneg %p485
      %p693 = pneg %p482
      %p694 = scmp.lt.s32.totalorder %s34, 1
      %s695 = scalar_select %p694, %s34, 1
      %s696 = smul.addr %s695, 8
      %s697 = scalar_lea.vmem %s17, %s696
      %p698 = scmp.lt.s32.totalorder %s34, 1
      %s699 = scalar_select %p698, %s34, 1
      %s700 = smul.addr %s699, 8
      %s701 = scalar_lea.vmem %s0, %s700
      %p702 = scmp.lt.s32.totalorder %s34, 1
      %s703 = scalar_select %p702, %s34, 1
      %s704 = smul.addr %s703, 8
      %s705 = scalar_lea.vmem %s1, %s704
      %p706 = scmp.lt.s32.totalorder %s35, 1
      %s707 = scalar_select %p706, %s35, 1
      %s708 = scalar_lea.vmem %s4, %s707
      %p709 = scmp.lt.s32.totalorder %s35, 1
      %s710 = scalar_select %p709, %s35, 1
      %s711 = scalar_lea.vmem %s5, %s710
      %p712 = scmp.lt.s32.totalorder %s35, 1
      %s713 = scalar_select %p712, %s35, 1
      %s714 = smul.addr %s713, 2
      %s715 = smul.addr %s714, 4
      %s716 = scalar_lea.vmem %s6, %s715
      %p717 = scmp.lt.s32.totalorder %s35, 1
      %s718 = scalar_select %p717, %s35, 1
      %s719 = smul.addr %s718, 4
      %s720 = scalar_lea.vmem %s7, %s719
      %p721 = scmp.lt.s32.totalorder %s35, 1
      %s722 = scalar_select %p721, %s35, 1
      %s723 = scalar_lea.vmem %s8, %s722
      %p724 = scmp.lt.s32.totalorder %s35, 1
      %s725 = scalar_select %p724, %s35, 1
      %s726 = scalar_lea.vmem %s9, %s725
      %p727 = scmp.lt.s32.totalorder %s35, 1
      %s728 = scalar_select %p727, %s35, 1
      %s729 = scalar_lea.vmem %s10, %s728
      %p730 = scmp.lt.s32.totalorder %s35, 1
      %s731 = scalar_select %p730, %s35, 1
      %s732 = smul.addr %s731, 2
      %s733 = smul.addr %s732, 4
      %s734 = scalar_lea.vmem %s11, %s733
      %p735 = scmp.lt.s32.totalorder %s35, 1
      %s736 = scalar_select %p735, %s35, 1
      %s737 = scalar_lea.vmem %s12, %s736
      %p738 = scmp.lt.s32.totalorder %s35, 1
      %s739 = scalar_select %p738, %s35, 1
      %s740 = smul.addr %s739, 8
      %s741 = smul.addr %s740, 4
      %s742 = scalar_lea.vmem %s13, %s741
      %p743 = scmp.lt.s32.totalorder %s35, 1
      %s744 = scalar_select %p743, %s35, 1
      %s745 = scalar_lea.vmem %s14, %s744
      %p746 = scmp.lt.s32.totalorder %s34, 1
      %s747 = scalar_select %p746, %s34, 1
      %s748 = smul.addr %s747, 8
      %s749 = scalar_lea.vmem %s17, %s748
      %p751 = scmp.eq.s32.totalorder %s35, 0
      // Predicated region
      $region89: #{asrf_with_brt_forward.5} parent=87 // pred_check
        %p752 = pneg %p751
      $region90: #{asrf_with_brt_forward.5} parent=87 // pred_check_branch
        %754 = sbr.rel (%p752) target = $region92
      $region91: #{asrf_with_brt_forward.5} parent=87 // pred_region
        %v755 = vld [vmem:[%s701] sm:$0xff]
        %v756 = vld [vmem:[%s705] sm:$0xff]
        %v757 = vxor.u32 %v755, 2147483648
        %v758 = vmul.f32 %v757, 1.442695
        %v759 = vpow.pop %v758
        %v760 = vadd.f32 %v759, 1.0
        %v761 = vrcp.pop %v760
        %v762 = vmul.f32 1.0, %v761
        %v763 = vmul.f32 %v762, %v756
        %v764 = vld [vmem:[%s2] sm:$0x1]
        %v765 = vunpack.c.l.bf16 %v764
        %767 = vset.pattern.permute.xlu0 0
        %768 = vperm.xlu0 %767, %v763
        %v769 = vpop.permute.xlu0 %768
        %v771 = vlaneseq
        %v772 = vshrl.u32 %v771, 7
        %v773 = vsub.s32 0, %v772
        %v774 = vrot.slane %v765, %v773
        %v775 = vmul.f32 %v769, %v774
        %v776 = vld [vmem:[%s3] sm:$0x1]
        %v778 = vlaneseq
        %v779 = vshrl.u32 %v778, 7
        %v780 = vsub.s32 0, %v779
        %v781 = vrot.slane %v776, %v780
        %v783 = vadd.f32 %v775, %v781
      $region92: #{asrf_with_brt_forward.5} parent=87 // pred_fallthru
        %v784 = vphi 0, %v783
      %p785 = pneg %p751
      // Predicated region
      $region93: #{asrf_with_brt_forward.5} parent=87 // pred_check
        _
      $region94: #{asrf_with_brt_forward.5} parent=87 // pred_check_branch
        %787 = sbr.rel (%p751) target = $region96
      $region95: #{asrf_with_brt_forward.5} parent=87 // pred_region
        %v788 = vld [vmem:[#allocation2] sm:$0xff]
      $region96: #{asrf_with_brt_forward.5} parent=87 // pred_fallthru
        %v789 = vphi %v784, %v788
      %vm790 = vcmask 130048
      %v791 = vsel %vm790, %v789, 0.0
      %792 = vadd.xlane.f32.xlu0 %v791
      %v793 = vpop.xlane.xlu0 %792
      %v794 = vrcp.pop 16.0
      %v795 = vmul.f32 %v793, %v794
      %v796 = vsub.f32 %v789, %v795
      %v797 = vmul.f32 %v796, %v796
      %v798 = vsel %vm790, %v797, 0.0
      %799 = vadd.xlane.f32.xlu0 %v798
      %v800 = vpop.xlane.xlu0 %799
      %v801 = vmul.f32 %v800, %v794
      %v802 = vadd.f32 %v801, 1e-05
      %v803 = vrsqrt.pop %v802
      %v804 = vmul.f32 %v796, %v803
      %v805 = vld [vmem:[%s708] sm:$0x1]
      %v807 = vlaneseq
      %v808 = vshrl.u32 %v807, 7
      %v809 = vsub.s32 0, %v808
      %v810 = vrot.slane %v805, %v809
      %v812 = vmul.f32 %v804, %v810
      %v813 = vld [vmem:[%s711] sm:$0x1]
      %v815 = vlaneseq
      %v816 = vshrl.u32 %v815, 7
      %v817 = vsub.s32 0, %v816
      %v818 = vrot.slane %v813, %v817
      %v820 = vadd.f32 %v812, %v818
      %v821 = vpack.c.bf16 %v820, %v820
      %v822 = vld [vmem:[%s716] sm:$0xf]
      %v823 = vld [vmem:[%s716 + $0x4] sm:$0xf]
      %v826 = vunpack.c.l.b16 %v822
      %v827 = vunpack.c.l.b16 %v823
      %v828 = vpack.c.b16 %v827, %v826
      %v831 = vsel %vm790, %v821, 0
      %833 = vmatprep.subr.bf16.mxu0 0
      %834 = vmatpush1.bf16.msra.mxu0 %v828
      %835 = vmatprep.subr.bf16.mxu0 0
      %836 = vmatpush1.bf16.msra.mxu0 0
      %837 = vmatprep.subr.bf16.mxu0 0
      %838 = vmatpush1.bf16.msra.mxu0 0
      %839 = vmatprep.subr.bf16.mxu0 0
      %840 = vmatpush1.bf16.msra.mxu0 0
      %841 = vmatprep.subr.bf16.mxu0 0
      %842 = vmatpush1.bf16.msra.mxu0 0
      %843 = vmatprep.subr.bf16.mxu0 0
      %844 = vmatpush1.bf16.msra.mxu0 0
      %845 = vmatprep.subr.bf16.mxu0 0
      %846 = vmatpush1.bf16.msra.mxu0 0
      %847 = vmatprep.subr.bf16.mxu0 0
      %848 = vmatpush1.bf16.msra.mxu0 0
      %849 = vmatprep.subr.bf16.mxu0 0
      %850 = vmatpush1.bf16.msra.mxu0 0
      %851 = vmatprep.subr.bf16.mxu0 0
      %852 = vmatpush1.bf16.msra.mxu0 0
      %853 = vmatprep.subr.bf16.mxu0 0
      %854 = vmatpush1.bf16.msra.mxu0 0
      %855 = vmatprep.subr.bf16.mxu0 0
      %856 = vmatpush1.bf16.msra.mxu0 0
      %857 = vmatprep.subr.bf16.mxu0 0
      %858 = vmatpush1.bf16.msra.mxu0 0
      %859 = vmatprep.subr.bf16.mxu0 0
      %860 = vmatpush1.bf16.msra.mxu0 0
      %861 = vmatprep.subr.bf16.mxu0 0
      %862 = vmatpush1.bf16.msra.mxu0 0
      %863 = vmatprep.subr.bf16.mxu0 0
      %864 = vmatpush1.bf16.msra.mxu0 0
      %865 = vmatprep.mubr.bf16.mxu0 0
      %866 = vmatmul.mubr.bf16.gmra.mrb[0].mxu0 %v831
      %v867 = vpop.f32.mrb[0].mxu0
      %v868 = vadd.f32 0.0, %v867
      %v869 = vpop.f32.mrb[0].mxu0
      %v870 = vpop.f32.mrb[0].mxu0
      %v871 = vpop.f32.mrb[0].mxu0
      %872 = vdwg.mxu0
      %v873 = vpack.c.bf16 %v868, %v868
      %875 = vrot.lane.b32.xlu0 %v868, 120
      %v876 = vpop.permute.xlu0 %875
      %878 = vxpose.xlu0.b32.start [1/16] %v876, 128
      %879 = vxpose.xlu0.b32.cont [2/16] 0.0, 128
      %880 = vxpose.xlu0.b32.cont [3/16] 0.0, 128
      %881 = vxpose.xlu0.b32.cont [4/16] 0.0, 128
      %882 = vxpose.xlu0.b32.cont [5/16] 0.0, 128
      %883 = vxpose.xlu0.b32.cont [6/16] 0.0, 128
      %884 = vxpose.xlu0.b32.cont [7/16] 0.0, 128
      %885 = vxpose.xlu0.b32.cont [8/16] 0.0, 128
      %886 = vxpose.xlu0.b32.cont [9/16] 0.0, 128
      %887 = vxpose.xlu0.b32.cont [10/16] 0.0, 128
      %888 = vxpose.xlu0.b32.cont [11/16] 0.0, 128
      %889 = vxpose.xlu0.b32.cont [12/16] 0.0, 128
      %890 = vxpose.xlu0.b32.cont [13/16] 0.0, 128
      %891 = vxpose.xlu0.b32.cont [14/16] 0.0, 128
      %892 = vxpose.xlu0.b32.cont [15/16] 0.0, 128
      %893 = vxpose.xlu0.b32.end [16/16] 0.0, 128
      %v894 = vpop.trf.xlu0
      %v895 = vpop.trf.xlu0
      %v896 = vpop.trf.xlu0
      %v897 = vpop.trf.xlu0
      %v898 = vpop.trf.xlu0
      %v899 = vpop.trf.xlu0
      %v900 = vpop.trf.xlu0
      %v901 = vpop.trf.xlu0
      %v902 = vpop.trf.xlu0
      %v903 = vpop.trf.xlu0
      %v904 = vpop.trf.xlu0
      %v905 = vpop.trf.xlu0
      %v906 = vpop.trf.xlu0
      %v907 = vpop.trf.xlu0
      %v908 = vpop.trf.xlu0
      %v909 = vpop.trf.xlu0
      %v910 = vpack.c.bf16 %v894, %v894
      %vm911 = vcmask 31744
      %v913 = vsel %vm911, %v873, 0
      %vm915 = vcmask 1041408
      %v917 = vsel %vm915, %v910, 0
      %919 = vmatprep.subr.bf16.mxu0 0
      %920 = vmatpush1.bf16.msra.mxu0 %v917
      %921 = vmatprep.subr.bf16.mxu0 0
      %922 = vmatpush1.bf16.msra.mxu0 0
      %923 = vmatprep.subr.bf16.mxu0 0
      %924 = vmatpush1.bf16.msra.mxu0 0
      %925 = vmatprep.subr.bf16.mxu0 0
      %926 = vmatpush1.bf16.msra.mxu0 0
      %927 = vmatprep.subr.bf16.mxu0 0
      %928 = vmatpush1.bf16.msra.mxu0 0
      %929 = vmatprep.subr.bf16.mxu0 0
      %930 = vmatpush1.bf16.msra.mxu0 0
      %931 = vmatprep.subr.bf16.mxu0 0
      %932 = vmatpush1.bf16.msra.mxu0 0
      %933 = vmatprep.subr.bf16.mxu0 0
      %934 = vmatpush1.bf16.msra.mxu0 0
      %935 = vmatprep.subr.bf16.mxu0 0
      %936 = vmatpush1.bf16.msra.mxu0 0
      %937 = vmatprep.subr.bf16.mxu0 0
      %938 = vmatpush1.bf16.msra.mxu0 0
      %939 = vmatprep.subr.bf16.mxu0 0
      %940 = vmatpush1.bf16.msra.mxu0 0
      %941 = vmatprep.subr.bf16.mxu0 0
      %942 = vmatpush1.bf16.msra.mxu0 0
      %943 = vmatprep.subr.bf16.mxu0 0
      %944 = vmatpush1.bf16.msra.mxu0 0
      %945 = vmatprep.subr.bf16.mxu0 0
      %946 = vmatpush1.bf16.msra.mxu0 0
      %947 = vmatprep.subr.bf16.mxu0 0
      %948 = vmatpush1.bf16.msra.mxu0 0
      %949 = vmatprep.subr.bf16.mxu0 0
      %950 = vmatpush1.bf16.msra.mxu0 0
      %951 = vmatprep.mubr.bf16.mxu0 0
      %952 = vmatmul.mubr.bf16.gmra.mrb[0].mxu0 %v913
      %v953 = vpop.f32.mrb[0].mxu0
      %v954 = vadd.f32 0.0, %v953
      %v955 = vpop.f32.mrb[0].mxu0
      %v956 = vpop.f32.mrb[0].mxu0
      %v957 = vpop.f32.mrb[0].mxu0
      %958 = vdwg.mxu0
      %vm959 = vcmask 64512
      %v960 = vsel %vm959, %v954, -inf
      %961 = vmax.xlane.f32.xlu0 %v960
      %v962 = vpop.xlane.xlu0 %961
      %v963 = vsub.f32 %v954, %v962
      %v964 = vmul.f32 %v963, 1.442695
      %v965 = vpow.pop %v964
      %v966 = vsel %vm959, %v965, 0.0
      %967 = vadd.xlane.f32.xlu0 %v966
      %v968 = vpop.xlane.xlu0 %967
      %v969 = vrcp.pop %v968
      %v970 = vmul.f32 %v965, %v969
      %v971 = vpack.c.bf16 %v970, %v970
      %973 = vrot.lane.b32.xlu0 %v873, 112
      %v974 = vpop.permute.xlu0 %973
      %v976 = vsel %vm959, %v971, 0
      %vm978 = vcmask 1043456
      %v980 = vsel %vm978, %v974, 0
      %982 = vmatprep.subr.bf16.mxu0 0
      %983 = vmatpush1.bf16.msra.mxu0 %v980
      %984 = vmatprep.subr.bf16.mxu0 0
      %985 = vmatpush1.bf16.msra.mxu0 0
      %986 = vmatprep.subr.bf16.mxu0 0
      %987 = vmatpush1.bf16.msra.mxu0 0
      %988 = vmatprep.subr.bf16.mxu0 0
      %989 = vmatpush1.bf16.msra.mxu0 0
      %990 = vmatprep.subr.bf16.mxu0 0
      %991 = vmatpush1.bf16.msra.mxu0 0
      %992 = vmatprep.subr.bf16.mxu0 0
      %993 = vmatpush1.bf16.msra.mxu0 0
      %994 = vmatprep.subr.bf16.mxu0 0
      %995 = vmatpush1.bf16.msra.mxu0 0
      %996 = vmatprep.subr.bf16.mxu0 0
      %997 = vmatpush1.bf16.msra.mxu0 0
      %998 = vmatprep.subr.bf16.mxu0 0
      %999 = vmatpush1.bf16.msra.mxu0 0
      %1000 = vmatprep.subr.bf16.mxu0 0
      %1001 = vmatpush1.bf16.msra.mxu0 0
      %1002 = vmatprep.subr.bf16.mxu0 0
      %1003 = vmatpush1.bf16.msra.mxu0 0
      %1004 = vmatprep.subr.bf16.mxu0 0
      %1005 = vmatpush1.bf16.msra.mxu0 0
      %1006 = vmatprep.subr.bf16.mxu0 0
      %1007 = vmatpush1.bf16.msra.mxu0 0
      %1008 = vmatprep.subr.bf16.mxu0 0
      %1009 = vmatpush1.bf16.msra.mxu0 0
      %1010 = vmatprep.subr.bf16.mxu0 0
      %1011 = vmatpush1.bf16.msra.mxu0 0
      %1012 = vmatprep.subr.bf16.mxu0 0
      %1013 = vmatpush1.bf16.msra.mxu0 0
      %1014 = vmatprep.mubr.bf16.mxu0 0
      %1015 = vmatmul.mubr.bf16.gmra.mrb[0].mxu0 %v976
      %v1016 = vpop.f32.mrb[0].mxu0
      %v1017 = vadd.f32 0.0, %v1016
      %v1018 = vpop.f32.mrb[0].mxu0
      %v1019 = vpop.f32.mrb[0].mxu0
      %v1020 = vpop.f32.mrb[0].mxu0
      %1021 = vdwg.mxu0
      %1022 = vrot.lane.b32.xlu0 %v868, 116
      %v1023 = vpop.permute.xlu0 %1022
      %1025 = vxpose.xlu0.b32.start [1/16] %v1023, 128
      %1026 = vxpose.xlu0.b32.cont [2/16] 0.0, 128
      %1027 = vxpose.xlu0.b32.cont [3/16] 0.0, 128
      %1028 = vxpose.xlu0.b32.cont [4/16] 0.0, 128
      %1029 = vxpose.xlu0.b32.cont [5/16] 0.0, 128
      %1030 = vxpose.xlu0.b32.cont [6/16] 0.0, 128
      %1031 = vxpose.xlu0.b32.cont [7/16] 0.0, 128
      %1032 = vxpose.xlu0.b32.cont [8/16] 0.0, 128
      %1033 = vxpose.xlu0.b32.cont [9/16] 0.0, 128
      %1034 = vxpose.xlu0.b32.cont [10/16] 0.0, 128
      %1035 = vxpose.xlu0.b32.cont [11/16] 0.0, 128
      %1036 = vxpose.xlu0.b32.cont [12/16] 0.0, 128
      %1037 = vxpose.xlu0.b32.cont [13/16] 0.0, 128
      %1038 = vxpose.xlu0.b32.cont [14/16] 0.0, 128
      %1039 = vxpose.xlu0.b32.cont [15/16] 0.0, 128
      %1040 = vxpose.xlu0.b32.end [16/16] 0.0, 128
      %v1041 = vpop.trf.xlu0
      %v1042 = vpop.trf.xlu0
      %v1043 = vpop.trf.xlu0
      %v1044 = vpop.trf.xlu0
      %v1045 = vpop.trf.xlu0
      %v1046 = vpop.trf.xlu0
      %v1047 = vpop.trf.xlu0
      %v1048 = vpop.trf.xlu0
      %v1049 = vpop.trf.xlu0
      %v1050 = vpop.trf.xlu0
      %v1051 = vpop.trf.xlu0
      %v1052 = vpop.trf.xlu0
      %v1053 = vpop.trf.xlu0
      %v1054 = vpop.trf.xlu0
      %v1055 = vpop.trf.xlu0
      %v1056 = vpop.trf.xlu0
      %v1057 = vpack.c.bf16 %v1041, %v1041
      %1058 = vrot.lane.b32.xlu0 %v873, 124
      %v1059 = vpop.permute.xlu0 %1058
      %v1061 = vsel %vm911, %v1059, 0
      %v1064 = vsel %vm915, %v1057, 0
      %1066 = vmatprep.subr.bf16.mxu0 0
      %1067 = vmatpush1.bf16.msra.mxu0 %v1064
      %1068 = vmatprep.subr.bf16.mxu0 0
      %1069 = vmatpush1.bf16.msra.mxu0 0
      %1070 = vmatprep.subr.bf16.mxu0 0
      %1071 = vmatpush1.bf16.msra.mxu0 0
      %1072 = vmatprep.subr.bf16.mxu0 0
      %1073 = vmatpush1.bf16.msra.mxu0 0
      %1074 = vmatprep.subr.bf16.mxu0 0
      %1075 = vmatpush1.bf16.msra.mxu0 0
      %1076 = vmatprep.subr.bf16.mxu0 0
      %1077 = vmatpush1.bf16.msra.mxu0 0
      %1078 = vmatprep.subr.bf16.mxu0 0
      %1079 = vmatpush1.bf16.msra.mxu0 0
      %1080 = vmatprep.subr.bf16.mxu0 0
      %1081 = vmatpush1.bf16.msra.mxu0 0
      %1082 = vmatprep.subr.bf16.mxu0 0
      %1083 = vmatpush1.bf16.msra.mxu0 0
      %1084 = vmatprep.subr.bf16.mxu0 0
      %1085 = vmatpush1.bf16.msra.mxu0 0
      %1086 = vmatprep.subr.bf16.mxu0 0
      %1087 = vmatpush1.bf16.msra.mxu0 0
      %1088 = vmatprep.subr.bf16.mxu0 0
      %1089 = vmatpush1.bf16.msra.mxu0 0
      %1090 = vmatprep.subr.bf16.mxu0 0
      %1091 = vmatpush1.bf16.msra.mxu0 0
      %1092 = vmatprep.subr.bf16.mxu0 0
      %1093 = vmatpush1.bf16.msra.mxu0 0
      %1094 = vmatprep.subr.bf16.mxu0 0
      %1095 = vmatpush1.bf16.msra.mxu0 0
      %1096 = vmatprep.subr.bf16.mxu0 0
      %1097 = vmatpush1.bf16.msra.mxu0 0
      %1098 = vmatprep.mubr.bf16.mxu0 0
      %1099 = vmatmul.mubr.bf16.gmra.mrb[0].mxu0 %v1061
      %v1100 = vpop.f32.mrb[0].mxu0
      %v1101 = vadd.f32 0.0, %v1100
      %v1102 = vpop.f32.mrb[0].mxu0
      %v1103 = vpop.f32.mrb[0].mxu0
      %v1104 = vpop.f32.mrb[0].mxu0
      %1105 = vdwg.mxu0
      %v1106 = vsel %vm959, %v1101, -inf
      %1107 = vmax.xlane.f32.xlu0 %v1106
      %v1108 = vpop.xlane.xlu0 %1107
      %v1109 = vsub.f32 %v1101, %v1108
      %v1110 = vmul.f32 %v1109, 1.442695
      %v1111 = vpow.pop %v1110
      %v1112 = vsel %vm959, %v1111, 0.0
      %1113 = vadd.xlane.f32.xlu0 %v1112
      %v1114 = vpop.xlane.xlu0 %1113
      %v1115 = vrcp.pop %v1114
      %v1116 = vmul.f32 %v1111, %v1115
      %v1117 = vpack.c.bf16 %v1116, %v1116
      %1118 = vrot.lane.b32.xlu0 %v873, 108
      %v1119 = vpop.permute.xlu0 %1118
      %v1121 = vsel %vm959, %v1117, 0
      %v1124 = vsel %vm978, %v1119, 0
      %1126 = vmatprep.subr.bf16.mxu0 0
      %1127 = vmatpush1.bf16.msra.mxu0 %v1124
      %1128 = vmatprep.subr.bf16.mxu0 0
      %1129 = vmatpush1.bf16.msra.mxu0 0
      %1130 = vmatprep.subr.bf16.mxu0 0
      %1131 = vmatpush1.bf16.msra.mxu0 0
      %1132 = vmatprep.subr.bf16.mxu0 0
      %1133 = vmatpush1.bf16.msra.mxu0 0
      %1134 = vmatprep.subr.bf16.mxu0 0
      %1135 = vmatpush1.bf16.msra.mxu0 0
      %1136 = vmatprep.subr.bf16.mxu0 0
      %1137 = vmatpush1.bf16.msra.mxu0 0
      %1138 = vmatprep.subr.bf16.mxu0 0
      %1139 = vmatpush1.bf16.msra.mxu0 0
      %1140 = vmatprep.subr.bf16.mxu0 0
      %1141 = vmatpush1.bf16.msra.mxu0 0
      %1142 = vmatprep.subr.bf16.mxu0 0
      %1143 = vmatpush1.bf16.msra.mxu0 0
      %1144 = vmatprep.subr.bf16.mxu0 0
      %1145 = vmatpush1.bf16.msra.mxu0 0
      %1146 = vmatprep.subr.bf16.mxu0 0
      %1147 = vmatpush1.bf16.msra.mxu0 0
      %1148 = vmatprep.subr.bf16.mxu0 0
      %1149 = vmatpush1.bf16.msra.mxu0 0
      %1150 = vmatprep.subr.bf16.mxu0 0
      %1151 = vmatpush1.bf16.msra.mxu0 0
      %1152 = vmatprep.subr.bf16.mxu0 0
      %1153 = vmatpush1.bf16.msra.mxu0 0
      %1154 = vmatprep.subr.bf16.mxu0 0
      %1155 = vmatpush1.bf16.msra.mxu0 0
      %1156 = vmatprep.subr.bf16.mxu0 0
      %1157 = vmatpush1.bf16.msra.mxu0 0
      %1158 = vmatprep.mubr.bf16.mxu0 0
      %1159 = vmatmul.mubr.bf16.gmra.mrb[0].mxu0 %v1121
      %v1160 = vpop.f32.mrb[0].mxu0
      %v1161 = vadd.f32 0.0, %v1160
      %v1162 = vpop.f32.mrb[0].mxu0
      %v1163 = vpop.f32.mrb[0].mxu0
      %v1164 = vpop.f32.mrb[0].mxu0
      %1165 = vdwg.mxu0
      %1167 = vrot.lane.b32.xlu0 %v1161, 4
      %v1168 = vpop.permute.xlu0 %1167
      %v1170 = vsel %vm911, %v1017, %v1168
      %v1171 = vpack.c.bf16 %v1170, %v1170
      %v1172 = vld [vmem:[%s720] sm:$0xf]
      %v1174 = vsel %vm959, %v1171, 0
      %v1177 = vsel %vm978, %v1172, 0
      %1179 = vmatprep.subr.bf16.mxu0 0
      %1180 = vmatpush1.bf16.msra.mxu0 %v1177
      %1181 = vmatprep.subr.bf16.mxu0 0
      %1182 = vmatpush1.bf16.msra.mxu0 0
      %1183 = vmatprep.subr.bf16.mxu0 0
      %1184 = vmatpush1.bf16.msra.mxu0 0
      %1185 = vmatprep.subr.bf16.mxu0 0
      %1186 = vmatpush1.bf16.msra.mxu0 0
      %1187 = vmatprep.subr.bf16.mxu0 0
      %1188 = vmatpush1.bf16.msra.mxu0 0
      %1189 = vmatprep.subr.bf16.mxu0 0
      %1190 = vmatpush1.bf16.msra.mxu0 0
      %1191 = vmatprep.subr.bf16.mxu0 0
      %1192 = vmatpush1.bf16.msra.mxu0 0
      %1193 = vmatprep.subr.bf16.mxu0 0
      %1194 = vmatpush1.bf16.msra.mxu0 0
      %1195 = vmatprep.subr.bf16.mxu0 0
      %1196 = vmatpush1.bf16.msra.mxu0 0
      %1197 = vmatprep.subr.bf16.mxu0 0
      %1198 = vmatpush1.bf16.msra.mxu0 0
      %1199 = vmatprep.subr.bf16.mxu0 0
      %1200 = vmatpush1.bf16.msra.mxu0 0
      %1201 = vmatprep.subr.bf16.mxu0 0
      %1202 = vmatpush1.bf16.msra.mxu0 0
      %1203 = vmatprep.subr.bf16.mxu0 0
      %1204 = vmatpush1.bf16.msra.mxu0 0
      %1205 = vmatprep.subr.bf16.mxu0 0
      %1206 = vmatpush1.bf16.msra.mxu0 0
      %1207 = vmatprep.subr.bf16.mxu0 0
      %1208 = vmatpush1.bf16.msra.mxu0 0
      %1209 = vmatprep.subr.bf16.mxu0 0
      %1210 = vmatpush1.bf16.msra.mxu0 0
      %1211 = vmatprep.mubr.bf16.mxu0 0
      %1212 = vmatmul.mubr.bf16.gmra.mrb[0].mxu0 %v1174
      %v1213 = vpop.f32.mrb[0].mxu0
      %v1214 = vadd.f32 0.0, %v1213
      %v1215 = vpop.f32.mrb[0].mxu0
      %v1216 = vpop.f32.mrb[0].mxu0
      %v1217 = vpop.f32.mrb[0].mxu0
      %1218 = vdwg.mxu0
      %v1219 = vadd.f32 %v789, %v1214
      %v1220 = vld [vmem:[%s723] sm:$0x1]
      %v1222 = vlaneseq
      %v1223 = vshrl.u32 %v1222, 7
      %v1224 = vsub.s32 0, %v1223
      %v1225 = vrot.slane %v1220, %v1224
      %v1227 = vadd.f32 %v1219, %v1225
      %v1228 = vsel %vm790, %v1227, 0.0
      %1229 = vadd.xlane.f32.xlu0 %v1228
      %v1230 = vpop.xlane.xlu0 %1229
      %v1231 = vmul.f32 %v1230, %v794
      %v1232 = vsub.f32 %v1227, %v1231
      %v1233 = vmul.f32 %v1232, %v1232
      %v1234 = vsel %vm790, %v1233, 0.0
      %1235 = vadd.xlane.f32.xlu0 %v1234
      %v1236 = vpop.xlane.xlu0 %1235
      %v1237 = vmul.f32 %v1236, %v794
      %v1238 = vadd.f32 %v1237, 1e-05
      %v1239 = vrsqrt.pop %v1238
      %v1240 = vmul.f32 %v1232, %v1239
      %v1241 = vld [vmem:[%s726] sm:$0x1]
      %v1243 = vlaneseq
      %v1244 = vshrl.u32 %v1243, 7
      %v1245 = vsub.s32 0, %v1244
      %v1246 = vrot.slane %v1241, %v1245
      %v1248 = vmul.f32 %v1240, %v1246
      %v1249 = vld [vmem:[%s729] sm:$0x1]
      %v1251 = vlaneseq
      %v1252 = vshrl.u32 %v1251, 7
      %v1253 = vsub.s32 0, %v1252
      %v1254 = vrot.slane %v1249, %v1253
      %v1256 = vadd.f32 %v1248, %v1254
      %v1257 = vpack.c.bf16 %v1256, %v1256
      %v1258 = vld [vmem:[%s734] sm:$0xf]
      %v1259 = vld [vmem:[%s734 + $0x4] sm:$0xf]
      %v1260 = vld [vmem:[%s737] sm:$0x1]
      %v1262 = vlaneseq
      %v1263 = vshrl.u32 %v1262, 7
      %v1264 = vsub.s32 0, %v1263
      %v1265 = vrot.slane %v1260, %v1264
      %v1269 = vunpack.c.l.b16 %v1258
      %v1270 = vunpack.c.l.b16 %v1259
      %v1271 = vpack.c.b16 %v1270, %v1269
      %v1274 = vsel %vm790, %v1257, 0
      %1276 = vmatprep.subr.bf16.mxu0 0
      %1277 = vmatpush1.bf16.msra.mxu0 %v1271
      %1278 = vmatprep.subr.bf16.mxu0 0
      %1279 = vmatpush1.bf16.msra.mxu0 0
      %1280 = vmatprep.subr.bf16.mxu0 0
      %1281 = vmatpush1.bf16.msra.mxu0 0
      %1282 = vmatprep.subr.bf16.mxu0 0
      %1283 = vmatpush1.bf16.msra.mxu0 0
      %1284 = vmatprep.subr.bf16.mxu0 0
      %1285 = vmatpush1.bf16.msra.mxu0 0
      %1286 = vmatprep.subr.bf16.mxu0 0
      %1287 = vmatpush1.bf16.msra.mxu0 0
      %1288 = vmatprep.subr.bf16.mxu0 0
      %1289 = vmatpush1.bf16.msra.mxu0 0
      %1290 = vmatprep.subr.bf16.mxu0 0
      %1291 = vmatpush1.bf16.msra.mxu0 0
      %1292 = vmatprep.subr.bf16.mxu0 0
      %1293 = vmatpush1.bf16.msra.mxu0 0
      %1294 = vmatprep.subr.bf16.mxu0 0
      %1295 = vmatpush1.bf16.msra.mxu0 0
      %1296 = vmatprep.subr.bf16.mxu0 0
      %1297 = vmatpush1.bf16.msra.mxu0 0
      %1298 = vmatprep.subr.bf16.mxu0 0
      %1299 = vmatpush1.bf16.msra.mxu0 0
      %1300 = vmatprep.subr.bf16.mxu0 0
      %1301 = vmatpush1.bf16.msra.mxu0 0
      %1302 = vmatprep.subr.bf16.mxu0 0
      %1303 = vmatpush1.bf16.msra.mxu0 0
      %1304 = vmatprep.subr.bf16.mxu0 0
      %1305 = vmatpush1.bf16.msra.mxu0 0
      %1306 = vmatprep.subr.bf16.mxu0 0
      %1307 = vmatpush1.bf16.msra.mxu0 0
      %1308 = vmatprep.mubr.bf16.mxu0 0
      %1309 = vmatmul.mubr.bf16.gmra.mrb[0].mxu0 %v1274
      %v1310 = vpop.f32.mrb[0].mxu0
      %v1311 = vadd.f32 %v1265, %v1310
      %v1312 = vpop.f32.mrb[0].mxu0
      %v1313 = vpop.f32.mrb[0].mxu0
      %v1314 = vpop.f32.mrb[0].mxu0
      %1315 = vdwg.mxu0
      %v1316 = vmax.f32 %v1311, 0.0
      %v1317 = vpack.c.bf16 %v1316, %v1316
      %v1318 = vld [vmem:[%s742] sm:$0xf]
      %v1319 = vld [vmem:[%s742 + $0x4] sm:$0xf]
      %v1320 = vld [vmem:[%s742 + $0x8] sm:$0xf]
      %v1321 = vld [vmem:[%s742 + $0xc] sm:$0xf]
      %v1322 = vld [vmem:[%s742 + $0x10] sm:$0xf]
      %v1323 = vld [vmem:[%s742 + $0x14] sm:$0xf]
      %v1324 = vld [vmem:[%s742 + $0x18] sm:$0xf]
      %v1325 = vld [vmem:[%s742 + $0x1c] sm:$0xf]
      %v1326 = vld [vmem:[%s745] sm:$0x1]
      %v1328 = vlaneseq
      %v1329 = vshrl.u32 %v1328, 7
      %v1330 = vsub.s32 0, %v1329
      %v1331 = vrot.slane %v1326, %v1330
      %v1341 = vunpack.c.l.b16 %v1318
      %v1342 = vunpack.c.l.b16 %v1319
      %v1343 = vunpack.c.l.b16 %v1320
      %v1344 = vunpack.c.l.b16 %v1321
      %v1345 = vunpack.c.l.b16 %v1322
      %v1346 = vunpack.c.l.b16 %v1323
      %v1347 = vunpack.c.l.b16 %v1324
      %v1348 = vunpack.c.l.b16 %v1325
      %v1349 = vpack.c.b16 %v1342, %v1341
      %v1350 = vpack.c.b16 %v1344, %v1343
      %v1351 = vpack.c.b16 %v1346, %v1345
      %v1352 = vpack.c.b16 %v1348, %v1347
      %vm1357 = vcmask 523264
      %v1359 = vsel %vm1357, %v1317, 0
      %1361 = vmatprep.subr.bf16.mxu0 0
      %1362 = vmatpush1.bf16.msra.mxu0 %v1349
      %1363 = vmatprep.subr.bf16.mxu0 0
      %1364 = vmatpush1.bf16.msra.mxu0 %v1350
      %1365 = vmatprep.subr.bf16.mxu0 0
      %1366 = vmatpush1.bf16.msra.mxu0 %v1351
      %1367 = vmatprep.subr.bf16.mxu0 0
      %1368 = vmatpush1.bf16.msra.mxu0 %v1352
      %1369 = vmatprep.subr.bf16.mxu0 0
      %1370 = vmatpush1.bf16.msra.mxu0 0
      %1371 = vmatprep.subr.bf16.mxu0 0
      %1372 = vmatpush1.bf16.msra.mxu0 0
      %1373 = vmatprep.subr.bf16.mxu0 0
      %1374 = vmatpush1.bf16.msra.mxu0 0
      %1375 = vmatprep.subr.bf16.mxu0 0
      %1376 = vmatpush1.bf16.msra.mxu0 0
      %1377 = vmatprep.subr.bf16.mxu0 0
      %1378 = vmatpush1.bf16.msra.mxu0 0
      %1379 = vmatprep.subr.bf16.mxu0 0
      %1380 = vmatpush1.bf16.msra.mxu0 0
      %1381 = vmatprep.subr.bf16.mxu0 0
      %1382 = vmatpush1.bf16.msra.mxu0 0
      %1383 = vmatprep.subr.bf16.mxu0 0
      %1384 = vmatpush1.bf16.msra.mxu0 0
      %1385 = vmatprep.subr.bf16.mxu0 0
      %1386 = vmatpush1.bf16.msra.mxu0 0
      %1387 = vmatprep.subr.bf16.mxu0 0
      %1388 = vmatpush1.bf16.msra.mxu0 0
      %1389 = vmatprep.subr.bf16.mxu0 0
      %1390 = vmatpush1.bf16.msra.mxu0 0
      %1391 = vmatprep.subr.bf16.mxu0 0
      %1392 = vmatpush1.bf16.msra.mxu0 0
      %1393 = vmatprep.mubr.bf16.mxu0 0
      %1394 = vmatmul.mubr.bf16.gmra.mrb[0].mxu0 %v1359
      %v1395 = vpop.f32.mrb[0].mxu0
      %v1396 = vadd.f32 %v1331, %v1395
      %v1397 = vpop.f32.mrb[0].mxu0
      %v1398 = vpop.f32.mrb[0].mxu0
      %v1399 = vpop.f32.mrb[0].mxu0
      %1400 = vdwg.mxu0
      %v1401 = vadd.f32 %v1227, %v1396
      %1402 = vst.msk [vmem:[#allocation2] sm:$0xff] %vm790, %v1401
      %p1403 = scmp.eq.s32.totalorder %s35, 1
      // Predicated region
      $region97: #{asrf_with_brt_forward.5} parent=87 // pred_check
        %p1404 = pneg %p1403
      $region98: #{asrf_with_brt_forward.5} parent=87 // pred_check_branch
        %1406 = sbr.rel (%p1404) target = $region100
      $region99: #{asrf_with_brt_forward.5} parent=87 // pred_region
        %v1407 = vld [vmem:[%s705] sm:$0xff]
        %1409 = vset.pattern.permute.xlu0 0
        %1410 = vperm.xlu0 %1409, %v1407
        %v1411 = vpop.permute.xlu0 %1410
        %v1413 = vmul.f32 %v1401, %v1411
        %v1414 = vpack.c.bf16 %v1413, %v1413
        %v1415 = vld [vmem:[%s15] sm:$0xf]
        %v1416 = vld [vmem:[%s15 + $0x4] sm:$0xf]
        %v1417 = vld [vmem:[#allocation3] sm:$0x1]
        %v1419 = vlaneseq
        %v1420 = vshrl.u32 %v1419, 7
        %v1421 = vsub.s32 0, %v1420
        %v1422 = vrot.slane %v1417, %v1421
        %v1426 = vunpack.c.l.b16 %v1415
        %v1427 = vunpack.c.l.b16 %v1416
        %v1428 = vpack.c.b16 %v1427, %v1426
        %v1431 = vsel %vm790, %v1414, 0
        %1433 = vmatprep.subr.bf16.mxu0 0
        %1434 = vmatpush1.bf16.msra.mxu0 %v1428
        %1435 = vmatprep.subr.bf16.mxu0 0
        %1436 = vmatpush1.bf16.msra.mxu0 0
        %1437 = vmatprep.subr.bf16.mxu0 0
        %1438 = vmatpush1.bf16.msra.mxu0 0
        %1439 = vmatprep.subr.bf16.mxu0 0
        %1440 = vmatpush1.bf16.msra.mxu0 0
        %1441 = vmatprep.subr.bf16.mxu0 0
        %1442 = vmatpush1.bf16.msra.mxu0 0
        %1443 = vmatprep.subr.bf16.mxu0 0
        %1444 = vmatpush1.bf16.msra.mxu0 0
        %1445 = vmatprep.subr.bf16.mxu0 0
        %1446 = vmatpush1.bf16.msra.mxu0 0
        %1447 = vmatprep.subr.bf16.mxu0 0
        %1448 = vmatpush1.bf16.msra.mxu0 0
        %1449 = vmatprep.subr.bf16.mxu0 0
        %1450 = vmatpush1.bf16.msra.mxu0 0
        %1451 = vmatprep.subr.bf16.mxu0 0
        %1452 = vmatpush1.bf16.msra.mxu0 0
        %1453 = vmatprep.subr.bf16.mxu0 0
        %1454 = vmatpush1.bf16.msra.mxu0 0
        %1455 = vmatprep.subr.bf16.mxu0 0
        %1456 = vmatpush1.bf16.msra.mxu0 0
        %1457 = vmatprep.subr.bf16.mxu0 0
        %1458 = vmatpush1.bf16.msra.mxu0 0
        %1459 = vmatprep.subr.bf16.mxu0 0
        %1460 = vmatpush1.bf16.msra.mxu0 0
        %1461 = vmatprep.subr.bf16.mxu0 0
        %1462 = vmatpush1.bf16.msra.mxu0 0
        %1463 = vmatprep.subr.bf16.mxu0 0
        %1464 = vmatpush1.bf16.msra.mxu0 0
        %1465 = vmatprep.mubr.bf16.mxu0 0
        %1466 = vmatmul.mubr.bf16.gmra.mrb[0].mxu0 %v1431
        %v1467 = vpop.f32.mrb[0].mxu0
        %v1468 = vadd.f32 %v1422, %v1467
        %v1469 = vpop.f32.mrb[0].mxu0
        %v1470 = vpop.f32.mrb[0].mxu0
        %v1471 = vpop.f32.mrb[0].mxu0
        %1472 = vdwg.mxu0
        %vm1473 = vcmask 7168
        %1474 = vst.msk [vmem:[%s749] sm:$0xff] %vm1473, %v1468
      $region100: #{asrf_with_brt_forward.5} parent=87 // pred_fallthru
        _
      %p1475 = scmp.lt.s32.totalorder %s34, 1
      %s1476 = scalar_select %p1475, %s34, 1
      %s1477 = smul.addr %s1476, 8
      %s1478 = scalar_lea.vmem %s17, %s1477
      // Predicated region
      $region101: #{asrf_with_brt_forward.5} parent=87 // pred_check
        %p1479 = pneg %p482
      $region102: #{asrf_with_brt_forward.5} parent=87 // pred_check_branch
        %1481 = sbr.rel (%p1479) target = $region104
      $region103: #{asrf_with_brt_forward.5} parent=87 // pred_region
        _
      $region104: #{asrf_with_brt_forward.5} parent=87 // pred_fallthru
        _
    $region88: #{asrf_with_brt_forward.5} parent=5 // pred_fallthru
      _
    %p1482 = scmp.le.s32.totalorder 2, %s25
    // Predicated region
    $region105: #{asrf_with_brt_forward.5} parent=5 // pred_check
      %p1483 = pneg %p1482
    $region106: #{asrf_with_brt_forward.5} parent=5 // pred_check_branch
      %1485 = sbr.rel (%p1483) target = $region108
    $region107: #{asrf_with_brt_forward.5} parent=5 // pred_region
      %s1486 = ssub.s32 %s25, 2
      // Predicated region
      $region109: #{asrf_with_brt_forward.5} parent=107 // pred_check
        %p1487 = pneg %p488
      $region110: #{asrf_with_brt_forward.5} parent=107 // pred_check_branch
        %1489 = sbr.rel (%p1487) target = $region112
      $region111: #{asrf_with_brt_forward.5} parent=107 // pred_region
        %p1490 = scmp.lt.s32.totalorder %s36, 1
        %s1491 = scalar_select %p1490, %s36, 1
        %s1492 = smul.addr %s1491, 8
        %s1493 = scalar_lea.vmem %s17, %s1492
      $region112: #{asrf_with_brt_forward.5} parent=107 // pred_fallthru
        _
    $region108: #{asrf_with_brt_forward.5} parent=5 // pred_fallthru
      _
  $region6: #{asrf_with_brt_forward.5} parent=0 // loop_footer
    %s29 = sadd.s32 1, %s25
  $region7: #{asrf_with_brt_forward.5} parent=0 // loop_footer_branch
    %24 = sbr.rel target = $region3
  $region8: #{asrf_with_brt_forward.5} parent=0 // loop_exit
    _

// kernel: asrf_with_brt_forward.4
$region0: #{asrf_with_brt_forward.4}
  #allocation0 [shape = 'u32[]', space=smem, size = 0x4, offset = 0x4, fixed_abs, tag = 'smem constant byte address 0x4 - core index']
  #allocation1 [shape = 'u32[144,128]{1,0:T(1,128)}', space=vmem, size = 0x12000, scoped, tag = 'internal scratch']
  #allocation2 [shape = 'f32[8,16]{1,0:T(8,128)}', space=vmem, size = 0x1000, scoped, tag = 'scratch operand']
  %s0 = inlined_call_operand.vmem [shape: f32[16,8], index: 0, kind: input, shape index: {}]
  %s1 = inlined_call_operand.vmem [shape: f32[16,1], index: 1, kind: input, shape index: {}]
  %s2 = inlined_call_operand.vmem [shape: bf16[8,16], index: 2, kind: input, shape index: {}]
  %s3 = inlined_call_operand.vmem [shape: f32[1,16], index: 3, kind: input, shape index: {}]
  %s4 = inlined_call_operand.vmem [shape: f32[2,1,16], index: 4, kind: input, shape index: {}]
  %s5 = inlined_call_operand.vmem [shape: f32[2,1,16], index: 5, kind: input, shape index: {}]
  %s6 = inlined_call_operand.vmem [shape: bf16[2,16,24], index: 6, kind: input, shape index: {}]
  %s7 = inlined_call_operand.vmem [shape: bf16[2,8,16], index: 7, kind: input, shape index: {}]
  %s8 = inlined_call_operand.vmem [shape: f32[2,1,16], index: 8, kind: input, shape index: {}]
  %s9 = inlined_call_operand.vmem [shape: f32[2,1,16], index: 9, kind: input, shape index: {}]
  %s10 = inlined_call_operand.vmem [shape: f32[2,1,16], index: 10, kind: input, shape index: {}]
  %s11 = inlined_call_operand.vmem [shape: bf16[2,16,64], index: 11, kind: input, shape index: {}]
  %s12 = inlined_call_operand.vmem [shape: f32[2,1,64], index: 12, kind: input, shape index: {}]
  %s13 = inlined_call_operand.vmem [shape: bf16[2,64,16], index: 13, kind: input, shape index: {}]
  %s14 = inlined_call_operand.vmem [shape: f32[2,1,16], index: 14, kind: input, shape index: {}]
  %s15 = inlined_call_operand.vmem [shape: bf16[16,8], index: 15, kind: input, shape index: {}]
  %s16 = inlined_call_operand.vmem [shape: f32[1,8], index: 16, kind: input, shape index: {}]
  %s17 = inlined_call_operand.vmem [shape: f32[16,8], index: 17, kind: output, shape index: {}]
  %s18 = sld [smem:[#allocation0]]
  $region113: #{asrf_with_brt_forward.4} parent=0
    _
  %s20 = ssub.s32 1, %s18
  %s21 = scalar_select 0, %s20, %s18
  loop: start=0, step=1, limit=6
  $region2: #{asrf_with_brt_forward.4} parent=0 // loop_pre_header
    _
  $region3: #{asrf_with_brt_forward.4} parent=0 // loop_header
    %s23 = sphi 0, %s27
    %p24 = scmp.ge.s32.totalorder %s23, 6
    %s30 = sphi 0, %s42
    %s31 = sphi 0, %s38
    %s32 = sphi 0, %s30
    %s33 = sphi 0, %s31
    %s34 = sphi 0, %s32
    %s35 = sphi 0, %s33
    %s45 = sphi 0, %s47
    %s48 = sphi 0, %s45
    %s49 = sphi 0, %s48
    %s65 = sphi 0, %s49
    %s71 = sphi 0, %s73
    %s74 = sphi 0, %s71
    %s75 = sphi 0, %s74
    %s91 = sphi 0, %s75
    %s95 = sphi 0, %s95
    %s97 = sphi 0, %s95
    %s98 = sphi 0, %s97
    %s112 = sphi 0, %s98
    %s116 = sphi 0, %s116
    %s118 = sphi 0, %s116
    %s119 = sphi 0, %s118
    %s133 = sphi 0, %s119
    %s139 = sphi 0, %s141
    %s142 = sphi 0, %s139
    %s143 = sphi 0, %s142
    %s159 = sphi 0, %s143
    %s165 = sphi 0, %s167
    %s168 = sphi 0, %s165
    %s169 = sphi 0, %s168
    %s185 = sphi 0, %s169
    %s191 = sphi 0, %s193
    %s194 = sphi 0, %s191
    %s195 = sphi 0, %s194
    %s211 = sphi 0, %s195
    %s217 = sphi 0, %s219
    %s220 = sphi 0, %s217
    %s221 = sphi 0, %s220
    %s237 = sphi 0, %s221
    %s243 = sphi 0, %s245
    %s246 = sphi 0, %s243
    %s247 = sphi 0, %s246
    %s263 = sphi 0, %s247
    %s269 = sphi 0, %s271
    %s272 = sphi 0, %s269
    %s273 = sphi 0, %s272
    %s289 = sphi 0, %s273
    %s295 = sphi 0, %s297
    %s298 = sphi 0, %s295
    %s299 = sphi 0, %s298
    %s315 = sphi 0, %s299
    %s321 = sphi 0, %s323
    %s324 = sphi 0, %s321
    %s325 = sphi 0, %s324
    %s341 = sphi 0, %s325
    %s347 = sphi 0, %s349
    %s350 = sphi 0, %s347
    %s351 = sphi 0, %s350
    %s367 = sphi 0, %s351
    %s373 = sphi 0, %s375
    %s376 = sphi 0, %s373
    %s377 = sphi 0, %s376
    %s393 = sphi 0, %s377
    %s399 = sphi 0, %s401
    %s402 = sphi 0, %s399
    %s403 = sphi 0, %s402
    %s419 = sphi 0, %s403
    %s423 = sphi 0, %s423
    %s425 = sphi 0, %s423
    %s426 = sphi 0, %s425
    %s440 = sphi 0, %s426
    %s444 = sphi 0, %s444
    %s446 = sphi 0, %s444
    %s447 = sphi 0, %s446
    %s461 = sphi 0, %s447
    %s467 = sphi 0, %s469
    %s470 = sphi 0, %s467
    %s471 = sphi 0, %s470
    %s487 = sphi 0, %s471
  $region4: #{asrf_with_brt_forward.4} parent=0 // loop_header_branch
    %26 = sbr.rel (%p24) target = $region8
  $region5: #{asrf_with_brt_forward.4} parent=0 // loop_body
    %s28 = ssub.s32 %s23, 1
    %s29 = ssub.s32 %s23, 2
    %s36 = sadd.s32 1, %s31
    %p37 = scmp.ge.s32.totalorder %s36, 2
    %s38 = scalar_select %p37, 0, %s36
    %s39 = sadd.s32 1, %s30
    %s40 = scalar_select %p37, %s39, %s30
    %p41 = scmp.ge.s32.totalorder %s40, 2
    %s42 = scalar_select %p41, 0, %s40
    %s43 = ssub.s32 %s30, %s42
    %p44 = scmp.eq.s32.totalorder %s43, 0
    %s46 = sadd.s32 %s45, 1
    %s47 = scalar_select %p44, %s45, %s46
    %p50 = pneg %p44
    %p51 = scmp.eq.s32.totalorder %s23, 3
    %p52 = por %p50, %p51
    %p53 = scmp.ne.s32.totalorder %s45, %s48
    %p54 = scmp.eq.s32.totalorder %s23, 0
    %p55 = por %p53, %p54
    %p56 = scmp.ne.s32.totalorder %s45, %s48
    %p57 = scmp.eq.s32.totalorder %s28, 3
    %p58 = por %p56, %p57
    %p59 = scmp.ne.s32.totalorder %s48, %s49
    %p60 = scmp.eq.s32.totalorder %s28, 0
    %p61 = por %p59, %p60
    %p62 = scmp.ne.s32.totalorder %s48, %s49
    %p63 = scmp.eq.s32.totalorder %s29, 3
    %p64 = por %p62, %p63
    %p66 = scmp.ne.s32.totalorder %s49, %s65
    %p67 = scmp.eq.s32.totalorder %s29, 0
    %p68 = por %p66, %p67
    %s69 = ssub.s32 %s30, %s42
    %p70 = scmp.eq.s32.totalorder %s69, 0
    %s72 = sadd.s32 %s71, 1
    %s73 = scalar_select %p70, %s71, %s72
    %p76 = pneg %p70
    %p77 = scmp.eq.s32.totalorder %s23, 3
    %p78 = por %p76, %p77
    %p79 = scmp.ne.s32.totalorder %s71, %s74
    %p80 = scmp.eq.s32.totalorder %s23, 0
    %p81 = por %p79, %p80
    %p82 = scmp.ne.s32.totalorder %s71, %s74
    %p83 = scmp.eq.s32.totalorder %s28, 3
    %p84 = por %p82, %p83
    %p85 = scmp.ne.s32.totalorder %s74, %s75
    %p86 = scmp.eq.s32.totalorder %s28, 0
    %p87 = por %p85, %p86
    %p88 = scmp.ne.s32.totalorder %s74, %s75
    %p89 = scmp.eq.s32.totalorder %s29, 3
    %p90 = por %p88, %p89
    %p92 = scmp.ne.s32.totalorder %s75, %s91
    %p93 = scmp.eq.s32.totalorder %s29, 0
    %p94 = por %p92, %p93
    %s96 = sadd.s32 %s95, 1
    %p99 = scmp.eq.s32.totalorder %s23, 3
    %p100 = scmp.ne.s32.totalorder %s95, %s97
    %p101 = scmp.eq.s32.totalorder %s23, 0
    %p102 = por %p100, %p101
    %p103 = scmp.ne.s32.totalorder %s95, %s97
    %p104 = scmp.eq.s32.totalorder %s28, 3
    %p105 = por %p103, %p104
    %p106 = scmp.ne.s32.totalorder %s97, %s98
    %p107 = scmp.eq.s32.totalorder %s28, 0
    %p108 = por %p106, %p107
    %p109 = scmp.ne.s32.totalorder %s97, %s98
    %p110 = scmp.eq.s32.totalorder %s29, 3
    %p111 = por %p109, %p110
    %p113 = scmp.ne.s32.totalorder %s98, %s112
    %p114 = scmp.eq.s32.totalorder %s29, 0
    %p115 = por %p113, %p114
    %s117 = sadd.s32 %s116, 1
    %p120 = scmp.eq.s32.totalorder %s23, 3
    %p121 = scmp.ne.s32.totalorder %s116, %s118
    %p122 = scmp.eq.s32.totalorder %s23, 0
    %p123 = por %p121, %p122
    %p124 = scmp.ne.s32.totalorder %s116, %s118
    %p125 = scmp.eq.s32.totalorder %s28, 3
    %p126 = por %p124, %p125
    %p127 = scmp.ne.s32.totalorder %s118, %s119
    %p128 = scmp.eq.s32.totalorder %s28, 0
    %p129 = por %p127, %p128
    %p130 = scmp.ne.s32.totalorder %s118, %s119
    %p131 = scmp.eq.s32.totalorder %s29, 3
    %p132 = por %p130, %p131
    %p134 = scmp.ne.s32.totalorder %s119, %s133
    %p135 = scmp.eq.s32.totalorder %s29, 0
    %p136 = por %p134, %p135
    %s137 = ssub.s32 %s31, %s38
    %p138 = scmp.eq.s32.totalorder %s137, 0
    %s140 = sadd.s32 %s139, 1
    %s141 = scalar_select %p138, %s139, %s140
    %p144 = pneg %p138
    %p145 = scmp.eq.s32.totalorder %s23, 3
    %p146 = por %p144, %p145
    %p147 = scmp.ne.s32.totalorder %s139, %s142
    %p148 = scmp.eq.s32.totalorder %s23, 0
    %p149 = por %p147, %p148
    %p150 = scmp.ne.s32.totalorder %s139, %s142
    %p151 = scmp.eq.s32.totalorder %s28, 3
    %p152 = por %p150, %p151
    %p153 = scmp.ne.s32.totalorder %s142, %s143
    %p154 = scmp.eq.s32.totalorder %s28, 0
    %p155 = por %p153, %p154
    %p156 = scmp.ne.s32.totalorder %s142, %s143
    %p157 = scmp.eq.s32.totalorder %s29, 3
    %p158 = por %p156, %p157
    %p160 = scmp.ne.s32.totalorder %s143, %s159
    %p161 = scmp.eq.s32.totalorder %s29, 0
    %p162 = por %p160, %p161
    %s163 = ssub.s32 %s31, %s38
    %p164 = scmp.eq.s32.totalorder %s163, 0
    %s166 = sadd.s32 %s165, 1
    %s167 = scalar_select %p164, %s165, %s166
    %p170 = pneg %p164
    %p171 = scmp.eq.s32.totalorder %s23, 3
    %p172 = por %p170, %p171
    %p173 = scmp.ne.s32.totalorder %s165, %s168
    %p174 = scmp.eq.s32.totalorder %s23, 0
    %p175 = por %p173, %p174
    %p176 = scmp.ne.s32.totalorder %s165, %s168
    %p177 = scmp.eq.s32.totalorder %s28, 3
    %p178 = por %p176, %p177
    %p179 = scmp.ne.s32.totalorder %s168, %s169
    %p180 = scmp.eq.s32.totalorder %s28, 0
    %p181 = por %p179, %p180
    %p182 = scmp.ne.s32.totalorder %s168, %s169
    %p183 = scmp.eq.s32.totalorder %s29, 3
    %p184 = por %p182, %p183
    %p186 = scmp.ne.s32.totalorder %s169, %s185
    %p187 = scmp.eq.s32.totalorder %s29, 0
    %p188 = por %p186, %p187
    %s189 = ssub.s32 %s31, %s38
    %p190 = scmp.eq.s32.totalorder %s189, 0
    %s192 = sadd.s32 %s191, 1
    %s193 = scalar_select %p190, %s191, %s192
    %p196 = pneg %p190
    %p197 = scmp.eq.s32.totalorder %s23, 3
    %p198 = por %p196, %p197
    %p199 = scmp.ne.s32.totalorder %s191, %s194
    %p200 = scmp.eq.s32.totalorder %s23, 0
    %p201 = por %p199, %p200
    %p202 = scmp.ne.s32.totalorder %s191, %s194
    %p203 = scmp.eq.s32.totalorder %s28, 3
    %p204 = por %p202, %p203
    %p205 = scmp.ne.s32.totalorder %s194, %s195
    %p206 = scmp.eq.s32.totalorder %s28, 0
    %p207 = por %p205, %p206
    %p208 = scmp.ne.s32.totalorder %s194, %s195
    %p209 = scmp.eq.s32.totalorder %s29, 3
    %p210 = por %p208, %p209
    %p212 = scmp.ne.s32.totalorder %s195, %s211
    %p213 = scmp.eq.s32.totalorder %s29, 0
    %p214 = por %p212, %p213
    %s215 = ssub.s32 %s31, %s38
    %p216 = scmp.eq.s32.totalorder %s215, 0
    %s218 = sadd.s32 %s217, 1
    %s219 = scalar_select %p216, %s217, %s218
    %p222 = pneg %p216
    %p223 = scmp.eq.s32.totalorder %s23, 3
    %p224 = por %p222, %p223
    %p225 = scmp.ne.s32.totalorder %s217, %s220
    %p226 = scmp.eq.s32.totalorder %s23, 0
    %p227 = por %p225, %p226
    %p228 = scmp.ne.s32.totalorder %s217, %s220
    %p229 = scmp.eq.s32.totalorder %s28, 3
    %p230 = por %p228, %p229
    %p231 = scmp.ne.s32.totalorder %s220, %s221
    %p232 = scmp.eq.s32.totalorder %s28, 0
    %p233 = por %p231, %p232
    %p234 = scmp.ne.s32.totalorder %s220, %s221
    %p235 = scmp.eq.s32.totalorder %s29, 3
    %p236 = por %p234, %p235
    %p238 = scmp.ne.s32.totalorder %s221, %s237
    %p239 = scmp.eq.s32.totalorder %s29, 0
    %p240 = por %p238, %p239
    %s241 = ssub.s32 %s31, %s38
    %p242 = scmp.eq.s32.totalorder %s241, 0
    %s244 = sadd.s32 %s243, 1
    %s245 = scalar_select %p242, %s243, %s244
    %p248 = pneg %p242
    %p249 = scmp.eq.s32.totalorder %s23, 3
    %p250 = por %p248, %p249
    %p251 = scmp.ne.s32.totalorder %s243, %s246
    %p252 = scmp.eq.s32.totalorder %s23, 0
    %p253 = por %p251, %p252
    %p254 = scmp.ne.s32.totalorder %s243, %s246
    %p255 = scmp.eq.s32.totalorder %s28, 3
    %p256 = por %p254, %p255
    %p257 = scmp.ne.s32.totalorder %s246, %s247
    %p258 = scmp.eq.s32.totalorder %s28, 0
    %p259 = por %p257, %p258
    %p260 = scmp.ne.s32.totalorder %s246, %s247
    %p261 = scmp.eq.s32.totalorder %s29, 3
    %p262 = por %p260, %p261
    %p264 = scmp.ne.s32.totalorder %s247, %s263
    %p265 = scmp.eq.s32.totalorder %s29, 0
    %p266 = por %p264, %p265
    %s267 = ssub.s32 %s31, %s38
    %p268 = scmp.eq.s32.totalorder %s267, 0
    %s270 = sadd.s32 %s269, 1
    %s271 = scalar_select %p268, %s269, %s270
    %p274 = pneg %p268
    %p275 = scmp.eq.s32.totalorder %s23, 3
    %p276 = por %p274, %p275
    %p277 = scmp.ne.s32.totalorder %s269, %s272
    %p278 = scmp.eq.s32.totalorder %s23, 0
    %p279 = por %p277, %p278
    %p280 = scmp.ne.s32.totalorder %s269, %s272
    %p281 = scmp.eq.s32.totalorder %s28, 3
    %p282 = por %p280, %p281
    %p283 = scmp.ne.s32.totalorder %s272, %s273
    %p284 = scmp.eq.s32.totalorder %s28, 0
    %p285 = por %p283, %p284
    %p286 = scmp.ne.s32.totalorder %s272, %s273
    %p287 = scmp.eq.s32.totalorder %s29, 3
    %p288 = por %p286, %p287
    %p290 = scmp.ne.s32.totalorder %s273, %s289
    %p291 = scmp.eq.s32.totalorder %s29, 0
    %p292 = por %p290, %p291
    %s293 = ssub.s32 %s31, %s38
    %p294 = scmp.eq.s32.totalorder %s293, 0
    %s296 = sadd.s32 %s295, 1
    %s297 = scalar_select %p294, %s295, %s296
    %p300 = pneg %p294
    %p301 = scmp.eq.s32.totalorder %s23, 3
    %p302 = por %p300, %p301
    %p303 = scmp.ne.s32.totalorder %s295, %s298
    %p304 = scmp.eq.s32.totalorder %s23, 0
    %p305 = por %p303, %p304
    %p306 = scmp.ne.s32.totalorder %s295, %s298
    %p307 = scmp.eq.s32.totalorder %s28, 3
    %p308 = por %p306, %p307
    %p309 = scmp.ne.s32.totalorder %s298, %s299
    %p310 = scmp.eq.s32.totalorder %s28, 0
    %p311 = por %p309, %p310
    %p312 = scmp.ne.s32.totalorder %s298, %s299
    %p313 = scmp.eq.s32.totalorder %s29, 3
    %p314 = por %p312, %p313
    %p316 = scmp.ne.s32.totalorder %s299, %s315
    %p317 = scmp.eq.s32.totalorder %s29, 0
    %p318 = por %p316, %p317
    %s319 = ssub.s32 %s31, %s38
    %p320 = scmp.eq.s32.totalorder %s319, 0
    %s322 = sadd.s32 %s321, 1
    %s323 = scalar_select %p320, %s321, %s322
    %p326 = pneg %p320
    %p327 = scmp.eq.s32.totalorder %s23, 3
    %p328 = por %p326, %p327
    %p329 = scmp.ne.s32.totalorder %s321, %s324
    %p330 = scmp.eq.s32.totalorder %s23, 0
    %p331 = por %p329, %p330
    %p332 = scmp.ne.s32.totalorder %s321, %s324
    %p333 = scmp.eq.s32.totalorder %s28, 3
    %p334 = por %p332, %p333
    %p335 = scmp.ne.s32.totalorder %s324, %s325
    %p336 = scmp.eq.s32.totalorder %s28, 0
    %p337 = por %p335, %p336
    %p338 = scmp.ne.s32.totalorder %s324, %s325
    %p339 = scmp.eq.s32.totalorder %s29, 3
    %p340 = por %p338, %p339
    %p342 = scmp.ne.s32.totalorder %s325, %s341
    %p343 = scmp.eq.s32.totalorder %s29, 0
    %p344 = por %p342, %p343
    %s345 = ssub.s32 %s31, %s38
    %p346 = scmp.eq.s32.totalorder %s345, 0
    %s348 = sadd.s32 %s347, 1
    %s349 = scalar_select %p346, %s347, %s348
    %p352 = pneg %p346
    %p353 = scmp.eq.s32.totalorder %s23, 3
    %p354 = por %p352, %p353
    %p355 = scmp.ne.s32.totalorder %s347, %s350
    %p356 = scmp.eq.s32.totalorder %s23, 0
    %p357 = por %p355, %p356
    %p358 = scmp.ne.s32.totalorder %s347, %s350
    %p359 = scmp.eq.s32.totalorder %s28, 3
    %p360 = por %p358, %p359
    %p361 = scmp.ne.s32.totalorder %s350, %s351
    %p362 = scmp.eq.s32.totalorder %s28, 0
    %p363 = por %p361, %p362
    %p364 = scmp.ne.s32.totalorder %s350, %s351
    %p365 = scmp.eq.s32.totalorder %s29, 3
    %p366 = por %p364, %p365
    %p368 = scmp.ne.s32.totalorder %s351, %s367
    %p369 = scmp.eq.s32.totalorder %s29, 0
    %p370 = por %p368, %p369
    %s371 = ssub.s32 %s31, %s38
    %p372 = scmp.eq.s32.totalorder %s371, 0
    %s374 = sadd.s32 %s373, 1
    %s375 = scalar_select %p372, %s373, %s374
    %p378 = pneg %p372
    %p379 = scmp.eq.s32.totalorder %s23, 3
    %p380 = por %p378, %p379
    %p381 = scmp.ne.s32.totalorder %s373, %s376
    %p382 = scmp.eq.s32.totalorder %s23, 0
    %p383 = por %p381, %p382
    %p384 = scmp.ne.s32.totalorder %s373, %s376
    %p385 = scmp.eq.s32.totalorder %s28, 3
    %p386 = por %p384, %p385
    %p387 = scmp.ne.s32.totalorder %s376, %s377
    %p388 = scmp.eq.s32.totalorder %s28, 0
    %p389 = por %p387, %p388
    %p390 = scmp.ne.s32.totalorder %s376, %s377
    %p391 = scmp.eq.s32.totalorder %s29, 3
    %p392 = por %p390, %p391
    %p394 = scmp.ne.s32.totalorder %s377, %s393
    %p395 = scmp.eq.s32.totalorder %s29, 0
    %p396 = por %p394, %p395
    %s397 = ssub.s32 %s31, %s38
    %p398 = scmp.eq.s32.totalorder %s397, 0
    %s400 = sadd.s32 %s399, 1
    %s401 = scalar_select %p398, %s399, %s400
    %p404 = pneg %p398
    %p405 = scmp.eq.s32.totalorder %s23, 3
    %p406 = por %p404, %p405
    %p407 = scmp.ne.s32.totalorder %s399, %s402
    %p408 = scmp.eq.s32.totalorder %s23, 0
    %p409 = por %p407, %p408
    %p410 = scmp.ne.s32.totalorder %s399, %s402
    %p411 = scmp.eq.s32.totalorder %s28, 3
    %p412 = por %p410, %p411
    %p413 = scmp.ne.s32.totalorder %s402, %s403
    %p414 = scmp.eq.s32.totalorder %s28, 0
    %p415 = por %p413, %p414
    %p416 = scmp.ne.s32.totalorder %s402, %s403
    %p417 = scmp.eq.s32.totalorder %s29, 3
    %p418 = por %p416, %p417
    %p420 = scmp.ne.s32.totalorder %s403, %s419
    %p421 = scmp.eq.s32.totalorder %s29, 0
    %p422 = por %p420, %p421
    %s424 = sadd.s32 %s423, 1
    %p427 = scmp.eq.s32.totalorder %s23, 3
    %p428 = scmp.ne.s32.totalorder %s423, %s425
    %p429 = scmp.eq.s32.totalorder %s23, 0
    %p430 = por %p428, %p429
    %p431 = scmp.ne.s32.totalorder %s423, %s425
    %p432 = scmp.eq.s32.totalorder %s28, 3
    %p433 = por %p431, %p432
    %p434 = scmp.ne.s32.totalorder %s425, %s426
    %p435 = scmp.eq.s32.totalorder %s28, 0
    %p436 = por %p434, %p435
    %p437 = scmp.ne.s32.totalorder %s425, %s426
    %p438 = scmp.eq.s32.totalorder %s29, 3
    %p439 = por %p437, %p438
    %p441 = scmp.ne.s32.totalorder %s426, %s440
    %p442 = scmp.eq.s32.totalorder %s29, 0
    %p443 = por %p441, %p442
    %s445 = sadd.s32 %s444, 1
    %p448 = scmp.eq.s32.totalorder %s23, 3
    %p449 = scmp.ne.s32.totalorder %s444, %s446
    %p450 = scmp.eq.s32.totalorder %s23, 0
    %p451 = por %p449, %p450
    %p452 = scmp.ne.s32.totalorder %s444, %s446
    %p453 = scmp.eq.s32.totalorder %s28, 3
    %p454 = por %p452, %p453
    %p455 = scmp.ne.s32.totalorder %s446, %s447
    %p456 = scmp.eq.s32.totalorder %s28, 0
    %p457 = por %p455, %p456
    %p458 = scmp.ne.s32.totalorder %s446, %s447
    %p459 = scmp.eq.s32.totalorder %s29, 3
    %p460 = por %p458, %p459
    %p462 = scmp.ne.s32.totalorder %s447, %s461
    %p463 = scmp.eq.s32.totalorder %s29, 0
    %p464 = por %p462, %p463
    %s465 = ssub.s32 %s30, %s42
    %p466 = scmp.eq.s32.totalorder %s465, 0
    %s468 = sadd.s32 %s467, 1
    %s469 = scalar_select %p466, %s467, %s468
    %p472 = pneg %p466
    %p473 = scmp.eq.s32.totalorder %s23, 3
    %p474 = por %p472, %p473
    %p475 = scmp.ne.s32.totalorder %s467, %s470
    %p476 = scmp.eq.s32.totalorder %s23, 0
    %p477 = por %p475, %p476
    %p478 = scmp.ne.s32.totalorder %s467, %s470
    %p479 = scmp.eq.s32.totalorder %s28, 3
    %p480 = por %p478, %p479
    %p481 = scmp.ne.s32.totalorder %s470, %s471
    %p482 = scmp.eq.s32.totalorder %s28, 0
    %p483 = por %p481, %p482
    %p484 = scmp.ne.s32.totalorder %s470, %s471
    %p485 = scmp.eq.s32.totalorder %s29, 3
    %p486 = por %p484, %p485
    %p488 = scmp.ne.s32.totalorder %s471, %s487
    %p489 = scmp.eq.s32.totalorder %s29, 0
    %p490 = por %p488, %p489
    %p491 = scmp.le.s32.totalorder 1, %s23
    %p492 = scmp.lt.s32.totalorder %s23, 5
    %p493 = pnand %p491, %p492
    %p494 = pneg %p493
    // Predicated region
    $region9: #{asrf_with_brt_forward.4} parent=5 // pred_check
      _
    $region10: #{asrf_with_brt_forward.4} parent=5 // pred_check_branch
      %496 = sbr.rel (%p493) target = $region12
    $region11: #{asrf_with_brt_forward.4} parent=5 // pred_region
      %s497 = ssub.s32 %s23, 1
      // Predicated region
      $region13: #{asrf_with_brt_forward.4} parent=11 // pred_check
        %p498 = pneg %p108
      $region14: #{asrf_with_brt_forward.4} parent=11 // pred_check_branch
        %500 = sbr.rel (%p498) target = $region16
      $region15: #{asrf_with_brt_forward.4} parent=11 // pred_region
        _
      $region16: #{asrf_with_brt_forward.4} parent=11 // pred_fallthru
        _
      // Predicated region
      $region17: #{asrf_with_brt_forward.4} parent=11 // pred_check
        %p501 = pneg %p129
      $region18: #{asrf_with_brt_forward.4} parent=11 // pred_check_branch
        %503 = sbr.rel (%p501) target = $region20
      $region19: #{asrf_with_brt_forward.4} parent=11 // pred_region
        _
      $region20: #{asrf_with_brt_forward.4} parent=11 // pred_fallthru
        _
      // Predicated region
      $region21: #{asrf_with_brt_forward.4} parent=11 // pred_check
        %p504 = pneg %p436
      $region22: #{asrf_with_brt_forward.4} parent=11 // pred_check_branch
        %506 = sbr.rel (%p504) target = $region24
      $region23: #{asrf_with_brt_forward.4} parent=11 // pred_region
        _
      $region24: #{asrf_with_brt_forward.4} parent=11 // pred_fallthru
        _
      // Predicated region
      $region25: #{asrf_with_brt_forward.4} parent=11 // pred_check
        %p507 = pneg %p457
      $region26: #{asrf_with_brt_forward.4} parent=11 // pred_check_branch
        %509 = sbr.rel (%p507) target = $region28
      $region27: #{asrf_with_brt_forward.4} parent=11 // pred_region
        _
      $region28: #{asrf_with_brt_forward.4} parent=11 // pred_fallthru
        _
    $region12: #{asrf_with_brt_forward.4} parent=5 // pred_fallthru
      _
    %p510 = scmp.lt.s32.totalorder %s23, 4
    // Predicated region
    $region29: #{asrf_with_brt_forward.4} parent=5 // pred_check
      %p511 = pneg %p510
    $region30: #{asrf_with_brt_forward.4} parent=5 // pred_check_branch
      %513 = sbr.rel (%p511) target = $region32
    $region31: #{asrf_with_brt_forward.4} parent=5 // pred_region
      // Predicated region
      $region33: #{asrf_with_brt_forward.4} parent=31 // pred_check
        %p514 = pneg %p55
      $region34: #{asrf_with_brt_forward.4} parent=31 // pred_check_branch
        %516 = sbr.rel (%p514) target = $region36
      $region35: #{asrf_with_brt_forward.4} parent=31 // pred_region
        %p517 = scmp.lt.s32.totalorder %s30, 1
        %s518 = scalar_select %p517, %s30, 1
        %s519 = smul.addr %s518, 8
        %s520 = scalar_lea.vmem %s0, %s519
      $region36: #{asrf_with_brt_forward.4} parent=31 // pred_fallthru
        _
      // Predicated region
      $region37: #{asrf_with_brt_forward.4} parent=31 // pred_check
        %p521 = pneg %p81
      $region38: #{asrf_with_brt_forward.4} parent=31 // pred_check_branch
        %523 = sbr.rel (%p521) target = $region40
      $region39: #{asrf_with_brt_forward.4} parent=31 // pred_region
        %p524 = scmp.lt.s32.totalorder %s30, 1
        %s525 = scalar_select %p524, %s30, 1
        %s526 = smul.addr %s525, 8
        %s527 = scalar_lea.vmem %s1, %s526
      $region40: #{asrf_with_brt_forward.4} parent=31 // pred_fallthru
        _
      // Predicated region
      $region41: #{asrf_with_brt_forward.4} parent=31 // pred_check
        %p528 = pneg %p149
      $region42: #{asrf_with_brt_forward.4} parent=31 // pred_check_branch
        %530 = sbr.rel (%p528) target = $region44
      $region43: #{asrf_with_brt_forward.4} parent=31 // pred_region
        %p531 = scmp.lt.s32.totalorder %s31, 1
        %s532 = scalar_select %p531, %s31, 1
        %s533 = scalar_lea.vmem %s4, %s532
      $region44: #{asrf_with_brt_forward.4} parent=31 // pred_fallthru
        _
      // Predicated region
      $region45: #{asrf_with_brt_forward.4} parent=31 // pred_check
        %p534 = pneg %p175
      $region46: #{asrf_with_brt_forward.4} parent=31 // pred_check_branch
        %536 = sbr.rel (%p534) target = $region48
      $region47: #{asrf_with_brt_forward.4} parent=31 // pred_region
        %p537 = scmp.lt.s32.totalorder %s31, 1
        %s538 = scalar_select %p537, %s31, 1
        %s539 = scalar_lea.vmem %s5, %s538
      $region48: #{asrf_with_brt_forward.4} parent=31 // pred_fallthru
        _
      // Predicated region
      $region49: #{asrf_with_brt_forward.4} parent=31 // pred_check
        %p540 = pneg %p201
      $region50: #{asrf_with_brt_forward.4} parent=31 // pred_check_branch
        %542 = sbr.rel (%p540) target = $region52
      $region51: #{asrf_with_brt_forward.4} parent=31 // pred_region
        %p543 = scmp.lt.s32.totalorder %s31, 1
        %s544 = scalar_select %p543, %s31, 1
        %s545 = smul.addr %s544, 2
        %s546 = smul.addr %s545, 4
        %s547 = scalar_lea.vmem %s6, %s546
      $region52: #{asrf_with_brt_forward.4} parent=31 // pred_fallthru
        _
      // Predicated region
      $region53: #{asrf_with_brt_forward.4} parent=31 // pred_check
        %p548 = pneg %p227
      $region54: #{asrf_with_brt_forward.4} parent=31 // pred_check_branch
        %550 = sbr.rel (%p548) target = $region56
      $region55: #{asrf_with_brt_forward.4} parent=31 // pred_region
        %p551 = scmp.lt.s32.totalorder %s31, 1
        %s552 = scalar_select %p551, %s31, 1
        %s553 = smul.addr %s552, 4
        %s554 = scalar_lea.vmem %s7, %s553
      $region56: #{asrf_with_brt_forward.4} parent=31 // pred_fallthru
        _
      // Predicated region
      $region57: #{asrf_with_brt_forward.4} parent=31 // pred_check
        %p555 = pneg %p253
      $region58: #{asrf_with_brt_forward.4} parent=31 // pred_check_branch
        %557 = sbr.rel (%p555) target = $region60
      $region59: #{asrf_with_brt_forward.4} parent=31 // pred_region
        %p558 = scmp.lt.s32.totalorder %s31, 1
        %s559 = scalar_select %p558, %s31, 1
        %s560 = scalar_lea.vmem %s8, %s559
      $region60: #{asrf_with_brt_forward.4} parent=31 // pred_fallthru
        _
      // Predicated region
      $region61: #{asrf_with_brt_forward.4} parent=31 // pred_check
        %p561 = pneg %p279
      $region62: #{asrf_with_brt_forward.4} parent=31 // pred_check_branch
        %563 = sbr.rel (%p561) target = $region64
      $region63: #{asrf_with_brt_forward.4} parent=31 // pred_region
        %p564 = scmp.lt.s32.totalorder %s31, 1
        %s565 = scalar_select %p564, %s31, 1
        %s566 = scalar_lea.vmem %s9, %s565
      $region64: #{asrf_with_brt_forward.4} parent=31 // pred_fallthru
        _
      // Predicated region
      $region65: #{asrf_with_brt_forward.4} parent=31 // pred_check
        %p567 = pneg %p305
      $region66: #{asrf_with_brt_forward.4} parent=31 // pred_check_branch
        %569 = sbr.rel (%p567) target = $region68
      $region67: #{asrf_with_brt_forward.4} parent=31 // pred_region
        %p570 = scmp.lt.s32.totalorder %s31, 1
        %s571 = scalar_select %p570, %s31, 1
        %s572 = scalar_lea.vmem %s10, %s571
      $region68: #{asrf_with_brt_forward.4} parent=31 // pred_fallthru
        _
      // Predicated region
      $region69: #{asrf_with_brt_forward.4} parent=31 // pred_check
        %p573 = pneg %p331
      $region70: #{asrf_with_brt_forward.4} parent=31 // pred_check_branch
        %575 = sbr.rel (%p573) target = $region72
      $region71: #{asrf_with_brt_forward.4} parent=31 // pred_region
        %p576 = scmp.lt.s32.totalorder %s31, 1
        %s577 = scalar_select %p576, %s31, 1
        %s578 = smul.addr %s577, 2
        %s579 = smul.addr %s578, 4
        %s580 = scalar_lea.vmem %s11, %s579
      $region72: #{asrf_with_brt_forward.4} parent=31 // pred_fallthru
        _
      // Predicated region
      $region73: #{asrf_with_brt_forward.4} parent=31 // pred_check
        %p581 = pneg %p357
      $region74: #{asrf_with_brt_forward.4} parent=31 // pred_check_branch
        %583 = sbr.rel (%p581) target = $region76
      $region75: #{asrf_with_brt_forward.4} parent=31 // pred_region
        %p584 = scmp.lt.s32.totalorder %s31, 1
        %s585 = scalar_select %p584, %s31, 1
        %s586 = scalar_lea.vmem %s12, %s585
      $region76: #{asrf_with_brt_forward.4} parent=31 // pred_fallthru
        _
      // Predicated region
      $region77: #{asrf_with_brt_forward.4} parent=31 // pred_check
        %p587 = pneg %p383
      $region78: #{asrf_with_brt_forward.4} parent=31 // pred_check_branch
        %589 = sbr.rel (%p587) target = $region80
      $region79: #{asrf_with_brt_forward.4} parent=31 // pred_region
        %p590 = scmp.lt.s32.totalorder %s31, 1
        %s591 = scalar_select %p590, %s31, 1
        %s592 = smul.addr %s591, 8
        %s593 = smul.addr %s592, 4
        %s594 = scalar_lea.vmem %s13, %s593
      $region80: #{asrf_with_brt_forward.4} parent=31 // pred_fallthru
        _
      // Predicated region
      $region81: #{asrf_with_brt_forward.4} parent=31 // pred_check
        %p595 = pneg %p409
      $region82: #{asrf_with_brt_forward.4} parent=31 // pred_check_branch
        %597 = sbr.rel (%p595) target = $region84
      $region83: #{asrf_with_brt_forward.4} parent=31 // pred_region
        %p598 = scmp.lt.s32.totalorder %s31, 1
        %s599 = scalar_select %p598, %s31, 1
        %s600 = scalar_lea.vmem %s14, %s599
      $region84: #{asrf_with_brt_forward.4} parent=31 // pred_fallthru
        _
    $region32: #{asrf_with_brt_forward.4} parent=5 // pred_fallthru
      _
    %p601 = scmp.le.s32.totalorder 1, %s23
    %p602 = scmp.lt.s32.totalorder %s23, 5
    %p603 = pnand %p601, %p602
    %p604 = pneg %p603
    // Predicated region
    $region85: #{asrf_with_brt_forward.4} parent=5 // pred_check
      _
    $region86: #{asrf_with_brt_forward.4} parent=5 // pred_check_branch
      %606 = sbr.rel (%p603) target = $region88
    $region87: #{asrf_with_brt_forward.4} parent=5 // pred_region
      %s607 = ssub.s32 %s23, 1
      %p608 = scmp.lt.s32.totalorder %s32, 1
      %s609 = scalar_select %p608, %s32, 1
      %s610 = smul.addr %s609, 8
      %s611 = scalar_lea.vmem %s0, %s610
      %p612 = pneg %p61
      %p613 = pneg %p58
      %p614 = scmp.lt.s32.totalorder %s32, 1
      %s615 = scalar_select %p614, %s32, 1
      %s616 = smul.addr %s615, 8
      %s617 = scalar_lea.vmem %s1, %s616
      %p618 = pneg %p87
      %p619 = pneg %p84
      %p620 = pneg %p108
      %p621 = pneg %p105
      %p622 = pneg %p129
      %p623 = pneg %p126
      %p624 = scmp.lt.s32.totalorder %s33, 1
      %s625 = scalar_select %p624, %s33, 1
      %s626 = scalar_lea.vmem %s4, %s625
      %p627 = pneg %p155
      %p628 = pneg %p152
      %p629 = scmp.lt.s32.totalorder %s33, 1
      %s630 = scalar_select %p629, %s33, 1
      %s631 = scalar_lea.vmem %s5, %s630
      %p632 = pneg %p181
      %p633 = pneg %p178
      %p634 = scmp.lt.s32.totalorder %s33, 1
      %s635 = scalar_select %p634, %s33, 1
      %s636 = smul.addr %s635, 2
      %s637 = smul.addr %s636, 4
      %s638 = scalar_lea.vmem %s6, %s637
      %p639 = pneg %p207
      %p640 = pneg %p204
      %p641 = scmp.lt.s32.totalorder %s33, 1
      %s642 = scalar_select %p641, %s33, 1
      %s643 = smul.addr %s642, 4
      %s644 = scalar_lea.vmem %s7, %s643
      %p645 = pneg %p233
      %p646 = pneg %p230
      %p647 = scmp.lt.s32.totalorder %s33, 1
      %s648 = scalar_select %p647, %s33, 1
      %s649 = scalar_lea.vmem %s8, %s648
      %p650 = pneg %p259
      %p651 = pneg %p256
      %p652 = scmp.lt.s32.totalorder %s33, 1
      %s653 = scalar_select %p652, %s33, 1
      %s654 = scalar_lea.vmem %s9, %s653
      %p655 = pneg %p285
      %p656 = pneg %p282
      %p657 = scmp.lt.s32.totalorder %s33, 1
      %s658 = scalar_select %p657, %s33, 1
      %s659 = scalar_lea.vmem %s10, %s658
      %p660 = pneg %p311
      %p661 = pneg %p308
      %p662 = scmp.lt.s32.totalorder %s33, 1
      %s663 = scalar_select %p662, %s33, 1
      %s664 = smul.addr %s663, 2
      %s665 = smul.addr %s664, 4
      %s666 = scalar_lea.vmem %s11, %s665
      %p667 = pneg %p337
      %p668 = pneg %p334
      %p669 = scmp.lt.s32.totalorder %s33, 1
      %s670 = scalar_select %p669, %s33, 1
      %s671 = scalar_lea.vmem %s12, %s670
      %p672 = pneg %p363
      %p673 = pneg %p360
      %p674 = scmp.lt.s32.totalorder %s33, 1
      %s675 = scalar_select %p674, %s33, 1
      %s676 = smul.addr %s675, 8
      %s677 = smul.addr %s676, 4
      %s678 = scalar_lea.vmem %s13, %s677
      %p679 = pneg %p389
      %p680 = pneg %p386
      %p681 = scmp.lt.s32.totalorder %s33, 1
      %s682 = scalar_select %p681, %s33, 1
      %s683 = scalar_lea.vmem %s14, %s682
      %p684 = pneg %p415
      %p685 = pneg %p412
      %p686 = pneg %p436
      %p687 = pneg %p433
      %p688 = pneg %p457
      %p689 = pneg %p454
      %p690 = pneg %p483
      %p691 = pneg %p480
      %p692 = scmp.lt.s32.totalorder %s32, 1
      %s693 = scalar_select %p692, %s32, 1
      %s694 = smul.addr %s693, 8
      %s695 = scalar_lea.vmem %s17, %s694
      %p696 = scmp.lt.s32.totalorder %s32, 1
      %s697 = scalar_select %p696, %s32, 1
      %s698 = smul.addr %s697, 8
      %s699 = scalar_lea.vmem %s0, %s698
      %p700 = scmp.lt.s32.totalorder %s32, 1
      %s701 = scalar_select %p700, %s32, 1
      %s702 = smul.addr %s701, 8
      %s703 = scalar_lea.vmem %s1, %s702
      %p704 = scmp.lt.s32.totalorder %s33, 1
      %s705 = scalar_select %p704, %s33, 1
      %s706 = scalar_lea.vmem %s4, %s705
      %p707 = scmp.lt.s32.totalorder %s33, 1
      %s708 = scalar_select %p707, %s33, 1
      %s709 = scalar_lea.vmem %s5, %s708
      %p710 = scmp.lt.s32.totalorder %s33, 1
      %s711 = scalar_select %p710, %s33, 1
      %s712 = smul.addr %s711, 2
      %s713 = smul.addr %s712, 4
      %s714 = scalar_lea.vmem %s6, %s713
      %p715 = scmp.lt.s32.totalorder %s33, 1
      %s716 = scalar_select %p715, %s33, 1
      %s717 = smul.addr %s716, 4
      %s718 = scalar_lea.vmem %s7, %s717
      %p719 = scmp.lt.s32.totalorder %s33, 1
      %s720 = scalar_select %p719, %s33, 1
      %s721 = scalar_lea.vmem %s8, %s720
      %p722 = scmp.lt.s32.totalorder %s33, 1
      %s723 = scalar_select %p722, %s33, 1
      %s724 = scalar_lea.vmem %s9, %s723
      %p725 = scmp.lt.s32.totalorder %s33, 1
      %s726 = scalar_select %p725, %s33, 1
      %s727 = scalar_lea.vmem %s10, %s726
      %p728 = scmp.lt.s32.totalorder %s33, 1
      %s729 = scalar_select %p728, %s33, 1
      %s730 = smul.addr %s729, 2
      %s731 = smul.addr %s730, 4
      %s732 = scalar_lea.vmem %s11, %s731
      %p733 = scmp.lt.s32.totalorder %s33, 1
      %s734 = scalar_select %p733, %s33, 1
      %s735 = scalar_lea.vmem %s12, %s734
      %p736 = scmp.lt.s32.totalorder %s33, 1
      %s737 = scalar_select %p736, %s33, 1
      %s738 = smul.addr %s737, 8
      %s739 = smul.addr %s738, 4
      %s740 = scalar_lea.vmem %s13, %s739
      %p741 = scmp.lt.s32.totalorder %s33, 1
      %s742 = scalar_select %p741, %s33, 1
      %s743 = scalar_lea.vmem %s14, %s742
      %p744 = scmp.lt.s32.totalorder %s32, 1
      %s745 = scalar_select %p744, %s32, 1
      %s746 = smul.addr %s745, 8
      %s747 = scalar_lea.vmem %s17, %s746
      %p749 = scmp.eq.s32.totalorder %s33, 0
      // Predicated region
      $region89: #{asrf_with_brt_forward.4} parent=87 // pred_check
        %p750 = pneg %p749
      $region90: #{asrf_with_brt_forward.4} parent=87 // pred_check_branch
        %752 = sbr.rel (%p750) target = $region92
      $region91: #{asrf_with_brt_forward.4} parent=87 // pred_region
        %v753 = vld [vmem:[%s699] sm:$0xff]
        %v754 = vld [vmem:[%s703] sm:$0xff]
        %vm755 = vcmask 64512
        %v756 = vsel %vm755, %v753, -inf
        %757 = vmax.xlane.f32.xlu0 %v756
        %v758 = vpop.xlane.xlu0 %757
        %v759 = vsub.f32 %v753, %v758
        %v760 = vmul.f32 %v759, 1.442695
        %v761 = vpow.pop %v760
        %v762 = vsel %vm755, %v761, 0.0
        %763 = vadd.xlane.f32.xlu0 %v762
        %v764 = vpop.xlane.xlu0 %763
        %v765 = vrcp.pop %v764
        %v766 = vmul.f32 %v761, %v765
        %768 = vset.pattern.permute.xlu0 0
        %769 = vperm.xlu0 %768, %v754
        %v770 = vpop.permute.xlu0 %769
        %v772 = vmul.f32 %v766, %v770
        %v773 = vld [vmem:[%s2] sm:$0xf]
        %v774 = vpack.c.bf16 %v772, %v772
        %v775 = vld [vmem:[%s3] sm:$0x1]
        %v777 = vlaneseq
        %v778 = vshrl.u32 %v777, 7
        %v779 = vsub.s32 0, %v778
        %v780 = vrot.slane %v775, %v779
        %v783 = vsel %vm755, %v774, 0
        %vm785 = vcmask 1043456
        %v787 = vsel %vm785, %v773, 0
        %789 = vmatprep.subr.bf16.mxu0 0
        %790 = vmatpush1.bf16.msra.mxu0 %v787
        %791 = vmatprep.subr.bf16.mxu0 0
        %792 = vmatpush1.bf16.msra.mxu0 0
        %793 = vmatprep.subr.bf16.mxu0 0
        %794 = vmatpush1.bf16.msra.mxu0 0
        %795 = vmatprep.subr.bf16.mxu0 0
        %796 = vmatpush1.bf16.msra.mxu0 0
        %797 = vmatprep.subr.bf16.mxu0 0
        %798 = vmatpush1.bf16.msra.mxu0 0
        %799 = vmatprep.subr.bf16.mxu0 0
        %800 = vmatpush1.bf16.msra.mxu0 0
        %801 = vmatprep.subr.bf16.mxu0 0
        %802 = vmatpush1.bf16.msra.mxu0 0
        %803 = vmatprep.subr.bf16.mxu0 0
        %804 = vmatpush1.bf16.msra.mxu0 0
        %805 = vmatprep.subr.bf16.mxu0 0
        %806 = vmatpush1.bf16.msra.mxu0 0
        %807 = vmatprep.subr.bf16.mxu0 0
        %808 = vmatpush1.bf16.msra.mxu0 0
        %809 = vmatprep.subr.bf16.mxu0 0
        %810 = vmatpush1.bf16.msra.mxu0 0
        %811 = vmatprep.subr.bf16.mxu0 0
        %812 = vmatpush1.bf16.msra.mxu0 0
        %813 = vmatprep.subr.bf16.mxu0 0
        %814 = vmatpush1.bf16.msra.mxu0 0
        %815 = vmatprep.subr.bf16.mxu0 0
        %816 = vmatpush1.bf16.msra.mxu0 0
        %817 = vmatprep.subr.bf16.mxu0 0
        %818 = vmatpush1.bf16.msra.mxu0 0
        %819 = vmatprep.subr.bf16.mxu0 0
        %820 = vmatpush1.bf16.msra.mxu0 0
        %821 = vmatprep.mubr.bf16.mxu0 0
        %822 = vmatmul.mubr.bf16.gmra.mrb[0].mxu0 %v783
        %v823 = vpop.f32.mrb[0].mxu0
        %v824 = vadd.f32 %v780, %v823
        %v825 = vpop.f32.mrb[0].mxu0
        %v826 = vpop.f32.mrb[0].mxu0
        %v827 = vpop.f32.mrb[0].mxu0
        %828 = vdwg.mxu0
      $region92: #{asrf_with_brt_forward.4} parent=87 // pred_fallthru
        %v829 = vphi 0, %v824
      %p830 = pneg %p749
      // Predicated region
      $region93: #{asrf_with_brt_forward.4} parent=87 // pred_check
        _
      $region94: #{asrf_with_brt_forward.4} parent=87 // pred_check_branch
        %832 = sbr.rel (%p749) target = $region96
      $region95: #{asrf_with_brt_forward.4} parent=87 // pred_region
        %v833 = vld [vmem:[#allocation2] sm:$0xff]
      $region96: #{asrf_with_brt_forward.4} parent=87 // pred_fallthru
        %v834 = vphi %v829, %v833
      %vm835 = vcmask 130048
      %v836 = vsel %vm835, %v834, 0.0
      %837 = vadd.xlane.f32.xlu0 %v836
      %v838 = vpop.xlane.xlu0 %837
      %v839 = vrcp.pop 16.0
      %v840 = vmul.f32 %v838, %v839
      %v841 = vsub.f32 %v834, %v840
      %v842 = vmul.f32 %v841, %v841
      %v843 = vsel %vm835, %v842, 0.0
      %844 = vadd.xlane.f32.xlu0 %v843
      %v845 = vpop.xlane.xlu0 %844
      %v846 = vmul.f32 %v845, %v839
      %v847 = vadd.f32 %v846, 1e-05
      %v848 = vrsqrt.pop %v847
      %v849 = vmul.f32 %v841, %v848
      %v850 = vld [vmem:[%s706] sm:$0x1]
      %v852 = vlaneseq
      %v853 = vshrl.u32 %v852, 7
      %v854 = vsub.s32 0, %v853
      %v855 = vrot.slane %v850, %v854
      %v857 = vmul.f32 %v849, %v855
      %v858 = vld [vmem:[%s709] sm:$0x1]
      %v860 = vlaneseq
      %v861 = vshrl.u32 %v860, 7
      %v862 = vsub.s32 0, %v861
      %v863 = vrot.slane %v858, %v862
      %v865 = vadd.f32 %v857, %v863
      %v866 = vpack.c.bf16 %v865, %v865
      %v867 = vld [vmem:[%s714] sm:$0xf]
      %v868 = vld [vmem:[%s714 + $0x4] sm:$0xf]
      %v871 = vunpack.c.l.b16 %v867
      %v872 = vunpack.c.l.b16 %v868
      %v873 = vpack.c.b16 %v872, %v871
      %v876 = vsel %vm835, %v866, 0
      %878 = vmatprep.subr.bf16.mxu0 0
      %879 = vmatpush1.bf16.msra.mxu0 %v873
      %880 = vmatprep.subr.bf16.mxu0 0
      %881 = vmatpush1.bf16.msra.mxu0 0
      %882 = vmatprep.subr.bf16.mxu0 0
      %883 = vmatpush1.bf16.msra.mxu0 0
      %884 = vmatprep.subr.bf16.mxu0 0
      %885 = vmatpush1.bf16.msra.mxu0 0
      %886 = vmatprep.subr.bf16.mxu0 0
      %887 = vmatpush1.bf16.msra.mxu0 0
      %888 = vmatprep.subr.bf16.mxu0 0
      %889 = vmatpush1.bf16.msra.mxu0 0
      %890 = vmatprep.subr.bf16.mxu0 0
      %891 = vmatpush1.bf16.msra.mxu0 0
      %892 = vmatprep.subr.bf16.mxu0 0
      %893 = vmatpush1.bf16.msra.mxu0 0
      %894 = vmatprep.subr.bf16.mxu0 0
      %895 = vmatpush1.bf16.msra.mxu0 0
      %896 = vmatprep.subr.bf16.mxu0 0
      %897 = vmatpush1.bf16.msra.mxu0 0
      %898 = vmatprep.subr.bf16.mxu0 0
      %899 = vmatpush1.bf16.msra.mxu0 0
      %900 = vmatprep.subr.bf16.mxu0 0
      %901 = vmatpush1.bf16.msra.mxu0 0
      %902 = vmatprep.subr.bf16.mxu0 0
      %903 = vmatpush1.bf16.msra.mxu0 0
      %904 = vmatprep.subr.bf16.mxu0 0
      %905 = vmatpush1.bf16.msra.mxu0 0
      %906 = vmatprep.subr.bf16.mxu0 0
      %907 = vmatpush1.bf16.msra.mxu0 0
      %908 = vmatprep.subr.bf16.mxu0 0
      %909 = vmatpush1.bf16.msra.mxu0 0
      %910 = vmatprep.mubr.bf16.mxu0 0
      %911 = vmatmul.mubr.bf16.gmra.mrb[0].mxu0 %v876
      %v912 = vpop.f32.mrb[0].mxu0
      %v913 = vadd.f32 0.0, %v912
      %v914 = vpop.f32.mrb[0].mxu0
      %v915 = vpop.f32.mrb[0].mxu0
      %v916 = vpop.f32.mrb[0].mxu0
      %917 = vdwg.mxu0
      %v918 = vpack.c.bf16 %v913, %v913
      %920 = vrot.lane.b32.xlu0 %v913, 120
      %v921 = vpop.permute.xlu0 %920
      %923 = vxpose.xlu0.b32.start [1/16] %v921, 128
      %924 = vxpose.xlu0.b32.cont [2/16] 0.0, 128
      %925 = vxpose.xlu0.b32.cont [3/16] 0.0, 128
      %926 = vxpose.xlu0.b32.cont [4/16] 0.0, 128
      %927 = vxpose.xlu0.b32.cont [5/16] 0.0, 128
      %928 = vxpose.xlu0.b32.cont [6/16] 0.0, 128
      %929 = vxpose.xlu0.b32.cont [7/16] 0.0, 128
      %930 = vxpose.xlu0.b32.cont [8/16] 0.0, 128
      %931 = vxpose.xlu0.b32.cont [9/16] 0.0, 128
      %932 = vxpose.xlu0.b32.cont [10/16] 0.0, 128
      %933 = vxpose.xlu0.b32.cont [11/16] 0.0, 128
      %934 = vxpose.xlu0.b32.cont [12/16] 0.0, 128
      %935 = vxpose.xlu0.b32.cont [13/16] 0.0, 128
      %936 = vxpose.xlu0.b32.cont [14/16] 0.0, 128
      %937 = vxpose.xlu0.b32.cont [15/16] 0.0, 128
      %938 = vxpose.xlu0.b32.end [16/16] 0.0, 128
      %v939 = vpop.trf.xlu0
      %v940 = vpop.trf.xlu0
      %v941 = vpop.trf.xlu0
      %v942 = vpop.trf.xlu0
      %v943 = vpop.trf.xlu0
      %v944 = vpop.trf.xlu0
      %v945 = vpop.trf.xlu0
      %v946 = vpop.trf.xlu0
      %v947 = vpop.trf.xlu0
      %v948 = vpop.trf.xlu0
      %v949 = vpop.trf.xlu0
      %v950 = vpop.trf.xlu0
      %v951 = vpop.trf.xlu0
      %v952 = vpop.trf.xlu0
      %v953 = vpop.trf.xlu0
      %v954 = vpop.trf.xlu0
      %v955 = vpack.c.bf16 %v939, %v939
      %vm956 = vcmask 31744
      %v958 = vsel %vm956, %v918, 0
      %vm960 = vcmask 1041408
      %v962 = vsel %vm960, %v955, 0
      %964 = vmatprep.subr.bf16.mxu0 0
      %965 = vmatpush1.bf16.msra.mxu0 %v962
      %966 = vmatprep.subr.bf16.mxu0 0
      %967 = vmatpush1.bf16.msra.mxu0 0
      %968 = vmatprep.subr.bf16.mxu0 0
      %969 = vmatpush1.bf16.msra.mxu0 0
      %970 = vmatprep.subr.bf16.mxu0 0
      %971 = vmatpush1.bf16.msra.mxu0 0
      %972 = vmatprep.subr.bf16.mxu0 0
      %973 = vmatpush1.bf16.msra.mxu0 0
      %974 = vmatprep.subr.bf16.mxu0 0
      %975 = vmatpush1.bf16.msra.mxu0 0
      %976 = vmatprep.subr.bf16.mxu0 0
      %977 = vmatpush1.bf16.msra.mxu0 0
      %978 = vmatprep.subr.bf16.mxu0 0
      %979 = vmatpush1.bf16.msra.mxu0 0
      %980 = vmatprep.subr.bf16.mxu0 0
      %981 = vmatpush1.bf16.msra.mxu0 0
      %982 = vmatprep.subr.bf16.mxu0 0
      %983 = vmatpush1.bf16.msra.mxu0 0
      %984 = vmatprep.subr.bf16.mxu0 0
      %985 = vmatpush1.bf16.msra.mxu0 0
      %986 = vmatprep.subr.bf16.mxu0 0
      %987 = vmatpush1.bf16.msra.mxu0 0
      %988 = vmatprep.subr.bf16.mxu0 0
      %989 = vmatpush1.bf16.msra.mxu0 0
      %990 = vmatprep.subr.bf16.mxu0 0
      %991 = vmatpush1.bf16.msra.mxu0 0
      %992 = vmatprep.subr.bf16.mxu0 0
      %993 = vmatpush1.bf16.msra.mxu0 0
      %994 = vmatprep.subr.bf16.mxu0 0
      %995 = vmatpush1.bf16.msra.mxu0 0
      %996 = vmatprep.mubr.bf16.mxu0 0
      %997 = vmatmul.mubr.bf16.gmra.mrb[0].mxu0 %v958
      %v998 = vpop.f32.mrb[0].mxu0
      %v999 = vadd.f32 0.0, %v998
      %v1000 = vpop.f32.mrb[0].mxu0
      %v1001 = vpop.f32.mrb[0].mxu0
      %v1002 = vpop.f32.mrb[0].mxu0
      %1003 = vdwg.mxu0
      %vm1004 = vcmask 64512
      %v1005 = vsel %vm1004, %v999, -inf
      %1006 = vmax.xlane.f32.xlu0 %v1005
      %v1007 = vpop.xlane.xlu0 %1006
      %v1008 = vsub.f32 %v999, %v1007
      %v1009 = vmul.f32 %v1008, 1.442695
      %v1010 = vpow.pop %v1009
      %v1011 = vsel %vm1004, %v1010, 0.0
      %1012 = vadd.xlane.f32.xlu0 %v1011
      %v1013 = vpop.xlane.xlu0 %1012
      %v1014 = vrcp.pop %v1013
      %v1015 = vmul.f32 %v1010, %v1014
      %v1016 = vpack.c.bf16 %v1015, %v1015
      %1018 = vrot.lane.b32.xlu0 %v918, 112
      %v1019 = vpop.permute.xlu0 %1018
      %v1021 = vsel %vm1004, %v1016, 0
      %vm1023 = vcmask 1043456
      %v1025 = vsel %vm1023, %v1019, 0
      %1027 = vmatprep.subr.bf16.mxu0 0
      %1028 = vmatpush1.bf16.msra.mxu0 %v1025
      %1029 = vmatprep.subr.bf16.mxu0 0
      %1030 = vmatpush1.bf16.msra.mxu0 0
      %1031 = vmatprep.subr.bf16.mxu0 0
      %1032 = vmatpush1.bf16.msra.mxu0 0
      %1033 = vmatprep.subr.bf16.mxu0 0
      %1034 = vmatpush1.bf16.msra.mxu0 0
      %1035 = vmatprep.subr.bf16.mxu0 0
      %1036 = vmatpush1.bf16.msra.mxu0 0
      %1037 = vmatprep.subr.bf16.mxu0 0
      %1038 = vmatpush1.bf16.msra.mxu0 0
      %1039 = vmatprep.subr.bf16.mxu0 0
      %1040 = vmatpush1.bf16.msra.mxu0 0
      %1041 = vmatprep.subr.bf16.mxu0 0
      %1042 = vmatpush1.bf16.msra.mxu0 0
      %1043 = vmatprep.subr.bf16.mxu0 0
      %1044 = vmatpush1.bf16.msra.mxu0 0
      %1045 = vmatprep.subr.bf16.mxu0 0
      %1046 = vmatpush1.bf16.msra.mxu0 0
      %1047 = vmatprep.subr.bf16.mxu0 0
      %1048 = vmatpush1.bf16.msra.mxu0 0
      %1049 = vmatprep.subr.bf16.mxu0 0
      %1050 = vmatpush1.bf16.msra.mxu0 0
      %1051 = vmatprep.subr.bf16.mxu0 0
      %1052 = vmatpush1.bf16.msra.mxu0 0
      %1053 = vmatprep.subr.bf16.mxu0 0
      %1054 = vmatpush1.bf16.msra.mxu0 0
      %1055 = vmatprep.subr.bf16.mxu0 0
      %1056 = vmatpush1.bf16.msra.mxu0 0
      %1057 = vmatprep.subr.bf16.mxu0 0
      %1058 = vmatpush1.bf16.msra.mxu0 0
      %1059 = vmatprep.mubr.bf16.mxu0 0
      %1060 = vmatmul.mubr.bf16.gmra.mrb[0].mxu0 %v1021
      %v1061 = vpop.f32.mrb[0].mxu0
      %v1062 = vadd.f32 0.0, %v1061
      %v1063 = vpop.f32.mrb[0].mxu0
      %v1064 = vpop.f32.mrb[0].mxu0
      %v1065 = vpop.f32.mrb[0].mxu0
      %1066 = vdwg.mxu0
      %1067 = vrot.lane.b32.xlu0 %v913, 116
      %v1068 = vpop.permute.xlu0 %1067
      %1070 = vxpose.xlu0.b32.start [1/16] %v1068, 128
      %1071 = vxpose.xlu0.b32.cont [2/16] 0.0, 128
      %1072 = vxpose.xlu0.b32.cont [3/16] 0.0, 128
      %1073 = vxpose.xlu0.b32.cont [4/16] 0.0, 128
      %1074 = vxpose.xlu0.b32.cont [5/16] 0.0, 128
      %1075 = vxpose.xlu0.b32.cont [6/16] 0.0, 128
      %1076 = vxpose.xlu0.b32.cont [7/16] 0.0, 128
      %1077 = vxpose.xlu0.b32.cont [8/16] 0.0, 128
      %1078 = vxpose.xlu0.b32.cont [9/16] 0.0, 128
      %1079 = vxpose.xlu0.b32.cont [10/16] 0.0, 128
      %1080 = vxpose.xlu0.b32.cont [11/16] 0.0, 128
      %1081 = vxpose.xlu0.b32.cont [12/16] 0.0, 128
      %1082 = vxpose.xlu0.b32.cont [13/16] 0.0, 128
      %1083 = vxpose.xlu0.b32.cont [14/16] 0.0, 128
      %1084 = vxpose.xlu0.b32.cont [15/16] 0.0, 128
      %1085 = vxpose.xlu0.b32.end [16/16] 0.0, 128
      %v1086 = vpop.trf.xlu0
      %v1087 = vpop.trf.xlu0
      %v1088 = vpop.trf.xlu0
      %v1089 = vpop.trf.xlu0
      %v1090 = vpop.trf.xlu0
      %v1091 = vpop.trf.xlu0
      %v1092 = vpop.trf.xlu0
      %v1093 = vpop.trf.xlu0
      %v1094 = vpop.trf.xlu0
      %v1095 = vpop.trf.xlu0
      %v1096 = vpop.trf.xlu0
      %v1097 = vpop.trf.xlu0
      %v1098 = vpop.trf.xlu0
      %v1099 = vpop.trf.xlu0
      %v1100 = vpop.trf.xlu0
      %v1101 = vpop.trf.xlu0
      %v1102 = vpack.c.bf16 %v1086, %v1086
      %1103 = vrot.lane.b32.xlu0 %v918, 124
      %v1104 = vpop.permute.xlu0 %1103
      %v1106 = vsel %vm956, %v1104, 0
      %v1109 = vsel %vm960, %v1102, 0
      %1111 = vmatprep.subr.bf16.mxu0 0
      %1112 = vmatpush1.bf16.msra.mxu0 %v1109
      %1113 = vmatprep.subr.bf16.mxu0 0
      %1114 = vmatpush1.bf16.msra.mxu0 0
      %1115 = vmatprep.subr.bf16.mxu0 0
      %1116 = vmatpush1.bf16.msra.mxu0 0
      %1117 = vmatprep.subr.bf16.mxu0 0
      %1118 = vmatpush1.bf16.msra.mxu0 0
      %1119 = vmatprep.subr.bf16.mxu0 0
      %1120 = vmatpush1.bf16.msra.mxu0 0
      %1121 = vmatprep.subr.bf16.mxu0 0
      %1122 = vmatpush1.bf16.msra.mxu0 0
      %1123 = vmatprep.subr.bf16.mxu0 0
      %1124 = vmatpush1.bf16.msra.mxu0 0
      %1125 = vmatprep.subr.bf16.mxu0 0
      %1126 = vmatpush1.bf16.msra.mxu0 0
      %1127 = vmatprep.subr.bf16.mxu0 0
      %1128 = vmatpush1.bf16.msra.mxu0 0
      %1129 = vmatprep.subr.bf16.mxu0 0
      %1130 = vmatpush1.bf16.msra.mxu0 0
      %1131 = vmatprep.subr.bf16.mxu0 0
      %1132 = vmatpush1.bf16.msra.mxu0 0
      %1133 = vmatprep.subr.bf16.mxu0 0
      %1134 = vmatpush1.bf16.msra.mxu0 0
      %1135 = vmatprep.subr.bf16.mxu0 0
      %1136 = vmatpush1.bf16.msra.mxu0 0
      %1137 = vmatprep.subr.bf16.mxu0 0
      %1138 = vmatpush1.bf16.msra.mxu0 0
      %1139 = vmatprep.subr.bf16.mxu0 0
      %1140 = vmatpush1.bf16.msra.mxu0 0
      %1141 = vmatprep.subr.bf16.mxu0 0
      %1142 = vmatpush1.bf16.msra.mxu0 0
      %1143 = vmatprep.mubr.bf16.mxu0 0
      %1144 = vmatmul.mubr.bf16.gmra.mrb[0].mxu0 %v1106
      %v1145 = vpop.f32.mrb[0].mxu0
      %v1146 = vadd.f32 0.0, %v1145
      %v1147 = vpop.f32.mrb[0].mxu0
      %v1148 = vpop.f32.mrb[0].mxu0
      %v1149 = vpop.f32.mrb[0].mxu0
      %1150 = vdwg.mxu0
      %v1151 = vsel %vm1004, %v1146, -inf
      %1152 = vmax.xlane.f32.xlu0 %v1151
      %v1153 = vpop.xlane.xlu0 %1152
      %v1154 = vsub.f32 %v1146, %v1153
      %v1155 = vmul.f32 %v1154, 1.442695
      %v1156 = vpow.pop %v1155
      %v1157 = vsel %vm1004, %v1156, 0.0
      %1158 = vadd.xlane.f32.xlu0 %v1157
      %v1159 = vpop.xlane.xlu0 %1158
      %v1160 = vrcp.pop %v1159
      %v1161 = vmul.f32 %v1156, %v1160
      %v1162 = vpack.c.bf16 %v1161, %v1161
      %1163 = vrot.lane.b32.xlu0 %v918, 108
      %v1164 = vpop.permute.xlu0 %1163
      %v1166 = vsel %vm1004, %v1162, 0
      %v1169 = vsel %vm1023, %v1164, 0
      %1171 = vmatprep.subr.bf16.mxu0 0
      %1172 = vmatpush1.bf16.msra.mxu0 %v1169
      %1173 = vmatprep.subr.bf16.mxu0 0
      %1174 = vmatpush1.bf16.msra.mxu0 0
      %1175 = vmatprep.subr.bf16.mxu0 0
      %1176 = vmatpush1.bf16.msra.mxu0 0
      %1177 = vmatprep.subr.bf16.mxu0 0
      %1178 = vmatpush1.bf16.msra.mxu0 0
      %1179 = vmatprep.subr.bf16.mxu0 0
      %1180 = vmatpush1.bf16.msra.mxu0 0
      %1181 = vmatprep.subr.bf16.mxu0 0
      %1182 = vmatpush1.bf16.msra.mxu0 0
      %1183 = vmatprep.subr.bf16.mxu0 0
      %1184 = vmatpush1.bf16.msra.mxu0 0
      %1185 = vmatprep.subr.bf16.mxu0 0
      %1186 = vmatpush1.bf16.msra.mxu0 0
      %1187 = vmatprep.subr.bf16.mxu0 0
      %1188 = vmatpush1.bf16.msra.mxu0 0
      %1189 = vmatprep.subr.bf16.mxu0 0
      %1190 = vmatpush1.bf16.msra.mxu0 0
      %1191 = vmatprep.subr.bf16.mxu0 0
      %1192 = vmatpush1.bf16.msra.mxu0 0
      %1193 = vmatprep.subr.bf16.mxu0 0
      %1194 = vmatpush1.bf16.msra.mxu0 0
      %1195 = vmatprep.subr.bf16.mxu0 0
      %1196 = vmatpush1.bf16.msra.mxu0 0
      %1197 = vmatprep.subr.bf16.mxu0 0
      %1198 = vmatpush1.bf16.msra.mxu0 0
      %1199 = vmatprep.subr.bf16.mxu0 0
      %1200 = vmatpush1.bf16.msra.mxu0 0
      %1201 = vmatprep.subr.bf16.mxu0 0
      %1202 = vmatpush1.bf16.msra.mxu0 0
      %1203 = vmatprep.mubr.bf16.mxu0 0
      %1204 = vmatmul.mubr.bf16.gmra.mrb[0].mxu0 %v1166
      %v1205 = vpop.f32.mrb[0].mxu0
      %v1206 = vadd.f32 0.0, %v1205
      %v1207 = vpop.f32.mrb[0].mxu0
      %v1208 = vpop.f32.mrb[0].mxu0
      %v1209 = vpop.f32.mrb[0].mxu0
      %1210 = vdwg.mxu0
      %1212 = vrot.lane.b32.xlu0 %v1206, 4
      %v1213 = vpop.permute.xlu0 %1212
      %v1215 = vsel %vm956, %v1062, %v1213
      %v1216 = vpack.c.bf16 %v1215, %v1215
      %v1217 = vld [vmem:[%s718] sm:$0xf]
      %v1219 = vsel %vm1004, %v1216, 0
      %v1222 = vsel %vm1023, %v1217, 0
      %1224 = vmatprep.subr.bf16.mxu0 0
      %1225 = vmatpush1.bf16.msra.mxu0 %v1222
      %1226 = vmatprep.subr.bf16.mxu0 0
      %1227 = vmatpush1.bf16.msra.mxu0 0
      %1228 = vmatprep.subr.bf16.mxu0 0
      %1229 = vmatpush1.bf16.msra.mxu0 0
      %1230 = vmatprep.subr.bf16.mxu0 0
      %1231 = vmatpush1.bf16.msra.mxu0 0
      %1232 = vmatprep.subr.bf16.mxu0 0
      %1233 = vmatpush1.bf16.msra.mxu0 0
      %1234 = vmatprep.subr.bf16.mxu0 0
      %1235 = vmatpush1.bf16.msra.mxu0 0
      %1236 = vmatprep.subr.bf16.mxu0 0
      %1237 = vmatpush1.bf16.msra.mxu0 0
      %1238 = vmatprep.subr.bf16.mxu0 0
      %1239 = vmatpush1.bf16.msra.mxu0 0
      %1240 = vmatprep.subr.bf16.mxu0 0
      %1241 = vmatpush1.bf16.msra.mxu0 0
      %1242 = vmatprep.subr.bf16.mxu0 0
      %1243 = vmatpush1.bf16.msra.mxu0 0
      %1244 = vmatprep.subr.bf16.mxu0 0
      %1245 = vmatpush1.bf16.msra.mxu0 0
      %1246 = vmatprep.subr.bf16.mxu0 0
      %1247 = vmatpush1.bf16.msra.mxu0 0
      %1248 = vmatprep.subr.bf16.mxu0 0
      %1249 = vmatpush1.bf16.msra.mxu0 0
      %1250 = vmatprep.subr.bf16.mxu0 0
      %1251 = vmatpush1.bf16.msra.mxu0 0
      %1252 = vmatprep.subr.bf16.mxu0 0
      %1253 = vmatpush1.bf16.msra.mxu0 0
      %1254 = vmatprep.subr.bf16.mxu0 0
      %1255 = vmatpush1.bf16.msra.mxu0 0
      %1256 = vmatprep.mubr.bf16.mxu0 0
      %1257 = vmatmul.mubr.bf16.gmra.mrb[0].mxu0 %v1219
      %v1258 = vpop.f32.mrb[0].mxu0
      %v1259 = vadd.f32 0.0, %v1258
      %v1260 = vpop.f32.mrb[0].mxu0
      %v1261 = vpop.f32.mrb[0].mxu0
      %v1262 = vpop.f32.mrb[0].mxu0
      %1263 = vdwg.mxu0
      %v1264 = vadd.f32 %v834, %v1259
      %v1265 = vld [vmem:[%s721] sm:$0x1]
      %v1267 = vlaneseq
      %v1268 = vshrl.u32 %v1267, 7
      %v1269 = vsub.s32 0, %v1268
      %v1270 = vrot.slane %v1265, %v1269
      %v1272 = vadd.f32 %v1264, %v1270
      %v1273 = vsel %vm835, %v1272, 0.0
      %1274 = vadd.xlane.f32.xlu0 %v1273
      %v1275 = vpop.xlane.xlu0 %1274
      %v1276 = vmul.f32 %v1275, %v839
      %v1277 = vsub.f32 %v1272, %v1276
      %v1278 = vmul.f32 %v1277, %v1277
      %v1279 = vsel %vm835, %v1278, 0.0
      %1280 = vadd.xlane.f32.xlu0 %v1279
      %v1281 = vpop.xlane.xlu0 %1280
      %v1282 = vmul.f32 %v1281, %v839
      %v1283 = vadd.f32 %v1282, 1e-05
      %v1284 = vrsqrt.pop %v1283
      %v1285 = vmul.f32 %v1277, %v1284
      %v1286 = vld [vmem:[%s724] sm:$0x1]
      %v1288 = vlaneseq
      %v1289 = vshrl.u32 %v1288, 7
      %v1290 = vsub.s32 0, %v1289
      %v1291 = vrot.slane %v1286, %v1290
      %v1293 = vmul.f32 %v1285, %v1291
      %v1294 = vld [vmem:[%s727] sm:$0x1]
      %v1296 = vlaneseq
      %v1297 = vshrl.u32 %v1296, 7
      %v1298 = vsub.s32 0, %v1297
      %v1299 = vrot.slane %v1294, %v1298
      %v1301 = vadd.f32 %v1293, %v1299
      %v1302 = vpack.c.bf16 %v1301, %v1301
      %v1303 = vld [vmem:[%s732] sm:$0xf]
      %v1304 = vld [vmem:[%s732 + $0x4] sm:$0xf]
      %v1305 = vld [vmem:[%s735] sm:$0x1]
      %v1307 = vlaneseq
      %v1308 = vshrl.u32 %v1307, 7
      %v1309 = vsub.s32 0, %v1308
      %v1310 = vrot.slane %v1305, %v1309
      %v1314 = vunpack.c.l.b16 %v1303
      %v1315 = vunpack.c.l.b16 %v1304
      %v1316 = vpack.c.b16 %v1315, %v1314
      %v1319 = vsel %vm835, %v1302, 0
      %1321 = vmatprep.subr.bf16.mxu0 0
      %1322 = vmatpush1.bf16.msra.mxu0 %v1316
      %1323 = vmatprep.subr.bf16.mxu0 0
      %1324 = vmatpush1.bf16.msra.mxu0 0
      %1325 = vmatprep.subr.bf16.mxu0 0
      %1326 = vmatpush1.bf16.msra.mxu0 0
      %1327 = vmatprep.subr.bf16.mxu0 0
      %1328 = vmatpush1.bf16.msra.mxu0 0
      %1329 = vmatprep.subr.bf16.mxu0 0
      %1330 = vmatpush1.bf16.msra.mxu0 0
      %1331 = vmatprep.subr.bf16.mxu0 0
      %1332 = vmatpush1.bf16.msra.mxu0 0
      %1333 = vmatprep.subr.bf16.mxu0 0
      %1334 = vmatpush1.bf16.msra.mxu0 0
      %1335 = vmatprep.subr.bf16.mxu0 0
      %1336 = vmatpush1.bf16.msra.mxu0 0
      %1337 = vmatprep.subr.bf16.mxu0 0
      %1338 = vmatpush1.bf16.msra.mxu0 0
      %1339 = vmatprep.subr.bf16.mxu0 0
      %1340 = vmatpush1.bf16.msra.mxu0 0
      %1341 = vmatprep.subr.bf16.mxu0 0
      %1342 = vmatpush1.bf16.msra.mxu0 0
      %1343 = vmatprep.subr.bf16.mxu0 0
      %1344 = vmatpush1.bf16.msra.mxu0 0
      %1345 = vmatprep.subr.bf16.mxu0 0
      %1346 = vmatpush1.bf16.msra.mxu0 0
      %1347 = vmatprep.subr.bf16.mxu0 0
      %1348 = vmatpush1.bf16.msra.mxu0 0
      %1349 = vmatprep.subr.bf16.mxu0 0
      %1350 = vmatpush1.bf16.msra.mxu0 0
      %1351 = vmatprep.subr.bf16.mxu0 0
      %1352 = vmatpush1.bf16.msra.mxu0 0
      %1353 = vmatprep.mubr.bf16.mxu0 0
      %1354 = vmatmul.mubr.bf16.gmra.mrb[0].mxu0 %v1319
      %v1355 = vpop.f32.mrb[0].mxu0
      %v1356 = vadd.f32 %v1310, %v1355
      %v1357 = vpop.f32.mrb[0].mxu0
      %v1358 = vpop.f32.mrb[0].mxu0
      %v1359 = vpop.f32.mrb[0].mxu0
      %1360 = vdwg.mxu0
      %v1361 = vmax.f32 %v1356, 0.0
      %v1362 = vpack.c.bf16 %v1361, %v1361
      %v1363 = vld [vmem:[%s740] sm:$0xf]
      %v1364 = vld [vmem:[%s740 + $0x4] sm:$0xf]
      %v1365 = vld [vmem:[%s740 + $0x8] sm:$0xf]
      %v1366 = vld [vmem:[%s740 + $0xc] sm:$0xf]
      %v1367 = vld [vmem:[%s740 + $0x10] sm:$0xf]
      %v1368 = vld [vmem:[%s740 + $0x14] sm:$0xf]
      %v1369 = vld [vmem:[%s740 + $0x18] sm:$0xf]
      %v1370 = vld [vmem:[%s740 + $0x1c] sm:$0xf]
      %v1371 = vld [vmem:[%s743] sm:$0x1]
      %v1373 = vlaneseq
      %v1374 = vshrl.u32 %v1373, 7
      %v1375 = vsub.s32 0, %v1374
      %v1376 = vrot.slane %v1371, %v1375
      %v1386 = vunpack.c.l.b16 %v1363
      %v1387 = vunpack.c.l.b16 %v1364
      %v1388 = vunpack.c.l.b16 %v1365
      %v1389 = vunpack.c.l.b16 %v1366
      %v1390 = vunpack.c.l.b16 %v1367
      %v1391 = vunpack.c.l.b16 %v1368
      %v1392 = vunpack.c.l.b16 %v1369
      %v1393 = vunpack.c.l.b16 %v1370
      %v1394 = vpack.c.b16 %v1387, %v1386
      %v1395 = vpack.c.b16 %v1389, %v1388
      %v1396 = vpack.c.b16 %v1391, %v1390
      %v1397 = vpack.c.b16 %v1393, %v1392
      %vm1402 = vcmask 523264
      %v1404 = vsel %vm1402, %v1362, 0
      %1406 = vmatprep.subr.bf16.mxu0 0
      %1407 = vmatpush1.bf16.msra.mxu0 %v1394
      %1408 = vmatprep.subr.bf16.mxu0 0
      %1409 = vmatpush1.bf16.msra.mxu0 %v1395
      %1410 = vmatprep.subr.bf16.mxu0 0
      %1411 = vmatpush1.bf16.msra.mxu0 %v1396
      %1412 = vmatprep.subr.bf16.mxu0 0
      %1413 = vmatpush1.bf16.msra.mxu0 %v1397
      %1414 = vmatprep.subr.bf16.mxu0 0
      %1415 = vmatpush1.bf16.msra.mxu0 0
      %1416 = vmatprep.subr.bf16.mxu0 0
      %1417 = vmatpush1.bf16.msra.mxu0 0
      %1418 = vmatprep.subr.bf16.mxu0 0
      %1419 = vmatpush1.bf16.msra.mxu0 0
      %1420 = vmatprep.subr.bf16.mxu0 0
      %1421 = vmatpush1.bf16.msra.mxu0 0
      %1422 = vmatprep.subr.bf16.mxu0 0
      %1423 = vmatpush1.bf16.msra.mxu0 0
      %1424 = vmatprep.subr.bf16.mxu0 0
      %1425 = vmatpush1.bf16.msra.mxu0 0
      %1426 = vmatprep.subr.bf16.mxu0 0
      %1427 = vmatpush1.bf16.msra.mxu0 0
      %1428 = vmatprep.subr.bf16.mxu0 0
      %1429 = vmatpush1.bf16.msra.mxu0 0
      %1430 = vmatprep.subr.bf16.mxu0 0
      %1431 = vmatpush1.bf16.msra.mxu0 0
      %1432 = vmatprep.subr.bf16.mxu0 0
      %1433 = vmatpush1.bf16.msra.mxu0 0
      %1434 = vmatprep.subr.bf16.mxu0 0
      %1435 = vmatpush1.bf16.msra.mxu0 0
      %1436 = vmatprep.subr.bf16.mxu0 0
      %1437 = vmatpush1.bf16.msra.mxu0 0
      %1438 = vmatprep.mubr.bf16.mxu0 0
      %1439 = vmatmul.mubr.bf16.gmra.mrb[0].mxu0 %v1404
      %v1440 = vpop.f32.mrb[0].mxu0
      %v1441 = vadd.f32 %v1376, %v1440
      %v1442 = vpop.f32.mrb[0].mxu0
      %v1443 = vpop.f32.mrb[0].mxu0
      %v1444 = vpop.f32.mrb[0].mxu0
      %1445 = vdwg.mxu0
      %v1446 = vadd.f32 %v1272, %v1441
      %1447 = vst.msk [vmem:[#allocation2] sm:$0xff] %vm835, %v1446
      %p1448 = scmp.eq.s32.totalorder %s33, 1
      // Predicated region
      $region97: #{asrf_with_brt_forward.4} parent=87 // pred_check
        %p1449 = pneg %p1448
      $region98: #{asrf_with_brt_forward.4} parent=87 // pred_check_branch
        %1451 = sbr.rel (%p1449) target = $region100
      $region99: #{asrf_with_brt_forward.4} parent=87 // pred_region
        %v1452 = vld [vmem:[%s703] sm:$0xff]
        %1454 = vset.pattern.permute.xlu0 0
        %1455 = vperm.xlu0 %1454, %v1452
        %v1456 = vpop.permute.xlu0 %1455
        %v1458 = vmul.f32 %v1446, %v1456
        %v1459 = vpack.c.bf16 %v1458, %v1458
        %v1460 = vld [vmem:[%s15] sm:$0xf]
        %v1461 = vld [vmem:[%s15 + $0x4] sm:$0xf]
        %v1462 = vld [vmem:[%s16] sm:$0x1]
        %v1464 = vlaneseq
        %v1465 = vshrl.u32 %v1464, 7
        %v1466 = vsub.s32 0, %v1465
        %v1467 = vrot.slane %v1462, %v1466
        %v1471 = vunpack.c.l.b16 %v1460
        %v1472 = vunpack.c.l.b16 %v1461
        %v1473 = vpack.c.b16 %v1472, %v1471
        %v1476 = vsel %vm835, %v1459, 0
        %1478 = vmatprep.subr.bf16.mxu0 0
        %1479 = vmatpush1.bf16.msra.mxu0 %v1473
        %1480 = vmatprep.subr.bf16.mxu0 0
        %1481 = vmatpush1.bf16.msra.mxu0 0
        %1482 = vmatprep.subr.bf16.mxu0 0
        %1483 = vmatpush1.bf16.msra.mxu0 0
        %1484 = vmatprep.subr.bf16.mxu0 0
        %1485 = vmatpush1.bf16.msra.mxu0 0
        %1486 = vmatprep.subr.bf16.mxu0 0
        %1487 = vmatpush1.bf16.msra.mxu0 0
        %1488 = vmatprep.subr.bf16.mxu0 0
        %1489 = vmatpush1.bf16.msra.mxu0 0
        %1490 = vmatprep.subr.bf16.mxu0 0
        %1491 = vmatpush1.bf16.msra.mxu0 0
        %1492 = vmatprep.subr.bf16.mxu0 0
        %1493 = vmatpush1.bf16.msra.mxu0 0
        %1494 = vmatprep.subr.bf16.mxu0 0
        %1495 = vmatpush1.bf16.msra.mxu0 0
        %1496 = vmatprep.subr.bf16.mxu0 0
        %1497 = vmatpush1.bf16.msra.mxu0 0
        %1498 = vmatprep.subr.bf16.mxu0 0
        %1499 = vmatpush1.bf16.msra.mxu0 0
        %1500 = vmatprep.subr.bf16.mxu0 0
        %1501 = vmatpush1.bf16.msra.mxu0 0
        %1502 = vmatprep.subr.bf16.mxu0 0
        %1503 = vmatpush1.bf16.msra.mxu0 0
        %1504 = vmatprep.subr.bf16.mxu0 0
        %1505 = vmatpush1.bf16.msra.mxu0 0
        %1506 = vmatprep.subr.bf16.mxu0 0
        %1507 = vmatpush1.bf16.msra.mxu0 0
        %1508 = vmatprep.subr.bf16.mxu0 0
        %1509 = vmatpush1.bf16.msra.mxu0 0
        %1510 = vmatprep.mubr.bf16.mxu0 0
        %1511 = vmatmul.mubr.bf16.gmra.mrb[0].mxu0 %v1476
        %v1512 = vpop.f32.mrb[0].mxu0
        %v1513 = vadd.f32 %v1467, %v1512
        %v1514 = vpop.f32.mrb[0].mxu0
        %v1515 = vpop.f32.mrb[0].mxu0
        %v1516 = vpop.f32.mrb[0].mxu0
        %1517 = vdwg.mxu0
        %1518 = vst.msk [vmem:[%s747] sm:$0xff] %vm1004, %v1513
      $region100: #{asrf_with_brt_forward.4} parent=87 // pred_fallthru
        _
      %p1519 = scmp.lt.s32.totalorder %s32, 1
      %s1520 = scalar_select %p1519, %s32, 1
      %s1521 = smul.addr %s1520, 8
      %s1522 = scalar_lea.vmem %s17, %s1521
      // Predicated region
      $region101: #{asrf_with_brt_forward.4} parent=87 // pred_check
        %p1523 = pneg %p480
      $region102: #{asrf_with_brt_forward.4} parent=87 // pred_check_branch
        %1525 = sbr.rel (%p1523) target = $region104
      $region103: #{asrf_with_brt_forward.4} parent=87 // pred_region
        _
      $region104: #{asrf_with_brt_forward.4} parent=87 // pred_fallthru
        _
    $region88: #{asrf_with_brt_forward.4} parent=5 // pred_fallthru
      _
    %p1526 = scmp.le.s32.totalorder 2, %s23
    // Predicated region
    $region105: #{asrf_with_brt_forward.4} parent=5 // pred_check
      %p1527 = pneg %p1526
    $region106: #{asrf_with_brt_forward.4} parent=5 // pred_check_branch
      %1529 = sbr.rel (%p1527) target = $region108
    $region107: #{asrf_with_brt_forward.4} parent=5 // pred_region
      %s1530 = ssub.s32 %s23, 2
      // Predicated region
      $region109: #{asrf_with_brt_forward.4} parent=107 // pred_check
        %p1531 = pneg %p486
      $region110: #{asrf_with_brt_forward.4} parent=107 // pred_check_branch
        %1533 = sbr.rel (%p1531) target = $region112
      $region111: #{asrf_with_brt_forward.4} parent=107 // pred_region
        %p1534 = scmp.lt.s32.totalorder %s34, 1
        %s1535 = scalar_select %p1534, %s34, 1
        %s1536 = smul.addr %s1535, 8
        %s1537 = scalar_lea.vmem %s17, %s1536
      $region112: #{asrf_with_brt_forward.4} parent=107 // pred_fallthru
        _
    $region108: #{asrf_with_brt_forward.4} parent=5 // pred_fallthru
      _
  $region6: #{asrf_with_brt_forward.4} parent=0 // loop_footer
    %s27 = sadd.s32 1, %s23
  $region7: #{asrf_with_brt_forward.4} parent=0 // loop_footer_branch
    %22 = sbr.rel target = $region3
  $region8: #{asrf_with_brt_forward.4} parent=0 // loop_exit
    _

// kernel: asrf_with_brt_forward.3
$region0: #{asrf_with_brt_forward.3}
  #allocation0 [shape = 'u32[]', space=smem, size = 0x4, offset = 0x4, fixed_abs, tag = 'smem constant byte address 0x4 - core index']
  #allocation1 [shape = 'u32[144,128]{1,0:T(1,128)}', space=vmem, size = 0x12000, scoped, tag = 'internal scratch']
  #allocation2 [shape = 'f32[8,16]{1,0:T(8,128)}', space=vmem, size = 0x1000, scoped, tag = 'scratch operand']
  #allocation3 [shape = 'f32[1,1]{1,0:T(1,128)S(1)}', space=vmem, size = 0x200, scoped, tag = 'scoped memory for asrf_with_brt_forward.3']
  %s0 = inlined_call_operand.vmem [shape: f32[16,32], index: 0, kind: input, shape index: {}]
  %s1 = inlined_call_operand.vmem [shape: f32[16,1], index: 1, kind: input, shape index: {}]
  %s2 = inlined_call_operand.vmem [shape: bf16[32,16], index: 2, kind: input, shape index: {}]
  %s3 = inlined_call_operand.vmem [shape: f32[1,16], index: 3, kind: input, shape index: {}]
  %s4 = inlined_call_operand.vmem [shape: f32[2,1,16], index: 4, kind: input, shape index: {}]
  %s5 = inlined_call_operand.vmem [shape: f32[2,1,16], index: 5, kind: input, shape index: {}]
  %s6 = inlined_call_operand.vmem [shape: bf16[2,16,24], index: 6, kind: input, shape index: {}]
  %s7 = inlined_call_operand.vmem [shape: bf16[2,8,16], index: 7, kind: input, shape index: {}]
  %s8 = inlined_call_operand.vmem [shape: f32[2,1,16], index: 8, kind: input, shape index: {}]
  %s9 = inlined_call_operand.vmem [shape: f32[2,1,16], index: 9, kind: input, shape index: {}]
  %s10 = inlined_call_operand.vmem [shape: f32[2,1,16], index: 10, kind: input, shape index: {}]
  %s11 = inlined_call_operand.vmem [shape: bf16[2,16,64], index: 11, kind: input, shape index: {}]
  %s12 = inlined_call_operand.vmem [shape: f32[2,1,64], index: 12, kind: input, shape index: {}]
  %s13 = inlined_call_operand.vmem [shape: bf16[2,64,16], index: 13, kind: input, shape index: {}]
  %s14 = inlined_call_operand.vmem [shape: f32[2,1,16], index: 14, kind: input, shape index: {}]
  %s15 = inlined_call_operand.vmem [shape: bf16[16,8], index: 15, kind: input, shape index: {}]
  %s16 = inlined_call_operand.vmem [shape: f32[1,8], index: 16, kind: input, shape index: {}]
  %s17 = inlined_call_operand.vmem [shape: bf16[16,1], index: 17, kind: input, shape index: {}]
  %s18 = inlined_call_operand.<no memory space> [shape: f32[1,1], index: 18, kind: input, shape index: {}]
  %s19 = inlined_call_operand.vmem [shape: f32[16,8], index: 19, kind: output, shape index: {0}]
  %s20 = inlined_call_operand.vmem [shape: f32[16,1], index: 20, kind: output, shape index: {1}]
  %21 = xla_tuple %s19, %s20
  %s22 = sld [smem:[#allocation0]]
  $region129: #{asrf_with_brt_forward.3} parent=0
    _
  %s24 = ssub.s32 1, %s22
  %s25 = scalar_select 0, %s24, %s22
  %v26 = vstv %s18
  %27 = vst [vmem:[#allocation3] sm:$0x1] %v26
  loop: start=0, step=1, limit=6
  $region2: #{asrf_with_brt_forward.3} parent=0 // loop_pre_header
    _
  $region3: #{asrf_with_brt_forward.3} parent=0 // loop_header
    %s29 = sphi 0, %s33
    %p30 = scmp.ge.s32.totalorder %s29, 6
    %s36 = sphi 0, %s48
    %s37 = sphi 0, %s44
    %s38 = sphi 0, %s36
    %s39 = sphi 0, %s37
    %s40 = sphi 0, %s38
    %s41 = sphi 0, %s39
    %s51 = sphi 0, %s53
    %s54 = sphi 0, %s51
    %s55 = sphi 0, %s54
    %s71 = sphi 0, %s55
    %s77 = sphi 0, %s79
    %s80 = sphi 0, %s77
    %s81 = sphi 0, %s80
    %s97 = sphi 0, %s81
    %s101 = sphi 0, %s101
    %s103 = sphi 0, %s101
    %s104 = sphi 0, %s103
    %s118 = sphi 0, %s104
    %s122 = sphi 0, %s122
    %s124 = sphi 0, %s122
    %s125 = sphi 0, %s124
    %s139 = sphi 0, %s125
    %s145 = sphi 0, %s147
    %s148 = sphi 0, %s145
    %s149 = sphi 0, %s148
    %s165 = sphi 0, %s149
    %s171 = sphi 0, %s173
    %s174 = sphi 0, %s171
    %s175 = sphi 0, %s174
    %s191 = sphi 0, %s175
    %s197 = sphi 0, %s199
    %s200 = sphi 0, %s197
    %s201 = sphi 0, %s200
    %s217 = sphi 0, %s201
    %s223 = sphi 0, %s225
    %s226 = sphi 0, %s223
    %s227 = sphi 0, %s226
    %s243 = sphi 0, %s227
    %s249 = sphi 0, %s251
    %s252 = sphi 0, %s249
    %s253 = sphi 0, %s252
    %s269 = sphi 0, %s253
    %s275 = sphi 0, %s277
    %s278 = sphi 0, %s275
    %s279 = sphi 0, %s278
    %s295 = sphi 0, %s279
    %s301 = sphi 0, %s303
    %s304 = sphi 0, %s301
    %s305 = sphi 0, %s304
    %s321 = sphi 0, %s305
    %s327 = sphi 0, %s329
    %s330 = sphi 0, %s327
    %s331 = sphi 0, %s330
    %s347 = sphi 0, %s331
    %s353 = sphi 0, %s355
    %s356 = sphi 0, %s353
    %s357 = sphi 0, %s356
    %s373 = sphi 0, %s357
    %s379 = sphi 0, %s381
    %s382 = sphi 0, %s379
    %s383 = sphi 0, %s382
    %s399 = sphi 0, %s383
    %s405 = sphi 0, %s407
    %s408 = sphi 0, %s405
    %s409 = sphi 0, %s408
    %s425 = sphi 0, %s409
    %s429 = sphi 0, %s429
    %s431 = sphi 0, %s429
    %s432 = sphi 0, %s431
    %s446 = sphi 0, %s432
    %s450 = sphi 0, %s450
    %s452 = sphi 0, %s450
    %s453 = sphi 0, %s452
    %s467 = sphi 0, %s453
    %s471 = sphi 0, %s471
    %s473 = sphi 0, %s471
    %s474 = sphi 0, %s473
    %s488 = sphi 0, %s474
    %s492 = sphi 0, %s492
    %s494 = sphi 0, %s492
    %s495 = sphi 0, %s494
    %s509 = sphi 0, %s495
    %s515 = sphi 0, %s517
    %s518 = sphi 0, %s515
    %s519 = sphi 0, %s518
    %s535 = sphi 0, %s519
    %s541 = sphi 0, %s543
    %s544 = sphi 0, %s541
    %s545 = sphi 0, %s544
    %s561 = sphi 0, %s545
  $region4: #{asrf_with_brt_forward.3} parent=0 // loop_header_branch
    %32 = sbr.rel (%p30) target = $region8
  $region5: #{asrf_with_brt_forward.3} parent=0 // loop_body
    %s34 = ssub.s32 %s29, 1
    %s35 = ssub.s32 %s29, 2
    %s42 = sadd.s32 1, %s37
    %p43 = scmp.ge.s32.totalorder %s42, 2
    %s44 = scalar_select %p43, 0, %s42
    %s45 = sadd.s32 1, %s36
    %s46 = scalar_select %p43, %s45, %s36
    %p47 = scmp.ge.s32.totalorder %s46, 2
    %s48 = scalar_select %p47, 0, %s46
    %s49 = ssub.s32 %s36, %s48
    %p50 = scmp.eq.s32.totalorder %s49, 0
    %s52 = sadd.s32 %s51, 1
    %s53 = scalar_select %p50, %s51, %s52
    %p56 = pneg %p50
    %p57 = scmp.eq.s32.totalorder %s29, 3
    %p58 = por %p56, %p57
    %p59 = scmp.ne.s32.totalorder %s51, %s54
    %p60 = scmp.eq.s32.totalorder %s29, 0
    %p61 = por %p59, %p60
    %p62 = scmp.ne.s32.totalorder %s51, %s54
    %p63 = scmp.eq.s32.totalorder %s34, 3
    %p64 = por %p62, %p63
    %p65 = scmp.ne.s32.totalorder %s54, %s55
    %p66 = scmp.eq.s32.totalorder %s34, 0
    %p67 = por %p65, %p66
    %p68 = scmp.ne.s32.totalorder %s54, %s55
    %p69 = scmp.eq.s32.totalorder %s35, 3
    %p70 = por %p68, %p69
    %p72 = scmp.ne.s32.totalorder %s55, %s71
    %p73 = scmp.eq.s32.totalorder %s35, 0
    %p74 = por %p72, %p73
    %s75 = ssub.s32 %s36, %s48
    %p76 = scmp.eq.s32.totalorder %s75, 0
    %s78 = sadd.s32 %s77, 1
    %s79 = scalar_select %p76, %s77, %s78
    %p82 = pneg %p76
    %p83 = scmp.eq.s32.totalorder %s29, 3
    %p84 = por %p82, %p83
    %p85 = scmp.ne.s32.totalorder %s77, %s80
    %p86 = scmp.eq.s32.totalorder %s29, 0
    %p87 = por %p85, %p86
    %p88 = scmp.ne.s32.totalorder %s77, %s80
    %p89 = scmp.eq.s32.totalorder %s34, 3
    %p90 = por %p88, %p89
    %p91 = scmp.ne.s32.totalorder %s80, %s81
    %p92 = scmp.eq.s32.totalorder %s34, 0
    %p93 = por %p91, %p92
    %p94 = scmp.ne.s32.totalorder %s80, %s81
    %p95 = scmp.eq.s32.totalorder %s35, 3
    %p96 = por %p94, %p95
    %p98 = scmp.ne.s32.totalorder %s81, %s97
    %p99 = scmp.eq.s32.totalorder %s35, 0
    %p100 = por %p98, %p99
    %s102 = sadd.s32 %s101, 1
    %p105 = scmp.eq.s32.totalorder %s29, 3
    %p106 = scmp.ne.s32.totalorder %s101, %s103
    %p107 = scmp.eq.s32.totalorder %s29, 0
    %p108 = por %p106, %p107
    %p109 = scmp.ne.s32.totalorder %s101, %s103
    %p110 = scmp.eq.s32.totalorder %s34, 3
    %p111 = por %p109, %p110
    %p112 = scmp.ne.s32.totalorder %s103, %s104
    %p113 = scmp.eq.s32.totalorder %s34, 0
    %p114 = por %p112, %p113
    %p115 = scmp.ne.s32.totalorder %s103, %s104
    %p116 = scmp.eq.s32.totalorder %s35, 3
    %p117 = por %p115, %p116
    %p119 = scmp.ne.s32.totalorder %s104, %s118
    %p120 = scmp.eq.s32.totalorder %s35, 0
    %p121 = por %p119, %p120
    %s123 = sadd.s32 %s122, 1
    %p126 = scmp.eq.s32.totalorder %s29, 3
    %p127 = scmp.ne.s32.totalorder %s122, %s124
    %p128 = scmp.eq.s32.totalorder %s29, 0
    %p129 = por %p127, %p128
    %p130 = scmp.ne.s32.totalorder %s122, %s124
    %p131 = scmp.eq.s32.totalorder %s34, 3
    %p132 = por %p130, %p131
    %p133 = scmp.ne.s32.totalorder %s124, %s125
    %p134 = scmp.eq.s32.totalorder %s34, 0
    %p135 = por %p133, %p134
    %p136 = scmp.ne.s32.totalorder %s124, %s125
    %p137 = scmp.eq.s32.totalorder %s35, 3
    %p138 = por %p136, %p137
    %p140 = scmp.ne.s32.totalorder %s125, %s139
    %p141 = scmp.eq.s32.totalorder %s35, 0
    %p142 = por %p140, %p141
    %s143 = ssub.s32 %s37, %s44
    %p144 = scmp.eq.s32.totalorder %s143, 0
    %s146 = sadd.s32 %s145, 1
    %s147 = scalar_select %p144, %s145, %s146
    %p150 = pneg %p144
    %p151 = scmp.eq.s32.totalorder %s29, 3
    %p152 = por %p150, %p151
    %p153 = scmp.ne.s32.totalorder %s145, %s148
    %p154 = scmp.eq.s32.totalorder %s29, 0
    %p155 = por %p153, %p154
    %p156 = scmp.ne.s32.totalorder %s145, %s148
    %p157 = scmp.eq.s32.totalorder %s34, 3
    %p158 = por %p156, %p157
    %p159 = scmp.ne.s32.totalorder %s148, %s149
    %p160 = scmp.eq.s32.totalorder %s34, 0
    %p161 = por %p159, %p160
    %p162 = scmp.ne.s32.totalorder %s148, %s149
    %p163 = scmp.eq.s32.totalorder %s35, 3
    %p164 = por %p162, %p163
    %p166 = scmp.ne.s32.totalorder %s149, %s165
    %p167 = scmp.eq.s32.totalorder %s35, 0
    %p168 = por %p166, %p167
    %s169 = ssub.s32 %s37, %s44
    %p170 = scmp.eq.s32.totalorder %s169, 0
    %s172 = sadd.s32 %s171, 1
    %s173 = scalar_select %p170, %s171, %s172
    %p176 = pneg %p170
    %p177 = scmp.eq.s32.totalorder %s29, 3
    %p178 = por %p176, %p177
    %p179 = scmp.ne.s32.totalorder %s171, %s174
    %p180 = scmp.eq.s32.totalorder %s29, 0
    %p181 = por %p179, %p180
    %p182 = scmp.ne.s32.totalorder %s171, %s174
    %p183 = scmp.eq.s32.totalorder %s34, 3
    %p184 = por %p182, %p183
    %p185 = scmp.ne.s32.totalorder %s174, %s175
    %p186 = scmp.eq.s32.totalorder %s34, 0
    %p187 = por %p185, %p186
    %p188 = scmp.ne.s32.totalorder %s174, %s175
    %p189 = scmp.eq.s32.totalorder %s35, 3
    %p190 = por %p188, %p189
    %p192 = scmp.ne.s32.totalorder %s175, %s191
    %p193 = scmp.eq.s32.totalorder %s35, 0
    %p194 = por %p192, %p193
    %s195 = ssub.s32 %s37, %s44
    %p196 = scmp.eq.s32.totalorder %s195, 0
    %s198 = sadd.s32 %s197, 1
    %s199 = scalar_select %p196, %s197, %s198
    %p202 = pneg %p196
    %p203 = scmp.eq.s32.totalorder %s29, 3
    %p204 = por %p202, %p203
    %p205 = scmp.ne.s32.totalorder %s197, %s200
    %p206 = scmp.eq.s32.totalorder %s29, 0
    %p207 = por %p205, %p206
    %p208 = scmp.ne.s32.totalorder %s197, %s200
    %p209 = scmp.eq.s32.totalorder %s34, 3
    %p210 = por %p208, %p209
    %p211 = scmp.ne.s32.totalorder %s200, %s201
    %p212 = scmp.eq.s32.totalorder %s34, 0
    %p213 = por %p211, %p212
    %p214 = scmp.ne.s32.totalorder %s200, %s201
    %p215 = scmp.eq.s32.totalorder %s35, 3
    %p216 = por %p214, %p215
    %p218 = scmp.ne.s32.totalorder %s201, %s217
    %p219 = scmp.eq.s32.totalorder %s35, 0
    %p220 = por %p218, %p219
    %s221 = ssub.s32 %s37, %s44
    %p222 = scmp.eq.s32.totalorder %s221, 0
    %s224 = sadd.s32 %s223, 1
    %s225 = scalar_select %p222, %s223, %s224
    %p228 = pneg %p222
    %p229 = scmp.eq.s32.totalorder %s29, 3
    %p230 = por %p228, %p229
    %p231 = scmp.ne.s32.totalorder %s223, %s226
    %p232 = scmp.eq.s32.totalorder %s29, 0
    %p233 = por %p231, %p232
    %p234 = scmp.ne.s32.totalorder %s223, %s226
    %p235 = scmp.eq.s32.totalorder %s34, 3
    %p236 = por %p234, %p235
    %p237 = scmp.ne.s32.totalorder %s226, %s227
    %p238 = scmp.eq.s32.totalorder %s34, 0
    %p239 = por %p237, %p238
    %p240 = scmp.ne.s32.totalorder %s226, %s227
    %p241 = scmp.eq.s32.totalorder %s35, 3
    %p242 = por %p240, %p241
    %p244 = scmp.ne.s32.totalorder %s227, %s243
    %p245 = scmp.eq.s32.totalorder %s35, 0
    %p246 = por %p244, %p245
    %s247 = ssub.s32 %s37, %s44
    %p248 = scmp.eq.s32.totalorder %s247, 0
    %s250 = sadd.s32 %s249, 1
    %s251 = scalar_select %p248, %s249, %s250
    %p254 = pneg %p248
    %p255 = scmp.eq.s32.totalorder %s29, 3
    %p256 = por %p254, %p255
    %p257 = scmp.ne.s32.totalorder %s249, %s252
    %p258 = scmp.eq.s32.totalorder %s29, 0
    %p259 = por %p257, %p258
    %p260 = scmp.ne.s32.totalorder %s249, %s252
    %p261 = scmp.eq.s32.totalorder %s34, 3
    %p262 = por %p260, %p261
    %p263 = scmp.ne.s32.totalorder %s252, %s253
    %p264 = scmp.eq.s32.totalorder %s34, 0
    %p265 = por %p263, %p264
    %p266 = scmp.ne.s32.totalorder %s252, %s253
    %p267 = scmp.eq.s32.totalorder %s35, 3
    %p268 = por %p266, %p267
    %p270 = scmp.ne.s32.totalorder %s253, %s269
    %p271 = scmp.eq.s32.totalorder %s35, 0
    %p272 = por %p270, %p271
    %s273 = ssub.s32 %s37, %s44
    %p274 = scmp.eq.s32.totalorder %s273, 0
    %s276 = sadd.s32 %s275, 1
    %s277 = scalar_select %p274, %s275, %s276
    %p280 = pneg %p274
    %p281 = scmp.eq.s32.totalorder %s29, 3
    %p282 = por %p280, %p281
    %p283 = scmp.ne.s32.totalorder %s275, %s278
    %p284 = scmp.eq.s32.totalorder %s29, 0
    %p285 = por %p283, %p284
    %p286 = scmp.ne.s32.totalorder %s275, %s278
    %p287 = scmp.eq.s32.totalorder %s34, 3
    %p288 = por %p286, %p287
    %p289 = scmp.ne.s32.totalorder %s278, %s279
    %p290 = scmp.eq.s32.totalorder %s34, 0
    %p291 = por %p289, %p290
    %p292 = scmp.ne.s32.totalorder %s278, %s279
    %p293 = scmp.eq.s32.totalorder %s35, 3
    %p294 = por %p292, %p293
    %p296 = scmp.ne.s32.totalorder %s279, %s295
    %p297 = scmp.eq.s32.totalorder %s35, 0
    %p298 = por %p296, %p297
    %s299 = ssub.s32 %s37, %s44
    %p300 = scmp.eq.s32.totalorder %s299, 0
    %s302 = sadd.s32 %s301, 1
    %s303 = scalar_select %p300, %s301, %s302
    %p306 = pneg %p300
    %p307 = scmp.eq.s32.totalorder %s29, 3
    %p308 = por %p306, %p307
    %p309 = scmp.ne.s32.totalorder %s301, %s304
    %p310 = scmp.eq.s32.totalorder %s29, 0
    %p311 = por %p309, %p310
    %p312 = scmp.ne.s32.totalorder %s301, %s304
    %p313 = scmp.eq.s32.totalorder %s34, 3
    %p314 = por %p312, %p313
    %p315 = scmp.ne.s32.totalorder %s304, %s305
    %p316 = scmp.eq.s32.totalorder %s34, 0
    %p317 = por %p315, %p316
    %p318 = scmp.ne.s32.totalorder %s304, %s305
    %p319 = scmp.eq.s32.totalorder %s35, 3
    %p320 = por %p318, %p319
    %p322 = scmp.ne.s32.totalorder %s305, %s321
    %p323 = scmp.eq.s32.totalorder %s35, 0
    %p324 = por %p322, %p323
    %s325 = ssub.s32 %s37, %s44
    %p326 = scmp.eq.s32.totalorder %s325, 0
    %s328 = sadd.s32 %s327, 1
    %s329 = scalar_select %p326, %s327, %s328
    %p332 = pneg %p326
    %p333 = scmp.eq.s32.totalorder %s29, 3
    %p334 = por %p332, %p333
    %p335 = scmp.ne.s32.totalorder %s327, %s330
    %p336 = scmp.eq.s32.totalorder %s29, 0
    %p337 = por %p335, %p336
    %p338 = scmp.ne.s32.totalorder %s327, %s330
    %p339 = scmp.eq.s32.totalorder %s34, 3
    %p340 = por %p338, %p339
    %p341 = scmp.ne.s32.totalorder %s330, %s331
    %p342 = scmp.eq.s32.totalorder %s34, 0
    %p343 = por %p341, %p342
    %p344 = scmp.ne.s32.totalorder %s330, %s331
    %p345 = scmp.eq.s32.totalorder %s35, 3
    %p346 = por %p344, %p345
    %p348 = scmp.ne.s32.totalorder %s331, %s347
    %p349 = scmp.eq.s32.totalorder %s35, 0
    %p350 = por %p348, %p349
    %s351 = ssub.s32 %s37, %s44
    %p352 = scmp.eq.s32.totalorder %s351, 0
    %s354 = sadd.s32 %s353, 1
    %s355 = scalar_select %p352, %s353, %s354
    %p358 = pneg %p352
    %p359 = scmp.eq.s32.totalorder %s29, 3
    %p360 = por %p358, %p359
    %p361 = scmp.ne.s32.totalorder %s353, %s356
    %p362 = scmp.eq.s32.totalorder %s29, 0
    %p363 = por %p361, %p362
    %p364 = scmp.ne.s32.totalorder %s353, %s356
    %p365 = scmp.eq.s32.totalorder %s34, 3
    %p366 = por %p364, %p365
    %p367 = scmp.ne.s32.totalorder %s356, %s357
    %p368 = scmp.eq.s32.totalorder %s34, 0
    %p369 = por %p367, %p368
    %p370 = scmp.ne.s32.totalorder %s356, %s357
    %p371 = scmp.eq.s32.totalorder %s35, 3
    %p372 = por %p370, %p371
    %p374 = scmp.ne.s32.totalorder %s357, %s373
    %p375 = scmp.eq.s32.totalorder %s35, 0
    %p376 = por %p374, %p375
    %s377 = ssub.s32 %s37, %s44
    %p378 = scmp.eq.s32.totalorder %s377, 0
    %s380 = sadd.s32 %s379, 1
    %s381 = scalar_select %p378, %s379, %s380
    %p384 = pneg %p378
    %p385 = scmp.eq.s32.totalorder %s29, 3
    %p386 = por %p384, %p385
    %p387 = scmp.ne.s32.totalorder %s379, %s382
    %p388 = scmp.eq.s32.totalorder %s29, 0
    %p389 = por %p387, %p388
    %p390 = scmp.ne.s32.totalorder %s379, %s382
    %p391 = scmp.eq.s32.totalorder %s34, 3
    %p392 = por %p390, %p391
    %p393 = scmp.ne.s32.totalorder %s382, %s383
    %p394 = scmp.eq.s32.totalorder %s34, 0
    %p395 = por %p393, %p394
    %p396 = scmp.ne.s32.totalorder %s382, %s383
    %p397 = scmp.eq.s32.totalorder %s35, 3
    %p398 = por %p396, %p397
    %p400 = scmp.ne.s32.totalorder %s383, %s399
    %p401 = scmp.eq.s32.totalorder %s35, 0
    %p402 = por %p400, %p401
    %s403 = ssub.s32 %s37, %s44
    %p404 = scmp.eq.s32.totalorder %s403, 0
    %s406 = sadd.s32 %s405, 1
    %s407 = scalar_select %p404, %s405, %s406
    %p410 = pneg %p404
    %p411 = scmp.eq.s32.totalorder %s29, 3
    %p412 = por %p410, %p411
    %p413 = scmp.ne.s32.totalorder %s405, %s408
    %p414 = scmp.eq.s32.totalorder %s29, 0
    %p415 = por %p413, %p414
    %p416 = scmp.ne.s32.totalorder %s405, %s408
    %p417 = scmp.eq.s32.totalorder %s34, 3
    %p418 = por %p416, %p417
    %p419 = scmp.ne.s32.totalorder %s408, %s409
    %p420 = scmp.eq.s32.totalorder %s34, 0
    %p421 = por %p419, %p420
    %p422 = scmp.ne.s32.totalorder %s408, %s409
    %p423 = scmp.eq.s32.totalorder %s35, 3
    %p424 = por %p422, %p423
    %p426 = scmp.ne.s32.totalorder %s409, %s425
    %p427 = scmp.eq.s32.totalorder %s35, 0
    %p428 = por %p426, %p427
    %s430 = sadd.s32 %s429, 1
    %p433 = scmp.eq.s32.totalorder %s29, 3
    %p434 = scmp.ne.s32.totalorder %s429, %s431
    %p435 = scmp.eq.s32.totalorder %s29, 0
    %p436 = por %p434, %p435
    %p437 = scmp.ne.s32.totalorder %s429, %s431
    %p438 = scmp.eq.s32.totalorder %s34, 3
    %p439 = por %p437, %p438
    %p440 = scmp.ne.s32.totalorder %s431, %s432
    %p441 = scmp.eq.s32.totalorder %s34, 0
    %p442 = por %p440, %p441
    %p443 = scmp.ne.s32.totalorder %s431, %s432
    %p444 = scmp.eq.s32.totalorder %s35, 3
    %p445 = por %p443, %p444
    %p447 = scmp.ne.s32.totalorder %s432, %s446
    %p448 = scmp.eq.s32.totalorder %s35, 0
    %p449 = por %p447, %p448
    %s451 = sadd.s32 %s450, 1
    %p454 = scmp.eq.s32.totalorder %s29, 3
    %p455 = scmp.ne.s32.totalorder %s450, %s452
    %p456 = scmp.eq.s32.totalorder %s29, 0
    %p457 = por %p455, %p456
    %p458 = scmp.ne.s32.totalorder %s450, %s452
    %p459 = scmp.eq.s32.totalorder %s34, 3
    %p460 = por %p458, %p459
    %p461 = scmp.ne.s32.totalorder %s452, %s453
    %p462 = scmp.eq.s32.totalorder %s34, 0
    %p463 = por %p461, %p462
    %p464 = scmp.ne.s32.totalorder %s452, %s453
    %p465 = scmp.eq.s32.totalorder %s35, 3
    %p466 = por %p464, %p465
    %p468 = scmp.ne.s32.totalorder %s453, %s467
    %p469 = scmp.eq.s32.totalorder %s35, 0
    %p470 = por %p468, %p469
    %s472 = sadd.s32 %s471, 1
    %p475 = scmp.eq.s32.totalorder %s29, 3
    %p476 = scmp.ne.s32.totalorder %s471, %s473
    %p477 = scmp.eq.s32.totalorder %s29, 0
    %p478 = por %p476, %p477
    %p479 = scmp.ne.s32.totalorder %s471, %s473
    %p480 = scmp.eq.s32.totalorder %s34, 3
    %p481 = por %p479, %p480
    %p482 = scmp.ne.s32.totalorder %s473, %s474
    %p483 = scmp.eq.s32.totalorder %s34, 0
    %p484 = por %p482, %p483
    %p485 = scmp.ne.s32.totalorder %s473, %s474
    %p486 = scmp.eq.s32.totalorder %s35, 3
    %p487 = por %p485, %p486
    %p489 = scmp.ne.s32.totalorder %s474, %s488
    %p490 = scmp.eq.s32.totalorder %s35, 0
    %p491 = por %p489, %p490
    %s493 = sadd.s32 %s492, 1
    %p496 = scmp.eq.s32.totalorder %s29, 3
    %p497 = scmp.ne.s32.totalorder %s492, %s494
    %p498 = scmp.eq.s32.totalorder %s29, 0
    %p499 = por %p497, %p498
    %p500 = scmp.ne.s32.totalorder %s492, %s494
    %p501 = scmp.eq.s32.totalorder %s34, 3
    %p502 = por %p500, %p501
    %p503 = scmp.ne.s32.totalorder %s494, %s495
    %p504 = scmp.eq.s32.totalorder %s34, 0
    %p505 = por %p503, %p504
    %p506 = scmp.ne.s32.totalorder %s494, %s495
    %p507 = scmp.eq.s32.totalorder %s35, 3
    %p508 = por %p506, %p507
    %p510 = scmp.ne.s32.totalorder %s495, %s509
    %p511 = scmp.eq.s32.totalorder %s35, 0
    %p512 = por %p510, %p511
    %s513 = ssub.s32 %s36, %s48
    %p514 = scmp.eq.s32.totalorder %s513, 0
    %s516 = sadd.s32 %s515, 1
    %s517 = scalar_select %p514, %s515, %s516
    %p520 = pneg %p514
    %p521 = scmp.eq.s32.totalorder %s29, 3
    %p522 = por %p520, %p521
    %p523 = scmp.ne.s32.totalorder %s515, %s518
    %p524 = scmp.eq.s32.totalorder %s29, 0
    %p525 = por %p523, %p524
    %p526 = scmp.ne.s32.totalorder %s515, %s518
    %p527 = scmp.eq.s32.totalorder %s34, 3
    %p528 = por %p526, %p527
    %p529 = scmp.ne.s32.totalorder %s518, %s519
    %p530 = scmp.eq.s32.totalorder %s34, 0
    %p531 = por %p529, %p530
    %p532 = scmp.ne.s32.totalorder %s518, %s519
    %p533 = scmp.eq.s32.totalorder %s35, 3
    %p534 = por %p532, %p533
    %p536 = scmp.ne.s32.totalorder %s519, %s535
    %p537 = scmp.eq.s32.totalorder %s35, 0
    %p538 = por %p536, %p537
    %s539 = ssub.s32 %s36, %s48
    %p540 = scmp.eq.s32.totalorder %s539, 0
    %s542 = sadd.s32 %s541, 1
    %s543 = scalar_select %p540, %s541, %s542
    %p546 = pneg %p540
    %p547 = scmp.eq.s32.totalorder %s29, 3
    %p548 = por %p546, %p547
    %p549 = scmp.ne.s32.totalorder %s541, %s544
    %p550 = scmp.eq.s32.totalorder %s29, 0
    %p551 = por %p549, %p550
    %p552 = scmp.ne.s32.totalorder %s541, %s544
    %p553 = scmp.eq.s32.totalorder %s34, 3
    %p554 = por %p552, %p553
    %p555 = scmp.ne.s32.totalorder %s544, %s545
    %p556 = scmp.eq.s32.totalorder %s34, 0
    %p557 = por %p555, %p556
    %p558 = scmp.ne.s32.totalorder %s544, %s545
    %p559 = scmp.eq.s32.totalorder %s35, 3
    %p560 = por %p558, %p559
    %p562 = scmp.ne.s32.totalorder %s545, %s561
    %p563 = scmp.eq.s32.totalorder %s35, 0
    %p564 = por %p562, %p563
    %p565 = scmp.le.s32.totalorder 1, %s29
    %p566 = scmp.lt.s32.totalorder %s29, 5
    %p567 = pnand %p565, %p566
    %p568 = pneg %p567
    // Predicated region
    $region9: #{asrf_with_brt_forward.3} parent=5 // pred_check
      _
    $region10: #{asrf_with_brt_forward.3} parent=5 // pred_check_branch
      %570 = sbr.rel (%p567) target = $region12
    $region11: #{asrf_with_brt_forward.3} parent=5 // pred_region
      %s571 = ssub.s32 %s29, 1
      // Predicated region
      $region13: #{asrf_with_brt_forward.3} parent=11 // pred_check
        %p572 = pneg %p114
      $region14: #{asrf_with_brt_forward.3} parent=11 // pred_check_branch
        %574 = sbr.rel (%p572) target = $region16
      $region15: #{asrf_with_brt_forward.3} parent=11 // pred_region
        _
      $region16: #{asrf_with_brt_forward.3} parent=11 // pred_fallthru
        _
      // Predicated region
      $region17: #{asrf_with_brt_forward.3} parent=11 // pred_check
        %p575 = pneg %p135
      $region18: #{asrf_with_brt_forward.3} parent=11 // pred_check_branch
        %577 = sbr.rel (%p575) target = $region20
      $region19: #{asrf_with_brt_forward.3} parent=11 // pred_region
        _
      $region20: #{asrf_with_brt_forward.3} parent=11 // pred_fallthru
        _
      // Predicated region
      $region21: #{asrf_with_brt_forward.3} parent=11 // pred_check
        %p578 = pneg %p442
      $region22: #{asrf_with_brt_forward.3} parent=11 // pred_check_branch
        %580 = sbr.rel (%p578) target = $region24
      $region23: #{asrf_with_brt_forward.3} parent=11 // pred_region
        _
      $region24: #{asrf_with_brt_forward.3} parent=11 // pred_fallthru
        _
      // Predicated region
      $region25: #{asrf_with_brt_forward.3} parent=11 // pred_check
        %p581 = pneg %p463
      $region26: #{asrf_with_brt_forward.3} parent=11 // pred_check_branch
        %583 = sbr.rel (%p581) target = $region28
      $region27: #{asrf_with_brt_forward.3} parent=11 // pred_region
        _
      $region28: #{asrf_with_brt_forward.3} parent=11 // pred_fallthru
        _
      // Predicated region
      $region29: #{asrf_with_brt_forward.3} parent=11 // pred_check
        %p584 = pneg %p484
      $region30: #{asrf_with_brt_forward.3} parent=11 // pred_check_branch
        %586 = sbr.rel (%p584) target = $region32
      $region31: #{asrf_with_brt_forward.3} parent=11 // pred_region
        _
      $region32: #{asrf_with_brt_forward.3} parent=11 // pred_fallthru
        _
      // Predicated region
      $region33: #{asrf_with_brt_forward.3} parent=11 // pred_check
        %p587 = pneg %p505
      $region34: #{asrf_with_brt_forward.3} parent=11 // pred_check_branch
        %589 = sbr.rel (%p587) target = $region36
      $region35: #{asrf_with_brt_forward.3} parent=11 // pred_region
        _
      $region36: #{asrf_with_brt_forward.3} parent=11 // pred_fallthru
        _
    $region12: #{asrf_with_brt_forward.3} parent=5 // pred_fallthru
      _
    %p590 = scmp.lt.s32.totalorder %s29, 4
    // Predicated region
    $region37: #{asrf_with_brt_forward.3} parent=5 // pred_check
      %p591 = pneg %p590
    $region38: #{asrf_with_brt_forward.3} parent=5 // pred_check_branch
      %593 = sbr.rel (%p591) target = $region40
    $region39: #{asrf_with_brt_forward.3} parent=5 // pred_region
      // Predicated region
      $region41: #{asrf_with_brt_forward.3} parent=39 // pred_check
        %p594 = pneg %p61
      $region42: #{asrf_with_brt_forward.3} parent=39 // pred_check_branch
        %596 = sbr.rel (%p594) target = $region44
      $region43: #{asrf_with_brt_forward.3} parent=39 // pred_region
        %p597 = scmp.lt.s32.totalorder %s36, 1
        %s598 = scalar_select %p597, %s36, 1
        %s599 = smul.addr %s598, 8
        %s600 = scalar_lea.vmem %s0, %s599
      $region44: #{asrf_with_brt_forward.3} parent=39 // pred_fallthru
        _
      // Predicated region
      $region45: #{asrf_with_brt_forward.3} parent=39 // pred_check
        %p601 = pneg %p87
      $region46: #{asrf_with_brt_forward.3} parent=39 // pred_check_branch
        %603 = sbr.rel (%p601) target = $region48
      $region47: #{asrf_with_brt_forward.3} parent=39 // pred_region
        %p604 = scmp.lt.s32.totalorder %s36, 1
        %s605 = scalar_select %p604, %s36, 1
        %s606 = smul.addr %s605, 8
        %s607 = scalar_lea.vmem %s1, %s606
      $region48: #{asrf_with_brt_forward.3} parent=39 // pred_fallthru
        _
      // Predicated region
      $region49: #{asrf_with_brt_forward.3} parent=39 // pred_check
        %p608 = pneg %p155
      $region50: #{asrf_with_brt_forward.3} parent=39 // pred_check_branch
        %610 = sbr.rel (%p608) target = $region52
      $region51: #{asrf_with_brt_forward.3} parent=39 // pred_region
        %p611 = scmp.lt.s32.totalorder %s37, 1
        %s612 = scalar_select %p611, %s37, 1
        %s613 = scalar_lea.vmem %s4, %s612
      $region52: #{asrf_with_brt_forward.3} parent=39 // pred_fallthru
        _
      // Predicated region
      $region53: #{asrf_with_brt_forward.3} parent=39 // pred_check
        %p614 = pneg %p181
      $region54: #{asrf_with_brt_forward.3} parent=39 // pred_check_branch
        %616 = sbr.rel (%p614) target = $region56
      $region55: #{asrf_with_brt_forward.3} parent=39 // pred_region
        %p617 = scmp.lt.s32.totalorder %s37, 1
        %s618 = scalar_select %p617, %s37, 1
        %s619 = scalar_lea.vmem %s5, %s618
      $region56: #{asrf_with_brt_forward.3} parent=39 // pred_fallthru
        _
      // Predicated region
      $region57: #{asrf_with_brt_forward.3} parent=39 // pred_check
        %p620 = pneg %p207
      $region58: #{asrf_with_brt_forward.3} parent=39 // pred_check_branch
        %622 = sbr.rel (%p620) target = $region60
      $region59: #{asrf_with_brt_forward.3} parent=39 // pred_region
        %p623 = scmp.lt.s32.totalorder %s37, 1
        %s624 = scalar_select %p623, %s37, 1
        %s625 = smul.addr %s624, 2
        %s626 = smul.addr %s625, 4
        %s627 = scalar_lea.vmem %s6, %s626
      $region60: #{asrf_with_brt_forward.3} parent=39 // pred_fallthru
        _
      // Predicated region
      $region61: #{asrf_with_brt_forward.3} parent=39 // pred_check
        %p628 = pneg %p233
      $region62: #{asrf_with_brt_forward.3} parent=39 // pred_check_branch
        %630 = sbr.rel (%p628) target = $region64
      $region63: #{asrf_with_brt_forward.3} parent=39 // pred_region
        %p631 = scmp.lt.s32.totalorder %s37, 1
        %s632 = scalar_select %p631, %s37, 1
        %s633 = smul.addr %s632, 4
        %s634 = scalar_lea.vmem %s7, %s633
      $region64: #{asrf_with_brt_forward.3} parent=39 // pred_fallthru
        _
      // Predicated region
      $region65: #{asrf_with_brt_forward.3} parent=39 // pred_check
        %p635 = pneg %p259
      $region66: #{asrf_with_brt_forward.3} parent=39 // pred_check_branch
        %637 = sbr.rel (%p635) target = $region68
      $region67: #{asrf_with_brt_forward.3} parent=39 // pred_region
        %p638 = scmp.lt.s32.totalorder %s37, 1
        %s639 = scalar_select %p638, %s37, 1
        %s640 = scalar_lea.vmem %s8, %s639
      $region68: #{asrf_with_brt_forward.3} parent=39 // pred_fallthru
        _
      // Predicated region
      $region69: #{asrf_with_brt_forward.3} parent=39 // pred_check
        %p641 = pneg %p285
      $region70: #{asrf_with_brt_forward.3} parent=39 // pred_check_branch
        %643 = sbr.rel (%p641) target = $region72
      $region71: #{asrf_with_brt_forward.3} parent=39 // pred_region
        %p644 = scmp.lt.s32.totalorder %s37, 1
        %s645 = scalar_select %p644, %s37, 1
        %s646 = scalar_lea.vmem %s9, %s645
      $region72: #{asrf_with_brt_forward.3} parent=39 // pred_fallthru
        _
      // Predicated region
      $region73: #{asrf_with_brt_forward.3} parent=39 // pred_check
        %p647 = pneg %p311
      $region74: #{asrf_with_brt_forward.3} parent=39 // pred_check_branch
        %649 = sbr.rel (%p647) target = $region76
      $region75: #{asrf_with_brt_forward.3} parent=39 // pred_region
        %p650 = scmp.lt.s32.totalorder %s37, 1
        %s651 = scalar_select %p650, %s37, 1
        %s652 = scalar_lea.vmem %s10, %s651
      $region76: #{asrf_with_brt_forward.3} parent=39 // pred_fallthru
        _
      // Predicated region
      $region77: #{asrf_with_brt_forward.3} parent=39 // pred_check
        %p653 = pneg %p337
      $region78: #{asrf_with_brt_forward.3} parent=39 // pred_check_branch
        %655 = sbr.rel (%p653) target = $region80
      $region79: #{asrf_with_brt_forward.3} parent=39 // pred_region
        %p656 = scmp.lt.s32.totalorder %s37, 1
        %s657 = scalar_select %p656, %s37, 1
        %s658 = smul.addr %s657, 2
        %s659 = smul.addr %s658, 4
        %s660 = scalar_lea.vmem %s11, %s659
      $region80: #{asrf_with_brt_forward.3} parent=39 // pred_fallthru
        _
      // Predicated region
      $region81: #{asrf_with_brt_forward.3} parent=39 // pred_check
        %p661 = pneg %p363
      $region82: #{asrf_with_brt_forward.3} parent=39 // pred_check_branch
        %663 = sbr.rel (%p661) target = $region84
      $region83: #{asrf_with_brt_forward.3} parent=39 // pred_region
        %p664 = scmp.lt.s32.totalorder %s37, 1
        %s665 = scalar_select %p664, %s37, 1
        %s666 = scalar_lea.vmem %s12, %s665
      $region84: #{asrf_with_brt_forward.3} parent=39 // pred_fallthru
        _
      // Predicated region
      $region85: #{asrf_with_brt_forward.3} parent=39 // pred_check
        %p667 = pneg %p389
      $region86: #{asrf_with_brt_forward.3} parent=39 // pred_check_branch
        %669 = sbr.rel (%p667) target = $region88
      $region87: #{asrf_with_brt_forward.3} parent=39 // pred_region
        %p670 = scmp.lt.s32.totalorder %s37, 1
        %s671 = scalar_select %p670, %s37, 1
        %s672 = smul.addr %s671, 8
        %s673 = smul.addr %s672, 4
        %s674 = scalar_lea.vmem %s13, %s673
      $region88: #{asrf_with_brt_forward.3} parent=39 // pred_fallthru
        _
      // Predicated region
      $region89: #{asrf_with_brt_forward.3} parent=39 // pred_check
        %p675 = pneg %p415
      $region90: #{asrf_with_brt_forward.3} parent=39 // pred_check_branch
        %677 = sbr.rel (%p675) target = $region92
      $region91: #{asrf_with_brt_forward.3} parent=39 // pred_region
        %p678 = scmp.lt.s32.totalorder %s37, 1
        %s679 = scalar_select %p678, %s37, 1
        %s680 = scalar_lea.vmem %s14, %s679
      $region92: #{asrf_with_brt_forward.3} parent=39 // pred_fallthru
        _
    $region40: #{asrf_with_brt_forward.3} parent=5 // pred_fallthru
      _
    %p681 = scmp.le.s32.totalorder 1, %s29
    %p682 = scmp.lt.s32.totalorder %s29, 5
    %p683 = pnand %p681, %p682
    %p684 = pneg %p683
    // Predicated region
    $region93: #{asrf_with_brt_forward.3} parent=5 // pred_check
      _
    $region94: #{asrf_with_brt_forward.3} parent=5 // pred_check_branch
      %686 = sbr.rel (%p683) target = $region96
    $region95: #{asrf_with_brt_forward.3} parent=5 // pred_region
      %s687 = ssub.s32 %s29, 1
      %p688 = scmp.lt.s32.totalorder %s38, 1
      %s689 = scalar_select %p688, %s38, 1
      %s690 = smul.addr %s689, 8
      %s691 = scalar_lea.vmem %s0, %s690
      %p692 = pneg %p67
      %p693 = pneg %p64
      %p694 = scmp.lt.s32.totalorder %s38, 1
      %s695 = scalar_select %p694, %s38, 1
      %s696 = smul.addr %s695, 8
      %s697 = scalar_lea.vmem %s1, %s696
      %p698 = pneg %p93
      %p699 = pneg %p90
      %p700 = pneg %p114
      %p701 = pneg %p111
      %p702 = pneg %p135
      %p703 = pneg %p132
      %p704 = scmp.lt.s32.totalorder %s39, 1
      %s705 = scalar_select %p704, %s39, 1
      %s706 = scalar_lea.vmem %s4, %s705
      %p707 = pneg %p161
      %p708 = pneg %p158
      %p709 = scmp.lt.s32.totalorder %s39, 1
      %s710 = scalar_select %p709, %s39, 1
      %s711 = scalar_lea.vmem %s5, %s710
      %p712 = pneg %p187
      %p713 = pneg %p184
      %p714 = scmp.lt.s32.totalorder %s39, 1
      %s715 = scalar_select %p714, %s39, 1
      %s716 = smul.addr %s715, 2
      %s717 = smul.addr %s716, 4
      %s718 = scalar_lea.vmem %s6, %s717
      %p719 = pneg %p213
      %p720 = pneg %p210
      %p721 = scmp.lt.s32.totalorder %s39, 1
      %s722 = scalar_select %p721, %s39, 1
      %s723 = smul.addr %s722, 4
      %s724 = scalar_lea.vmem %s7, %s723
      %p725 = pneg %p239
      %p726 = pneg %p236
      %p727 = scmp.lt.s32.totalorder %s39, 1
      %s728 = scalar_select %p727, %s39, 1
      %s729 = scalar_lea.vmem %s8, %s728
      %p730 = pneg %p265
      %p731 = pneg %p262
      %p732 = scmp.lt.s32.totalorder %s39, 1
      %s733 = scalar_select %p732, %s39, 1
      %s734 = scalar_lea.vmem %s9, %s733
      %p735 = pneg %p291
      %p736 = pneg %p288
      %p737 = scmp.lt.s32.totalorder %s39, 1
      %s738 = scalar_select %p737, %s39, 1
      %s739 = scalar_lea.vmem %s10, %s738
      %p740 = pneg %p317
      %p741 = pneg %p314
      %p742 = scmp.lt.s32.totalorder %s39, 1
      %s743 = scalar_select %p742, %s39, 1
      %s744 = smul.addr %s743, 2
      %s745 = smul.addr %s744, 4
      %s746 = scalar_lea.vmem %s11, %s745
      %p747 = pneg %p343
      %p748 = pneg %p340
      %p749 = scmp.lt.s32.totalorder %s39, 1
      %s750 = scalar_select %p749, %s39, 1
      %s751 = scalar_lea.vmem %s12, %s750
      %p752 = pneg %p369
      %p753 = pneg %p366
      %p754 = scmp.lt.s32.totalorder %s39, 1
      %s755 = scalar_select %p754, %s39, 1
      %s756 = smul.addr %s755, 8
      %s757 = smul.addr %s756, 4
      %s758 = scalar_lea.vmem %s13, %s757
      %p759 = pneg %p395
      %p760 = pneg %p392
      %p761 = scmp.lt.s32.totalorder %s39, 1
      %s762 = scalar_select %p761, %s39, 1
      %s763 = scalar_lea.vmem %s14, %s762
      %p764 = pneg %p421
      %p765 = pneg %p418
      %p766 = pneg %p442
      %p767 = pneg %p439
      %p768 = pneg %p463
      %p769 = pneg %p460
      %p770 = pneg %p484
      %p771 = pneg %p481
      %p772 = pneg %p505
      %p773 = pneg %p502
      %p774 = pneg %p531
      %p775 = pneg %p528
      %p776 = scmp.lt.s32.totalorder %s38, 1
      %s777 = scalar_select %p776, %s38, 1
      %s778 = smul.addr %s777, 8
      %s779 = scalar_lea.vmem %s19, %s778
      %p780 = pneg %p557
      %p781 = pneg %p554
      %p782 = scmp.lt.s32.totalorder %s38, 1
      %s783 = scalar_select %p782, %s38, 1
      %s784 = smul.addr %s783, 8
      %s785 = scalar_lea.vmem %s20, %s784
      %p786 = scmp.lt.s32.totalorder %s38, 1
      %s787 = scalar_select %p786, %s38, 1
      %s788 = smul.addr %s787, 8
      %s789 = scalar_lea.vmem %s0, %s788
      %p790 = scmp.lt.s32.totalorder %s38, 1
      %s791 = scalar_select %p790, %s38, 1
      %s792 = smul.addr %s791, 8
      %s793 = scalar_lea.vmem %s1, %s792
      %p794 = scmp.lt.s32.totalorder %s39, 1
      %s795 = scalar_select %p794, %s39, 1
      %s796 = scalar_lea.vmem %s4, %s795
      %p797 = scmp.lt.s32.totalorder %s39, 1
      %s798 = scalar_select %p797, %s39, 1
      %s799 = scalar_lea.vmem %s5, %s798
      %p800 = scmp.lt.s32.totalorder %s39, 1
      %s801 = scalar_select %p800, %s39, 1
      %s802 = smul.addr %s801, 2
      %s803 = smul.addr %s802, 4
      %s804 = scalar_lea.vmem %s6, %s803
      %p805 = scmp.lt.s32.totalorder %s39, 1
      %s806 = scalar_select %p805, %s39, 1
      %s807 = smul.addr %s806, 4
      %s808 = scalar_lea.vmem %s7, %s807
      %p809 = scmp.lt.s32.totalorder %s39, 1
      %s810 = scalar_select %p809, %s39, 1
      %s811 = scalar_lea.vmem %s8, %s810
      %p812 = scmp.lt.s32.totalorder %s39, 1
      %s813 = scalar_select %p812, %s39, 1
      %s814 = scalar_lea.vmem %s9, %s813
      %p815 = scmp.lt.s32.totalorder %s39, 1
      %s816 = scalar_select %p815, %s39, 1
      %s817 = scalar_lea.vmem %s10, %s816
      %p818 = scmp.lt.s32.totalorder %s39, 1
      %s819 = scalar_select %p818, %s39, 1
      %s820 = smul.addr %s819, 2
      %s821 = smul.addr %s820, 4
      %s822 = scalar_lea.vmem %s11, %s821
      %p823 = scmp.lt.s32.totalorder %s39, 1
      %s824 = scalar_select %p823, %s39, 1
      %s825 = scalar_lea.vmem %s12, %s824
      %p826 = scmp.lt.s32.totalorder %s39, 1
      %s827 = scalar_select %p826, %s39, 1
      %s828 = smul.addr %s827, 8
      %s829 = smul.addr %s828, 4
      %s830 = scalar_lea.vmem %s13, %s829
      %p831 = scmp.lt.s32.totalorder %s39, 1
      %s832 = scalar_select %p831, %s39, 1
      %s833 = scalar_lea.vmem %s14, %s832
      %p834 = scmp.lt.s32.totalorder %s38, 1
      %s835 = scalar_select %p834, %s38, 1
      %s836 = smul.addr %s835, 8
      %s837 = scalar_lea.vmem %s19, %s836
      %p838 = scmp.lt.s32.totalorder %s38, 1
      %s839 = scalar_select %p838, %s38, 1
      %s840 = smul.addr %s839, 8
      %s841 = scalar_lea.vmem %s20, %s840
      %p843 = scmp.eq.s32.totalorder %s39, 0
      // Predicated region
      $region97: #{asrf_with_brt_forward.3} parent=95 // pred_check
        %p844 = pneg %p843
      $region98: #{asrf_with_brt_forward.3} parent=95 // pred_check_branch
        %846 = sbr.rel (%p844) target = $region100
      $region99: #{asrf_with_brt_forward.3} parent=95 // pred_region
        %v847 = vld [vmem:[%s789] sm:$0xff]
        %v848 = vld [vmem:[%s2] sm:$0xf]
        %v849 = vld [vmem:[%s2 + $0x4] sm:$0xf]
        %v850 = vld [vmem:[%s2 + $0x8] sm:$0xf]
        %v851 = vld [vmem:[%s2 + $0xc] sm:$0xf]
        %v852 = vpack.c.bf16 %v847, %v847
        %v853 = vld [vmem:[%s3] sm:$0x1]
        %v855 = vlaneseq
        %v856 = vshrl.u32 %v855, 7
        %v857 = vsub.s32 0, %v856
        %v858 = vrot.slane %v853, %v857
        %v864 = vunpack.c.l.b16 %v848
        %v865 = vunpack.c.l.b16 %v849
        %v866 = vunpack.c.l.b16 %v850
        %v867 = vunpack.c.l.b16 %v851
        %v868 = vpack.c.b16 %v865, %v864
        %v869 = vpack.c.b16 %v867, %v866
        %vm872 = vcmask 261120
        %v874 = vsel %vm872, %v852, 0
        %876 = vmatprep.subr.bf16.mxu0 0
        %877 = vmatpush1.bf16.msra.mxu0 %v868
        %878 = vmatprep.subr.bf16.mxu0 0
        %879 = vmatpush1.bf16.msra.mxu0 %v869
        %880 = vmatprep.subr.bf16.mxu0 0
        %881 = vmatpush1.bf16.msra.mxu0 0
        %882 = vmatprep.subr.bf16.mxu0 0
        %883 = vmatpush1.bf16.msra.mxu0 0
        %884 = vmatprep.subr.bf16.mxu0 0
        %885 = vmatpush1.bf16.msra.mxu0 0
        %886 = vmatprep.subr.bf16.mxu0 0
        %887 = vmatpush1.bf16.msra.mxu0 0
        %888 = vmatprep.subr.bf16.mxu0 0
        %889 = vmatpush1.bf16.msra.mxu0 0
        %890 = vmatprep.subr.bf16.mxu0 0
        %891 = vmatpush1.bf16.msra.mxu0 0
        %892 = vmatprep.subr.bf16.mxu0 0
        %893 = vmatpush1.bf16.msra.mxu0 0
        %894 = vmatprep.subr.bf16.mxu0 0
        %895 = vmatpush1.bf16.msra.mxu0 0
        %896 = vmatprep.subr.bf16.mxu0 0
        %897 = vmatpush1.bf16.msra.mxu0 0
        %898 = vmatprep.subr.bf16.mxu0 0
        %899 = vmatpush1.bf16.msra.mxu0 0
        %900 = vmatprep.subr.bf16.mxu0 0
        %901 = vmatpush1.bf16.msra.mxu0 0
        %902 = vmatprep.subr.bf16.mxu0 0
        %903 = vmatpush1.bf16.msra.mxu0 0
        %904 = vmatprep.subr.bf16.mxu0 0
        %905 = vmatpush1.bf16.msra.mxu0 0
        %906 = vmatprep.subr.bf16.mxu0 0
        %907 = vmatpush1.bf16.msra.mxu0 0
        %908 = vmatprep.mubr.bf16.mxu0 0
        %909 = vmatmul.mubr.bf16.gmra.mrb[0].mxu0 %v874
        %v910 = vpop.f32.mrb[0].mxu0
        %v911 = vadd.f32 %v858, %v910
        %v912 = vpop.f32.mrb[0].mxu0
        %v913 = vpop.f32.mrb[0].mxu0
        %v914 = vpop.f32.mrb[0].mxu0
        %915 = vdwg.mxu0
      $region100: #{asrf_with_brt_forward.3} parent=95 // pred_fallthru
        %v916 = vphi 0, %v911
      %p917 = pneg %p843
      // Predicated region
      $region101: #{asrf_with_brt_forward.3} parent=95 // pred_check
        _
      $region102: #{asrf_with_brt_forward.3} parent=95 // pred_check_branch
        %919 = sbr.rel (%p843) target = $region104
      $region103: #{asrf_with_brt_forward.3} parent=95 // pred_region
        %v920 = vld [vmem:[#allocation2] sm:$0xff]
      $region104: #{asrf_with_brt_forward.3} parent=95 // pred_fallthru
        %v921 = vphi %v916, %v920
      %vm922 = vcmask 130048
      %v923 = vsel %vm922, %v921, 0.0
      %924 = vadd.xlane.f32.xlu0 %v923
      %v925 = vpop.xlane.xlu0 %924
      %v926 = vrcp.pop 16.0
      %v927 = vmul.f32 %v925, %v926
      %v928 = vsub.f32 %v921, %v927
      %v929 = vmul.f32 %v928, %v928
      %v930 = vsel %vm922, %v929, 0.0
      %931 = vadd.xlane.f32.xlu0 %v930
      %v932 = vpop.xlane.xlu0 %931
      %v933 = vmul.f32 %v932, %v926
      %v934 = vadd.f32 %v933, 1e-05
      %v935 = vrsqrt.pop %v934
      %v936 = vmul.f32 %v928, %v935
      %v937 = vld [vmem:[%s796] sm:$0x1]
      %v939 = vlaneseq
      %v940 = vshrl.u32 %v939, 7
      %v941 = vsub.s32 0, %v940
      %v942 = vrot.slane %v937, %v941
      %v944 = vmul.f32 %v936, %v942
      %v945 = vld [vmem:[%s799] sm:$0x1]
      %v947 = vlaneseq
      %v948 = vshrl.u32 %v947, 7
      %v949 = vsub.s32 0, %v948
      %v950 = vrot.slane %v945, %v949
      %v952 = vadd.f32 %v944, %v950
      %v953 = vpack.c.bf16 %v952, %v952
      %v954 = vld [vmem:[%s804] sm:$0xf]
      %v955 = vld [vmem:[%s804 + $0x4] sm:$0xf]
      %v958 = vunpack.c.l.b16 %v954
      %v959 = vunpack.c.l.b16 %v955
      %v960 = vpack.c.b16 %v959, %v958
      %v963 = vsel %vm922, %v953, 0
      %965 = vmatprep.subr.bf16.mxu0 0
      %966 = vmatpush1.bf16.msra.mxu0 %v960
      %967 = vmatprep.subr.bf16.mxu0 0
      %968 = vmatpush1.bf16.msra.mxu0 0
      %969 = vmatprep.subr.bf16.mxu0 0
      %970 = vmatpush1.bf16.msra.mxu0 0
      %971 = vmatprep.subr.bf16.mxu0 0
      %972 = vmatpush1.bf16.msra.mxu0 0
      %973 = vmatprep.subr.bf16.mxu0 0
      %974 = vmatpush1.bf16.msra.mxu0 0
      %975 = vmatprep.subr.bf16.mxu0 0
      %976 = vmatpush1.bf16.msra.mxu0 0
      %977 = vmatprep.subr.bf16.mxu0 0
      %978 = vmatpush1.bf16.msra.mxu0 0
      %979 = vmatprep.subr.bf16.mxu0 0
      %980 = vmatpush1.bf16.msra.mxu0 0
      %981 = vmatprep.subr.bf16.mxu0 0
      %982 = vmatpush1.bf16.msra.mxu0 0
      %983 = vmatprep.subr.bf16.mxu0 0
      %984 = vmatpush1.bf16.msra.mxu0 0
      %985 = vmatprep.subr.bf16.mxu0 0
      %986 = vmatpush1.bf16.msra.mxu0 0
      %987 = vmatprep.subr.bf16.mxu0 0
      %988 = vmatpush1.bf16.msra.mxu0 0
      %989 = vmatprep.subr.bf16.mxu0 0
      %990 = vmatpush1.bf16.msra.mxu0 0
      %991 = vmatprep.subr.bf16.mxu0 0
      %992 = vmatpush1.bf16.msra.mxu0 0
      %993 = vmatprep.subr.bf16.mxu0 0
      %994 = vmatpush1.bf16.msra.mxu0 0
      %995 = vmatprep.subr.bf16.mxu0 0
      %996 = vmatpush1.bf16.msra.mxu0 0
      %997 = vmatprep.mubr.bf16.mxu0 0
      %998 = vmatmul.mubr.bf16.gmra.mrb[0].mxu0 %v963
      %v999 = vpop.f32.mrb[0].mxu0
      %v1000 = vadd.f32 0.0, %v999
      %v1001 = vpop.f32.mrb[0].mxu0
      %v1002 = vpop.f32.mrb[0].mxu0
      %v1003 = vpop.f32.mrb[0].mxu0
      %1004 = vdwg.mxu0
      %v1005 = vpack.c.bf16 %v1000, %v1000
      %1007 = vrot.lane.b32.xlu0 %v1000, 120
      %v1008 = vpop.permute.xlu0 %1007
      %1010 = vxpose.xlu0.b32.start [1/16] %v1008, 128
      %1011 = vxpose.xlu0.b32.cont [2/16] 0.0, 128
      %1012 = vxpose.xlu0.b32.cont [3/16] 0.0, 128
      %1013 = vxpose.xlu0.b32.cont [4/16] 0.0, 128
      %1014 = vxpose.xlu0.b32.cont [5/16] 0.0, 128
      %1015 = vxpose.xlu0.b32.cont [6/16] 0.0, 128
      %1016 = vxpose.xlu0.b32.cont [7/16] 0.0, 128
      %1017 = vxpose.xlu0.b32.cont [8/16] 0.0, 128
      %1018 = vxpose.xlu0.b32.cont [9/16] 0.0, 128
      %1019 = vxpose.xlu0.b32.cont [10/16] 0.0, 128
      %1020 = vxpose.xlu0.b32.cont [11/16] 0.0, 128
      %1021 = vxpose.xlu0.b32.cont [12/16] 0.0, 128
      %1022 = vxpose.xlu0.b32.cont [13/16] 0.0, 128
      %1023 = vxpose.xlu0.b32.cont [14/16] 0.0, 128
      %1024 = vxpose.xlu0.b32.cont [15/16] 0.0, 128
      %1025 = vxpose.xlu0.b32.end [16/16] 0.0, 128
      %v1026 = vpop.trf.xlu0
      %v1027 = vpop.trf.xlu0
      %v1028 = vpop.trf.xlu0
      %v1029 = vpop.trf.xlu0
      %v1030 = vpop.trf.xlu0
      %v1031 = vpop.trf.xlu0
      %v1032 = vpop.trf.xlu0
      %v1033 = vpop.trf.xlu0
      %v1034 = vpop.trf.xlu0
      %v1035 = vpop.trf.xlu0
      %v1036 = vpop.trf.xlu0
      %v1037 = vpop.trf.xlu0
      %v1038 = vpop.trf.xlu0
      %v1039 = vpop.trf.xlu0
      %v1040 = vpop.trf.xlu0
      %v1041 = vpop.trf.xlu0
      %v1042 = vpack.c.bf16 %v1026, %v1026
      %vm1043 = vcmask 31744
      %v1045 = vsel %vm1043, %v1005, 0
      %vm1047 = vcmask 1041408
      %v1049 = vsel %vm1047, %v1042, 0
      %1051 = vmatprep.subr.bf16.mxu0 0
      %1052 = vmatpush1.bf16.msra.mxu0 %v1049
      %1053 = vmatprep.subr.bf16.mxu0 0
      %1054 = vmatpush1.bf16.msra.mxu0 0
      %1055 = vmatprep.subr.bf16.mxu0 0
      %1056 = vmatpush1.bf16.msra.mxu0 0
      %1057 = vmatprep.subr.bf16.mxu0 0
      %1058 = vmatpush1.bf16.msra.mxu0 0
      %1059 = vmatprep.subr.bf16.mxu0 0
      %1060 = vmatpush1.bf16.msra.mxu0 0
      %1061 = vmatprep.subr.bf16.mxu0 0
      %1062 = vmatpush1.bf16.msra.mxu0 0
      %1063 = vmatprep.subr.bf16.mxu0 0
      %1064 = vmatpush1.bf16.msra.mxu0 0
      %1065 = vmatprep.subr.bf16.mxu0 0
      %1066 = vmatpush1.bf16.msra.mxu0 0
      %1067 = vmatprep.subr.bf16.mxu0 0
      %1068 = vmatpush1.bf16.msra.mxu0 0
      %1069 = vmatprep.subr.bf16.mxu0 0
      %1070 = vmatpush1.bf16.msra.mxu0 0
      %1071 = vmatprep.subr.bf16.mxu0 0
      %1072 = vmatpush1.bf16.msra.mxu0 0
      %1073 = vmatprep.subr.bf16.mxu0 0
      %1074 = vmatpush1.bf16.msra.mxu0 0
      %1075 = vmatprep.subr.bf16.mxu0 0
      %1076 = vmatpush1.bf16.msra.mxu0 0
      %1077 = vmatprep.subr.bf16.mxu0 0
      %1078 = vmatpush1.bf16.msra.mxu0 0
      %1079 = vmatprep.subr.bf16.mxu0 0
      %1080 = vmatpush1.bf16.msra.mxu0 0
      %1081 = vmatprep.subr.bf16.mxu0 0
      %1082 = vmatpush1.bf16.msra.mxu0 0
      %1083 = vmatprep.mubr.bf16.mxu0 0
      %1084 = vmatmul.mubr.bf16.gmra.mrb[0].mxu0 %v1045
      %v1085 = vpop.f32.mrb[0].mxu0
      %v1086 = vadd.f32 0.0, %v1085
      %v1087 = vpop.f32.mrb[0].mxu0
      %v1088 = vpop.f32.mrb[0].mxu0
      %v1089 = vpop.f32.mrb[0].mxu0
      %1090 = vdwg.mxu0
      %vm1091 = vcmask 64512
      %v1092 = vsel %vm1091, %v1086, -inf
      %1093 = vmax.xlane.f32.xlu0 %v1092
      %v1094 = vpop.xlane.xlu0 %1093
      %v1095 = vsub.f32 %v1086, %v1094
      %v1096 = vmul.f32 %v1095, 1.442695
      %v1097 = vpow.pop %v1096
      %v1098 = vsel %vm1091, %v1097, 0.0
      %1099 = vadd.xlane.f32.xlu0 %v1098
      %v1100 = vpop.xlane.xlu0 %1099
      %v1101 = vrcp.pop %v1100
      %v1102 = vmul.f32 %v1097, %v1101
      %v1103 = vpack.c.bf16 %v1102, %v1102
      %1105 = vrot.lane.b32.xlu0 %v1005, 112
      %v1106 = vpop.permute.xlu0 %1105
      %v1108 = vsel %vm1091, %v1103, 0
      %vm1110 = vcmask 1043456
      %v1112 = vsel %vm1110, %v1106, 0
      %1114 = vmatprep.subr.bf16.mxu0 0
      %1115 = vmatpush1.bf16.msra.mxu0 %v1112
      %1116 = vmatprep.subr.bf16.mxu0 0
      %1117 = vmatpush1.bf16.msra.mxu0 0
      %1118 = vmatprep.subr.bf16.mxu0 0
      %1119 = vmatpush1.bf16.msra.mxu0 0
      %1120 = vmatprep.subr.bf16.mxu0 0
      %1121 = vmatpush1.bf16.msra.mxu0 0
      %1122 = vmatprep.subr.bf16.mxu0 0
      %1123 = vmatpush1.bf16.msra.mxu0 0
      %1124 = vmatprep.subr.bf16.mxu0 0
      %1125 = vmatpush1.bf16.msra.mxu0 0
      %1126 = vmatprep.subr.bf16.mxu0 0
      %1127 = vmatpush1.bf16.msra.mxu0 0
      %1128 = vmatprep.subr.bf16.mxu0 0
      %1129 = vmatpush1.bf16.msra.mxu0 0
      %1130 = vmatprep.subr.bf16.mxu0 0
      %1131 = vmatpush1.bf16.msra.mxu0 0
      %1132 = vmatprep.subr.bf16.mxu0 0
      %1133 = vmatpush1.bf16.msra.mxu0 0
      %1134 = vmatprep.subr.bf16.mxu0 0
      %1135 = vmatpush1.bf16.msra.mxu0 0
      %1136 = vmatprep.subr.bf16.mxu0 0
      %1137 = vmatpush1.bf16.msra.mxu0 0
      %1138 = vmatprep.subr.bf16.mxu0 0
      %1139 = vmatpush1.bf16.msra.mxu0 0
      %1140 = vmatprep.subr.bf16.mxu0 0
      %1141 = vmatpush1.bf16.msra.mxu0 0
      %1142 = vmatprep.subr.bf16.mxu0 0
      %1143 = vmatpush1.bf16.msra.mxu0 0
      %1144 = vmatprep.subr.bf16.mxu0 0
      %1145 = vmatpush1.bf16.msra.mxu0 0
      %1146 = vmatprep.mubr.bf16.mxu0 0
      %1147 = vmatmul.mubr.bf16.gmra.mrb[0].mxu0 %v1108
      %v1148 = vpop.f32.mrb[0].mxu0
      %v1149 = vadd.f32 0.0, %v1148
      %v1150 = vpop.f32.mrb[0].mxu0
      %v1151 = vpop.f32.mrb[0].mxu0
      %v1152 = vpop.f32.mrb[0].mxu0
      %1153 = vdwg.mxu0
      %1154 = vrot.lane.b32.xlu0 %v1000, 116
      %v1155 = vpop.permute.xlu0 %1154
      %1157 = vxpose.xlu0.b32.start [1/16] %v1155, 128
      %1158 = vxpose.xlu0.b32.cont [2/16] 0.0, 128
      %1159 = vxpose.xlu0.b32.cont [3/16] 0.0, 128
      %1160 = vxpose.xlu0.b32.cont [4/16] 0.0, 128
      %1161 = vxpose.xlu0.b32.cont [5/16] 0.0, 128
      %1162 = vxpose.xlu0.b32.cont [6/16] 0.0, 128
      %1163 = vxpose.xlu0.b32.cont [7/16] 0.0, 128
      %1164 = vxpose.xlu0.b32.cont [8/16] 0.0, 128
      %1165 = vxpose.xlu0.b32.cont [9/16] 0.0, 128
      %1166 = vxpose.xlu0.b32.cont [10/16] 0.0, 128
      %1167 = vxpose.xlu0.b32.cont [11/16] 0.0, 128
      %1168 = vxpose.xlu0.b32.cont [12/16] 0.0, 128
      %1169 = vxpose.xlu0.b32.cont [13/16] 0.0, 128
      %1170 = vxpose.xlu0.b32.cont [14/16] 0.0, 128
      %1171 = vxpose.xlu0.b32.cont [15/16] 0.0, 128
      %1172 = vxpose.xlu0.b32.end [16/16] 0.0, 128
      %v1173 = vpop.trf.xlu0
      %v1174 = vpop.trf.xlu0
      %v1175 = vpop.trf.xlu0
      %v1176 = vpop.trf.xlu0
      %v1177 = vpop.trf.xlu0
      %v1178 = vpop.trf.xlu0
      %v1179 = vpop.trf.xlu0
      %v1180 = vpop.trf.xlu0
      %v1181 = vpop.trf.xlu0
      %v1182 = vpop.trf.xlu0
      %v1183 = vpop.trf.xlu0
      %v1184 = vpop.trf.xlu0
      %v1185 = vpop.trf.xlu0
      %v1186 = vpop.trf.xlu0
      %v1187 = vpop.trf.xlu0
      %v1188 = vpop.trf.xlu0
      %v1189 = vpack.c.bf16 %v1173, %v1173
      %1190 = vrot.lane.b32.xlu0 %v1005, 124
      %v1191 = vpop.permute.xlu0 %1190
      %v1193 = vsel %vm1043, %v1191, 0
      %v1196 = vsel %vm1047, %v1189, 0
      %1198 = vmatprep.subr.bf16.mxu0 0
      %1199 = vmatpush1.bf16.msra.mxu0 %v1196
      %1200 = vmatprep.subr.bf16.mxu0 0
      %1201 = vmatpush1.bf16.msra.mxu0 0
      %1202 = vmatprep.subr.bf16.mxu0 0
      %1203 = vmatpush1.bf16.msra.mxu0 0
      %1204 = vmatprep.subr.bf16.mxu0 0
      %1205 = vmatpush1.bf16.msra.mxu0 0
      %1206 = vmatprep.subr.bf16.mxu0 0
      %1207 = vmatpush1.bf16.msra.mxu0 0
      %1208 = vmatprep.subr.bf16.mxu0 0
      %1209 = vmatpush1.bf16.msra.mxu0 0
      %1210 = vmatprep.subr.bf16.mxu0 0
      %1211 = vmatpush1.bf16.msra.mxu0 0
      %1212 = vmatprep.subr.bf16.mxu0 0
      %1213 = vmatpush1.bf16.msra.mxu0 0
      %1214 = vmatprep.subr.bf16.mxu0 0
      %1215 = vmatpush1.bf16.msra.mxu0 0
      %1216 = vmatprep.subr.bf16.mxu0 0
      %1217 = vmatpush1.bf16.msra.mxu0 0
      %1218 = vmatprep.subr.bf16.mxu0 0
      %1219 = vmatpush1.bf16.msra.mxu0 0
      %1220 = vmatprep.subr.bf16.mxu0 0
      %1221 = vmatpush1.bf16.msra.mxu0 0
      %1222 = vmatprep.subr.bf16.mxu0 0
      %1223 = vmatpush1.bf16.msra.mxu0 0
      %1224 = vmatprep.subr.bf16.mxu0 0
      %1225 = vmatpush1.bf16.msra.mxu0 0
      %1226 = vmatprep.subr.bf16.mxu0 0
      %1227 = vmatpush1.bf16.msra.mxu0 0
      %1228 = vmatprep.subr.bf16.mxu0 0
      %1229 = vmatpush1.bf16.msra.mxu0 0
      %1230 = vmatprep.mubr.bf16.mxu0 0
      %1231 = vmatmul.mubr.bf16.gmra.mrb[0].mxu0 %v1193
      %v1232 = vpop.f32.mrb[0].mxu0
      %v1233 = vadd.f32 0.0, %v1232
      %v1234 = vpop.f32.mrb[0].mxu0
      %v1235 = vpop.f32.mrb[0].mxu0
      %v1236 = vpop.f32.mrb[0].mxu0
      %1237 = vdwg.mxu0
      %v1238 = vsel %vm1091, %v1233, -inf
      %1239 = vmax.xlane.f32.xlu0 %v1238
      %v1240 = vpop.xlane.xlu0 %1239
      %v1241 = vsub.f32 %v1233, %v1240
      %v1242 = vmul.f32 %v1241, 1.442695
      %v1243 = vpow.pop %v1242
      %v1244 = vsel %vm1091, %v1243, 0.0
      %1245 = vadd.xlane.f32.xlu0 %v1244
      %v1246 = vpop.xlane.xlu0 %1245
      %v1247 = vrcp.pop %v1246
      %v1248 = vmul.f32 %v1243, %v1247
      %v1249 = vpack.c.bf16 %v1248, %v1248
      %1250 = vrot.lane.b32.xlu0 %v1005, 108
      %v1251 = vpop.permute.xlu0 %1250
      %v1253 = vsel %vm1091, %v1249, 0
      %v1256 = vsel %vm1110, %v1251, 0
      %1258 = vmatprep.subr.bf16.mxu0 0
      %1259 = vmatpush1.bf16.msra.mxu0 %v1256
      %1260 = vmatprep.subr.bf16.mxu0 0
      %1261 = vmatpush1.bf16.msra.mxu0 0
      %1262 = vmatprep.subr.bf16.mxu0 0
      %1263 = vmatpush1.bf16.msra.mxu0 0
      %1264 = vmatprep.subr.bf16.mxu0 0
      %1265 = vmatpush1.bf16.msra.mxu0 0
      %1266 = vmatprep.subr.bf16.mxu0 0
      %1267 = vmatpush1.bf16.msra.mxu0 0
      %1268 = vmatprep.subr.bf16.mxu0 0
      %1269 = vmatpush1.bf16.msra.mxu0 0
      %1270 = vmatprep.subr.bf16.mxu0 0
      %1271 = vmatpush1.bf16.msra.mxu0 0
      %1272 = vmatprep.subr.bf16.mxu0 0
      %1273 = vmatpush1.bf16.msra.mxu0 0
      %1274 = vmatprep.subr.bf16.mxu0 0
      %1275 = vmatpush1.bf16.msra.mxu0 0
      %1276 = vmatprep.subr.bf16.mxu0 0
      %1277 = vmatpush1.bf16.msra.mxu0 0
      %1278 = vmatprep.subr.bf16.mxu0 0
      %1279 = vmatpush1.bf16.msra.mxu0 0
      %1280 = vmatprep.subr.bf16.mxu0 0
      %1281 = vmatpush1.bf16.msra.mxu0 0
      %1282 = vmatprep.subr.bf16.mxu0 0
      %1283 = vmatpush1.bf16.msra.mxu0 0
      %1284 = vmatprep.subr.bf16.mxu0 0
      %1285 = vmatpush1.bf16.msra.mxu0 0
      %1286 = vmatprep.subr.bf16.mxu0 0
      %1287 = vmatpush1.bf16.msra.mxu0 0
      %1288 = vmatprep.subr.bf16.mxu0 0
      %1289 = vmatpush1.bf16.msra.mxu0 0
      %1290 = vmatprep.mubr.bf16.mxu0 0
      %1291 = vmatmul.mubr.bf16.gmra.mrb[0].mxu0 %v1253
      %v1292 = vpop.f32.mrb[0].mxu0
      %v1293 = vadd.f32 0.0, %v1292
      %v1294 = vpop.f32.mrb[0].mxu0
      %v1295 = vpop.f32.mrb[0].mxu0
      %v1296 = vpop.f32.mrb[0].mxu0
      %1297 = vdwg.mxu0
      %1299 = vrot.lane.b32.xlu0 %v1293, 4
      %v1300 = vpop.permute.xlu0 %1299
      %v1302 = vsel %vm1043, %v1149, %v1300
      %v1303 = vpack.c.bf16 %v1302, %v1302
      %v1304 = vld [vmem:[%s808] sm:$0xf]
      %v1306 = vsel %vm1091, %v1303, 0
      %v1309 = vsel %vm1110, %v1304, 0
      %1311 = vmatprep.subr.bf16.mxu0 0
      %1312 = vmatpush1.bf16.msra.mxu0 %v1309
      %1313 = vmatprep.subr.bf16.mxu0 0
      %1314 = vmatpush1.bf16.msra.mxu0 0
      %1315 = vmatprep.subr.bf16.mxu0 0
      %1316 = vmatpush1.bf16.msra.mxu0 0
      %1317 = vmatprep.subr.bf16.mxu0 0
      %1318 = vmatpush1.bf16.msra.mxu0 0
      %1319 = vmatprep.subr.bf16.mxu0 0
      %1320 = vmatpush1.bf16.msra.mxu0 0
      %1321 = vmatprep.subr.bf16.mxu0 0
      %1322 = vmatpush1.bf16.msra.mxu0 0
      %1323 = vmatprep.subr.bf16.mxu0 0
      %1324 = vmatpush1.bf16.msra.mxu0 0
      %1325 = vmatprep.subr.bf16.mxu0 0
      %1326 = vmatpush1.bf16.msra.mxu0 0
      %1327 = vmatprep.subr.bf16.mxu0 0
      %1328 = vmatpush1.bf16.msra.mxu0 0
      %1329 = vmatprep.subr.bf16.mxu0 0
      %1330 = vmatpush1.bf16.msra.mxu0 0
      %1331 = vmatprep.subr.bf16.mxu0 0
      %1332 = vmatpush1.bf16.msra.mxu0 0
      %1333 = vmatprep.subr.bf16.mxu0 0
      %1334 = vmatpush1.bf16.msra.mxu0 0
      %1335 = vmatprep.subr.bf16.mxu0 0
      %1336 = vmatpush1.bf16.msra.mxu0 0
      %1337 = vmatprep.subr.bf16.mxu0 0
      %1338 = vmatpush1.bf16.msra.mxu0 0
      %1339 = vmatprep.subr.bf16.mxu0 0
      %1340 = vmatpush1.bf16.msra.mxu0 0
      %1341 = vmatprep.subr.bf16.mxu0 0
      %1342 = vmatpush1.bf16.msra.mxu0 0
      %1343 = vmatprep.mubr.bf16.mxu0 0
      %1344 = vmatmul.mubr.bf16.gmra.mrb[0].mxu0 %v1306
      %v1345 = vpop.f32.mrb[0].mxu0
      %v1346 = vadd.f32 0.0, %v1345
      %v1347 = vpop.f32.mrb[0].mxu0
      %v1348 = vpop.f32.mrb[0].mxu0
      %v1349 = vpop.f32.mrb[0].mxu0
      %1350 = vdwg.mxu0
      %v1351 = vadd.f32 %v921, %v1346
      %v1352 = vld [vmem:[%s811] sm:$0x1]
      %v1354 = vlaneseq
      %v1355 = vshrl.u32 %v1354, 7
      %v1356 = vsub.s32 0, %v1355
      %v1357 = vrot.slane %v1352, %v1356
      %v1359 = vadd.f32 %v1351, %v1357
      %v1360 = vsel %vm922, %v1359, 0.0
      %1361 = vadd.xlane.f32.xlu0 %v1360
      %v1362 = vpop.xlane.xlu0 %1361
      %v1363 = vmul.f32 %v1362, %v926
      %v1364 = vsub.f32 %v1359, %v1363
      %v1365 = vmul.f32 %v1364, %v1364
      %v1366 = vsel %vm922, %v1365, 0.0
      %1367 = vadd.xlane.f32.xlu0 %v1366
      %v1368 = vpop.xlane.xlu0 %1367
      %v1369 = vmul.f32 %v1368, %v926
      %v1370 = vadd.f32 %v1369, 1e-05
      %v1371 = vrsqrt.pop %v1370
      %v1372 = vmul.f32 %v1364, %v1371
      %v1373 = vld [vmem:[%s814] sm:$0x1]
      %v1375 = vlaneseq
      %v1376 = vshrl.u32 %v1375, 7
      %v1377 = vsub.s32 0, %v1376
      %v1378 = vrot.slane %v1373, %v1377
      %v1380 = vmul.f32 %v1372, %v1378
      %v1381 = vld [vmem:[%s817] sm:$0x1]
      %v1383 = vlaneseq
      %v1384 = vshrl.u32 %v1383, 7
      %v1385 = vsub.s32 0, %v1384
      %v1386 = vrot.slane %v1381, %v1385
      %v1388 = vadd.f32 %v1380, %v1386
      %v1389 = vpack.c.bf16 %v1388, %v1388
      %v1390 = vld [vmem:[%s822] sm:$0xf]
      %v1391 = vld [vmem:[%s822 + $0x4] sm:$0xf]
      %v1392 = vld [vmem:[%s825] sm:$0x1]
      %v1394 = vlaneseq
      %v1395 = vshrl.u32 %v1394, 7
      %v1396 = vsub.s32 0, %v1395
      %v1397 = vrot.slane %v1392, %v1396
      %v1401 = vunpack.c.l.b16 %v1390
      %v1402 = vunpack.c.l.b16 %v1391
      %v1403 = vpack.c.b16 %v1402, %v1401
      %v1406 = vsel %vm922, %v1389, 0
      %1408 = vmatprep.subr.bf16.mxu0 0
      %1409 = vmatpush1.bf16.msra.mxu0 %v1403
      %1410 = vmatprep.subr.bf16.mxu0 0
      %1411 = vmatpush1.bf16.msra.mxu0 0
      %1412 = vmatprep.subr.bf16.mxu0 0
      %1413 = vmatpush1.bf16.msra.mxu0 0
      %1414 = vmatprep.subr.bf16.mxu0 0
      %1415 = vmatpush1.bf16.msra.mxu0 0
      %1416 = vmatprep.subr.bf16.mxu0 0
      %1417 = vmatpush1.bf16.msra.mxu0 0
      %1418 = vmatprep.subr.bf16.mxu0 0
      %1419 = vmatpush1.bf16.msra.mxu0 0
      %1420 = vmatprep.subr.bf16.mxu0 0
      %1421 = vmatpush1.bf16.msra.mxu0 0
      %1422 = vmatprep.subr.bf16.mxu0 0
      %1423 = vmatpush1.bf16.msra.mxu0 0
      %1424 = vmatprep.subr.bf16.mxu0 0
      %1425 = vmatpush1.bf16.msra.mxu0 0
      %1426 = vmatprep.subr.bf16.mxu0 0
      %1427 = vmatpush1.bf16.msra.mxu0 0
      %1428 = vmatprep.subr.bf16.mxu0 0
      %1429 = vmatpush1.bf16.msra.mxu0 0
      %1430 = vmatprep.subr.bf16.mxu0 0
      %1431 = vmatpush1.bf16.msra.mxu0 0
      %1432 = vmatprep.subr.bf16.mxu0 0
      %1433 = vmatpush1.bf16.msra.mxu0 0
      %1434 = vmatprep.subr.bf16.mxu0 0
      %1435 = vmatpush1.bf16.msra.mxu0 0
      %1436 = vmatprep.subr.bf16.mxu0 0
      %1437 = vmatpush1.bf16.msra.mxu0 0
      %1438 = vmatprep.subr.bf16.mxu0 0
      %1439 = vmatpush1.bf16.msra.mxu0 0
      %1440 = vmatprep.mubr.bf16.mxu0 0
      %1441 = vmatmul.mubr.bf16.gmra.mrb[0].mxu0 %v1406
      %v1442 = vpop.f32.mrb[0].mxu0
      %v1443 = vadd.f32 %v1397, %v1442
      %v1444 = vpop.f32.mrb[0].mxu0
      %v1445 = vpop.f32.mrb[0].mxu0
      %v1446 = vpop.f32.mrb[0].mxu0
      %1447 = vdwg.mxu0
      %v1448 = vmax.f32 %v1443, 0.0
      %v1449 = vpack.c.bf16 %v1448, %v1448
      %v1450 = vld [vmem:[%s830] sm:$0xf]
      %v1451 = vld [vmem:[%s830 + $0x4] sm:$0xf]
      %v1452 = vld [vmem:[%s830 + $0x8] sm:$0xf]
      %v1453 = vld [vmem:[%s830 + $0xc] sm:$0xf]
      %v1454 = vld [vmem:[%s830 + $0x10] sm:$0xf]
      %v1455 = vld [vmem:[%s830 + $0x14] sm:$0xf]
      %v1456 = vld [vmem:[%s830 + $0x18] sm:$0xf]
      %v1457 = vld [vmem:[%s830 + $0x1c] sm:$0xf]
      %v1458 = vld [vmem:[%s833] sm:$0x1]
      %v1460 = vlaneseq
      %v1461 = vshrl.u32 %v1460, 7
      %v1462 = vsub.s32 0, %v1461
      %v1463 = vrot.slane %v1458, %v1462
      %v1473 = vunpack.c.l.b16 %v1450
      %v1474 = vunpack.c.l.b16 %v1451
      %v1475 = vunpack.c.l.b16 %v1452
      %v1476 = vunpack.c.l.b16 %v1453
      %v1477 = vunpack.c.l.b16 %v1454
      %v1478 = vunpack.c.l.b16 %v1455
      %v1479 = vunpack.c.l.b16 %v1456
      %v1480 = vunpack.c.l.b16 %v1457
      %v1481 = vpack.c.b16 %v1474, %v1473
      %v1482 = vpack.c.b16 %v1476, %v1475
      %v1483 = vpack.c.b16 %v1478, %v1477
      %v1484 = vpack.c.b16 %v1480, %v1479
      %vm1489 = vcmask 523264
      %v1491 = vsel %vm1489, %v1449, 0
      %1493 = vmatprep.subr.bf16.mxu0 0
      %1494 = vmatpush1.bf16.msra.mxu0 %v1481
      %1495 = vmatprep.subr.bf16.mxu0 0
      %1496 = vmatpush1.bf16.msra.mxu0 %v1482
      %1497 = vmatprep.subr.bf16.mxu0 0
      %1498 = vmatpush1.bf16.msra.mxu0 %v1483
      %1499 = vmatprep.subr.bf16.mxu0 0
      %1500 = vmatpush1.bf16.msra.mxu0 %v1484
      %1501 = vmatprep.subr.bf16.mxu0 0
      %1502 = vmatpush1.bf16.msra.mxu0 0
      %1503 = vmatprep.subr.bf16.mxu0 0
      %1504 = vmatpush1.bf16.msra.mxu0 0
      %1505 = vmatprep.subr.bf16.mxu0 0
      %1506 = vmatpush1.bf16.msra.mxu0 0
      %1507 = vmatprep.subr.bf16.mxu0 0
      %1508 = vmatpush1.bf16.msra.mxu0 0
      %1509 = vmatprep.subr.bf16.mxu0 0
      %1510 = vmatpush1.bf16.msra.mxu0 0
      %1511 = vmatprep.subr.bf16.mxu0 0
      %1512 = vmatpush1.bf16.msra.mxu0 0
      %1513 = vmatprep.subr.bf16.mxu0 0
      %1514 = vmatpush1.bf16.msra.mxu0 0
      %1515 = vmatprep.subr.bf16.mxu0 0
      %1516 = vmatpush1.bf16.msra.mxu0 0
      %1517 = vmatprep.subr.bf16.mxu0 0
      %1518 = vmatpush1.bf16.msra.mxu0 0
      %1519 = vmatprep.subr.bf16.mxu0 0
      %1520 = vmatpush1.bf16.msra.mxu0 0
      %1521 = vmatprep.subr.bf16.mxu0 0
      %1522 = vmatpush1.bf16.msra.mxu0 0
      %1523 = vmatprep.subr.bf16.mxu0 0
      %1524 = vmatpush1.bf16.msra.mxu0 0
      %1525 = vmatprep.mubr.bf16.mxu0 0
      %1526 = vmatmul.mubr.bf16.gmra.mrb[0].mxu0 %v1491
      %v1527 = vpop.f32.mrb[0].mxu0
      %v1528 = vadd.f32 %v1463, %v1527
      %v1529 = vpop.f32.mrb[0].mxu0
      %v1530 = vpop.f32.mrb[0].mxu0
      %v1531 = vpop.f32.mrb[0].mxu0
      %1532 = vdwg.mxu0
      %v1533 = vadd.f32 %v1359, %v1528
      %1534 = vst.msk [vmem:[#allocation2] sm:$0xff] %vm922, %v1533
      %p1535 = scmp.eq.s32.totalorder %s39, 1
      // Predicated region
      $region105: #{asrf_with_brt_forward.3} parent=95 // pred_check
        %p1536 = pneg %p1535
      $region106: #{asrf_with_brt_forward.3} parent=95 // pred_check_branch
        %1538 = sbr.rel (%p1536) target = $region108
      $region107: #{asrf_with_brt_forward.3} parent=95 // pred_region
        %v1539 = vld [vmem:[%s793] sm:$0xff]
        %1541 = vset.pattern.permute.xlu0 0
        %1542 = vperm.xlu0 %1541, %v1539
        %v1543 = vpop.permute.xlu0 %1542
        %v1545 = vmul.f32 %v1533, %v1543
        %v1546 = vpack.c.bf16 %v1545, %v1545
        %v1547 = vld [vmem:[%s15] sm:$0xf]
        %v1548 = vld [vmem:[%s15 + $0x4] sm:$0xf]
        %v1549 = vld [vmem:[%s16] sm:$0x1]
        %v1551 = vlaneseq
        %v1552 = vshrl.u32 %v1551, 7
        %v1553 = vsub.s32 0, %v1552
        %v1554 = vrot.slane %v1549, %v1553
        %v1558 = vunpack.c.l.b16 %v1547
        %v1559 = vunpack.c.l.b16 %v1548
        %v1560 = vpack.c.b16 %v1559, %v1558
        %v1563 = vsel %vm922, %v1546, 0
        %1565 = vmatprep.subr.bf16.mxu0 0
        %1566 = vmatpush1.bf16.msra.mxu0 %v1560
        %1567 = vmatprep.subr.bf16.mxu0 0
        %1568 = vmatpush1.bf16.msra.mxu0 0
        %1569 = vmatprep.subr.bf16.mxu0 0
        %1570 = vmatpush1.bf16.msra.mxu0 0
        %1571 = vmatprep.subr.bf16.mxu0 0
        %1572 = vmatpush1.bf16.msra.mxu0 0
        %1573 = vmatprep.subr.bf16.mxu0 0
        %1574 = vmatpush1.bf16.msra.mxu0 0
        %1575 = vmatprep.subr.bf16.mxu0 0
        %1576 = vmatpush1.bf16.msra.mxu0 0
        %1577 = vmatprep.subr.bf16.mxu0 0
        %1578 = vmatpush1.bf16.msra.mxu0 0
        %1579 = vmatprep.subr.bf16.mxu0 0
        %1580 = vmatpush1.bf16.msra.mxu0 0
        %1581 = vmatprep.subr.bf16.mxu0 0
        %1582 = vmatpush1.bf16.msra.mxu0 0
        %1583 = vmatprep.subr.bf16.mxu0 0
        %1584 = vmatpush1.bf16.msra.mxu0 0
        %1585 = vmatprep.subr.bf16.mxu0 0
        %1586 = vmatpush1.bf16.msra.mxu0 0
        %1587 = vmatprep.subr.bf16.mxu0 0
        %1588 = vmatpush1.bf16.msra.mxu0 0
        %1589 = vmatprep.subr.bf16.mxu0 0
        %1590 = vmatpush1.bf16.msra.mxu0 0
        %1591 = vmatprep.subr.bf16.mxu0 0
        %1592 = vmatpush1.bf16.msra.mxu0 0
        %1593 = vmatprep.subr.bf16.mxu0 0
        %1594 = vmatpush1.bf16.msra.mxu0 0
        %1595 = vmatprep.subr.bf16.mxu0 0
        %1596 = vmatpush1.bf16.msra.mxu0 0
        %1597 = vmatprep.mubr.bf16.mxu0 0
        %1598 = vmatmul.mubr.bf16.gmra.mrb[0].mxu0 %v1563
        %v1599 = vpop.f32.mrb[0].mxu0
        %v1600 = vadd.f32 %v1554, %v1599
        %v1601 = vpop.f32.mrb[0].mxu0
        %v1602 = vpop.f32.mrb[0].mxu0
        %v1603 = vpop.f32.mrb[0].mxu0
        %1604 = vdwg.mxu0
        %1605 = vst.msk [vmem:[%s837] sm:$0xff] %vm1091, %v1600
        %v1606 = vld [vmem:[%s17] sm:$0xf]
        %v1607 = vld [vmem:[%s17 + $0x4] sm:$0xf]
        %v1608 = vld [vmem:[#allocation3] sm:$0x1]
        %v1610 = vlaneseq
        %v1611 = vshrl.u32 %v1610, 7
        %v1612 = vsub.s32 0, %v1611
        %v1613 = vrot.slane %v1608, %v1612
        %v1617 = vunpack.c.l.b16 %v1606
        %v1618 = vunpack.c.l.b16 %v1607
        %v1619 = vpack.c.b16 %v1618, %v1617
        %1621 = vmatprep.subr.bf16.mxu0 0
        %1622 = vmatpush1.bf16.msra.mxu0 %v1619
        %1623 = vmatprep.subr.bf16.mxu0 0
        %1624 = vmatpush1.bf16.msra.mxu0 0
        %1625 = vmatprep.subr.bf16.mxu0 0
        %1626 = vmatpush1.bf16.msra.mxu0 0
        %1627 = vmatprep.subr.bf16.mxu0 0
        %1628 = vmatpush1.bf16.msra.mxu0 0
        %1629 = vmatprep.subr.bf16.mxu0 0
        %1630 = vmatpush1.bf16.msra.mxu0 0
        %1631 = vmatprep.subr.bf16.mxu0 0
        %1632 = vmatpush1.bf16.msra.mxu0 0
        %1633 = vmatprep.subr.bf16.mxu0 0
        %1634 = vmatpush1.bf16.msra.mxu0 0
        %1635 = vmatprep.subr.bf16.mxu0 0
        %1636 = vmatpush1.bf16.msra.mxu0 0
        %1637 = vmatprep.subr.bf16.mxu0 0
        %1638 = vmatpush1.bf16.msra.mxu0 0
        %1639 = vmatprep.subr.bf16.mxu0 0
        %1640 = vmatpush1.bf16.msra.mxu0 0
        %1641 = vmatprep.subr.bf16.mxu0 0
        %1642 = vmatpush1.bf16.msra.mxu0 0
        %1643 = vmatprep.subr.bf16.mxu0 0
        %1644 = vmatpush1.bf16.msra.mxu0 0
        %1645 = vmatprep.subr.bf16.mxu0 0
        %1646 = vmatpush1.bf16.msra.mxu0 0
        %1647 = vmatprep.subr.bf16.mxu0 0
        %1648 = vmatpush1.bf16.msra.mxu0 0
        %1649 = vmatprep.subr.bf16.mxu0 0
        %1650 = vmatpush1.bf16.msra.mxu0 0
        %1651 = vmatprep.subr.bf16.mxu0 0
        %1652 = vmatpush1.bf16.msra.mxu0 0
        %1653 = vmatprep.mubr.bf16.mxu0 0
        %1654 = vmatmul.mubr.bf16.gmra.mrb[0].mxu0 %v1563
        %v1655 = vpop.f32.mrb[0].mxu0
        %v1656 = vadd.f32 %v1613, %v1655
        %v1657 = vpop.f32.mrb[0].mxu0
        %v1658 = vpop.f32.mrb[0].mxu0
        %v1659 = vpop.f32.mrb[0].mxu0
        %1660 = vdwg.mxu0
        %vm1661 = vcmask 7168
        %1662 = vst.msk [vmem:[%s841] sm:$0xff] %vm1661, %v1656
      $region108: #{asrf_with_brt_forward.3} parent=95 // pred_fallthru
        _
      %p1663 = scmp.lt.s32.totalorder %s38, 1
      %s1664 = scalar_select %p1663, %s38, 1
      %s1665 = smul.addr %s1664, 8
      %s1666 = scalar_lea.vmem %s19, %s1665
      %p1667 = scmp.lt.s32.totalorder %s38, 1
      %s1668 = scalar_select %p1667, %s38, 1
      %s1669 = smul.addr %s1668, 8
      %s1670 = scalar_lea.vmem %s20, %s1669
      // Predicated region
      $region109: #{asrf_with_brt_forward.3} parent=95 // pred_check
        %p1671 = pneg %p528
      $region110: #{asrf_with_brt_forward.3} parent=95 // pred_check_branch
        %1673 = sbr.rel (%p1671) target = $region112
      $region111: #{asrf_with_brt_forward.3} parent=95 // pred_region
        _
      $region112: #{asrf_with_brt_forward.3} parent=95 // pred_fallthru
        _
      // Predicated region
      $region113: #{asrf_with_brt_forward.3} parent=95 // pred_check
        %p1674 = pneg %p554
      $region114: #{asrf_with_brt_forward.3} parent=95 // pred_check_branch
        %1676 = sbr.rel (%p1674) target = $region116
      $region115: #{asrf_with_brt_forward.3} parent=95 // pred_region
        _
      $region116: #{asrf_with_brt_forward.3} parent=95 // pred_fallthru
        _
    $region96: #{asrf_with_brt_forward.3} parent=5 // pred_fallthru
      _
    %p1677 = scmp.le.s32.totalorder 2, %s29
    // Predicated region
    $region117: #{asrf_with_brt_forward.3} parent=5 // pred_check
      %p1678 = pneg %p1677
    $region118: #{asrf_with_brt_forward.3} parent=5 // pred_check_branch
      %1680 = sbr.rel (%p1678) target = $region120
    $region119: #{asrf_with_brt_forward.3} parent=5 // pred_region
      %s1681 = ssub.s32 %s29, 2
      // Predicated region
      $region121: #{asrf_with_brt_forward.3} parent=119 // pred_check
        %p1682 = pneg %p534
      $region122: #{asrf_with_brt_forward.3} parent=119 // pred_check_branch
        %1684 = sbr.rel (%p1682) target = $region124
      $region123: #{asrf_with_brt_forward.3} parent=119 // pred_region
        %p1685 = scmp.lt.s32.totalorder %s40, 1
        %s1686 = scalar_select %p1685, %s40, 1
        %s1687 = smul.addr %s1686, 8
        %s1688 = scalar_lea.vmem %s19, %s1687
      $region124: #{asrf_with_brt_forward.3} parent=119 // pred_fallthru
        _
      // Predicated region
      $region125: #{asrf_with_brt_forward.3} parent=119 // pred_check
        %p1689 = pneg %p560
      $region126: #{asrf_with_brt_forward.3} parent=119 // pred_check_branch
        %1691 = sbr.rel (%p1689) target = $region128
      $region127: #{asrf_with_brt_forward.3} parent=119 // pred_region
        %p1692 = scmp.lt.s32.totalorder %s40, 1
        %s1693 = scalar_select %p1692, %s40, 1
        %s1694 = smul.addr %s1693, 8
        %s1695 = scalar_lea.vmem %s20, %s1694
      $region128: #{asrf_with_brt_forward.3} parent=119 // pred_fallthru
        _
    $region120: #{asrf_with_brt_forward.3} parent=5 // pred_fallthru
      _
  $region6: #{asrf_with_brt_forward.3} parent=0 // loop_footer
    %s33 = sadd.s32 1, %s29
  $region7: #{asrf_with_brt_forward.3} parent=0 // loop_footer_branch
    %28 = sbr.rel target = $region3
  $region8: #{asrf_with_brt_forward.3} parent=0 // loop_exit
    _

</llo_original>
